<compile_context>
chip_gen: v5e
topology: v5e:2x2
jax: 0.10.0
libtpu: 0.0.40
codegen_flags: <defaults>
</compile_context>

<pallas_src>
import functools

import jax
import jax.numpy as jnp
from jax.experimental import pallas as pl
from jax.experimental.pallas import tpu as pltpu

EPS_BN = 1e-5


def _round_up(x, m):
    return (x + m - 1) // m * m


@functools.lru_cache(maxsize=1)
def _vmem_limit_bytes():
    """Generation-aware scoped-VMEM limit: <=48 MiB on v7x (64 MiB physical), ~96 MiB on v5e/v6e."""
    try:
        cap = int(getattr(pltpu.get_tpu_info(), "vmem_capacity_bytes", 64 * 1024 * 1024))
    except Exception:
        cap = 64 * 1024 * 1024  # conservative: valid on every generation
    return int(min(cap * 3 // 4, 96 * 1024 * 1024))


def _choose_tile(rows, bytes_per_row, max_tile=2048):
    """Largest row tile whose double-buffered streams fit ~1/3 of the scoped VMEM budget."""
    budget = _vmem_limit_bytes() // 3
    t = int(min(max_tile, max(8, budget // max(int(bytes_per_row), 1))))
    t -= t % 8
    if rows <= t:
        if rows > 1024:  # keep >=2 grid steps so both v7x TensorCores get work
            return _round_up(-(-rows // 2), 8)
        return rows
    return t


# ----------------------------- Pallas kernels ------------------------------


def _make_fused_linear_kernel(*, has_add, has_prologue, emit_stats, tile, total_rows):
    def kernel(*refs):
        it = iter(refs)
        x_ref = next(it)
        add_ref = next(it) if has_add else None
        w_ref = next(it)
        s_ref = next(it) if has_prologue else None
        t_ref = next(it) if has_prologue else None
        b_ref = next(it)
        o_ref = next(it)
        stats_ref = next(it) if emit_stats else None

        x = x_ref[...]
        if has_add or has_prologue:
            x = x.astype(jnp.float32)
            if has_add:
                x = x + add_ref[...].astype(jnp.float32)     # fused elementwise add (VPU)
            if has_prologue:
                # fused BatchNorm affine (stats pre-folded into scale/shift) + ReLU
                x = jnp.maximum(x * s_ref[...] + t_ref[...], 0.0)
        y = jnp.dot(x.astype(jnp.bfloat16), w_ref[...],
                    preferred_element_type=jnp.float32)
        y = y + b_ref[...]
        o_ref[...] = y.astype(o_ref.dtype)

        if emit_stats:
            # per-tile channel sum / sum-of-squares (fp32) for the next BatchNorm's stats.
            co = y.shape[1]
            row = pl.program_id(0) * tile + jax.lax.broadcasted_iota(jnp.int32, y.shape, 0)
            yv = jnp.where(row < total_rows, y, 0.0)          # mask partial last tile
            s1 = jnp.sum(yv, axis=0, keepdims=True)
            s2 = jnp.sum(yv * yv, axis=0, keepdims=True)
            rid = jax.lax.broadcasted_iota(jnp.int32, (8, co), 0)
            stats_ref[...] = jnp.where(
                rid == 0, jnp.broadcast_to(s1, (8, co)),
                jnp.where(rid == 1, jnp.broadcast_to(s2, (8, co)), 0.0))

    return kernel


def fused_linear(x, w, *, scale=None, shift=None, bias=None, add=None,
                 out_dtype=jnp.float32, emit_stats=False):
    """y = prologue(x [+ add]) @ w + bias, prologue = relu(.*scale + shift) if scale given.

    Row-tiled; x/add may be fp32 or bf16, w is cast to bf16 for the MXU, accumulation fp32.
    If emit_stats, also returns a [steps*8, Co] fp32 array whose rows 0/1 per tile hold the
    channel sum / sum-of-squares of the fp32 result.
    """
    m, k = x.shape
    co = w.shape[1]
    has_prologue = scale is not None
    has_add = add is not None

    # keep the tiny-contraction path MXU friendly (only hit for the [b*n, 3] pos matmul)
    kp = k if k >= 8 else 8
    if kp != k:
        x = jnp.pad(x, ((0, 0), (0, kp - k)))
        w = jnp.pad(w, ((0, kp - k), (0, 0)))
        if has_add:
            add = jnp.pad(add, ((0, 0), (0, kp - k)))
        if has_prologue:
            scale = jnp.pad(scale.reshape(-1), (0, kp - k), constant_values=1.0)
            shift = jnp.pad(shift.reshape(-1), (0, kp - k))
    if has_prologue:
        scale = scale.reshape(1, kp).astype(jnp.float32)
        shift = shift.reshape(1, kp).astype(jnp.float32)
    if bias is None:
        bias = jnp.zeros((co,), jnp.float32)
    bias = bias.reshape(1, co).astype(jnp.float32)
    w = w.astype(jnp.bfloat16)

    bytes_per_row = 2 * (kp * x.dtype.itemsize + co * jnp.dtype(out_dtype).itemsize)
    if has_add:
        bytes_per_row += 2 * kp * add.dtype.itemsize
    tile = _choose_tile(m, bytes_per_row)
    steps = pl.cdiv(m, tile)

    inputs = [x]
    in_specs = [pl.BlockSpec((tile, kp), lambda i: (i, 0))]
    if has_add:
        inputs.append(add)
        in_specs.append(pl.BlockSpec((tile, kp), lambda i: (i, 0)))
    inputs.append(w)
    in_specs.append(pl.BlockSpec((kp, co), lambda i: (0, 0)))
    if has_prologue:
        inputs += [scale, shift]
        in_specs += [pl.BlockSpec((1, kp), lambda i: (0, 0)),
                     pl.BlockSpec((1, kp), lambda i: (0, 0))]
    inputs.append(bias)
    in_specs.append(pl.BlockSpec((1, co), lambda i: (0, 0)))

    out_shape = [jax.ShapeDtypeStruct((m, co), out_dtype)]
    out_specs = [pl.BlockSpec((tile, co), lambda i: (i, 0))]
    if emit_stats:
        out_shape.append(jax.ShapeDtypeStruct((steps * 8, co), jnp.float32))
        out_specs.append(pl.BlockSpec((8, co), lambda i: (i, 0)))

    kernel = _make_fused_linear_kernel(has_add=has_add, has_prologue=has_prologue,
                                       emit_stats=emit_stats, tile=tile, total_rows=m)
    outs = pl.pallas_call(
        kernel,
        out_shape=tuple(out_shape),
        grid=(steps,),
        in_specs=in_specs,
        out_specs=tuple(out_specs),
        compiler_params=pltpu.CompilerParams(
            dimension_semantics=("parallel",),
            vmem_limit_bytes=_vmem_limit_bytes()),
    )(*inputs)
    if emit_stats:
        return outs[0], outs[1]
    return outs[0]


def _attn_reduce_kernel(w_ref, v_ref, r_ref, o_ref):
    # per-channel softmax over neighbors s + einsum('bijd,bijd->bid'),
    # with "v = v + rel_pos_emb" fused in (VPU slots are free in this mem-bound kernel).
    w = w_ref[...].astype(jnp.float32)
    vv = v_ref[...].astype(jnp.float32) + r_ref[...].astype(jnp.float32)
    mx = jnp.max(w, axis=1, keepdims=True)
    e = jnp.exp(w - mx)
    denom = jnp.sum(e, axis=1)                 # >= 1 (max element contributes 1)
    num = jnp.sum(e * vv, axis=1)
    o_ref[...] = (num * pl.reciprocal(denom, approx=True)).astype(o_ref.dtype)


def attn_softmax_reduce(sim, v, rpe):
    """sim, v, rpe: [rows, s, c] -> [rows, c]; softmax(sim) over s, sum((v+rpe)*softmax)."""
    r, s, c = sim.shape
    bytes_per_row = 2 * (s * c * (sim.dtype.itemsize + v.dtype.itemsize + rpe.dtype.itemsize)
                         + c * 4)
    tile = _choose_tile(r, bytes_per_row)
    steps = pl.cdiv(r, tile)
    # TODO(synk): when c < 128 the (tile, c) output store is lane-masked; packing 128//c rows
    # per lane-dense slab needs an in-kernel relayout reshape (left out for lowering safety).
    return pl.pallas_call(
        _attn_reduce_kernel,
        out_shape=jax.ShapeDtypeStruct((r, c), jnp.float32),
        grid=(steps,),
        in_specs=[pl.BlockSpec((tile, s, c), lambda i: (i, 0, 0)),
                  pl.BlockSpec((tile, s, c), lambda i: (i, 0, 0)),
                  pl.BlockSpec((tile, s, c), lambda i: (i, 0, 0))],
        out_specs=pl.BlockSpec((tile, c), lambda i: (i, 0)),
        compiler_params=pltpu.CompilerParams(
            dimension_semantics=("parallel",),
            vmem_limit_bytes=_vmem_limit_bytes()),
    )(sim, v, rpe)


# --------------------------- BatchNorm (training-mode) stats ----------------------------


def _bn_affine(mu, var, gamma, beta, eps=EPS_BN):
    inv = jax.lax.rsqrt(var + eps)
    scale = gamma * inv
    return scale, beta - mu * scale


def bn_stats_of_sum(a, b, gamma, beta, eps=EPS_BN):
    """BN batch stats (biased var) of (a + b) via a fused XLA reduction (no fp32 temp in HBM)."""
    x = a.astype(jnp.float32) + b.astype(jnp.float32)
    mu = jnp.mean(x, axis=0)
    var = jnp.maximum(jnp.mean(x * x, axis=0) - mu * mu, 0.0)
    return _bn_affine(mu, var, gamma, beta, eps)


def bn_stats_from_partials(stats, count, gamma, beta, eps=EPS_BN):
    """BN batch stats from per-tile (sum, sum-of-squares) partials emitted by fused_linear."""
    co = stats.shape[-1]
    st = stats.reshape(-1, 8, co)
    s1 = jnp.sum(st[:, 0, :], axis=0)
    s2 = jnp.sum(st[:, 1, :], axis=0)
    mu = s1 / count
    var = jnp.maximum(s2 / count - mu * mu, 0.0)
    return _bn_affine(mu, var, gamma, beta, eps)


def bn_stats_pairwise_diff(p_emb, batch, n, gamma, beta, eps=EPS_BN):
    """BN stats of h[b,i,j] = p_emb[b,i] - p_emb[b,j] over all b*n*n pairs, computed
    analytically from p_emb (the per-channel mean is exactly 0)."""
    a = p_emb.reshape(batch, n, -1).astype(jnp.float32)
    s1 = jnp.sum(a, axis=1)              # [b, H]
    s2 = jnp.sum(a * a, axis=1)          # [b, H]
    var = (2.0 * jnp.sum(s2, axis=0) / (batch * n)
           - 2.0 * jnp.sum(s1 * s1, axis=0) / (batch * n * n))
    var = jnp.maximum(var, 0.0)
    return _bn_affine(jnp.zeros_like(var), var, gamma, beta, eps)


# ------------------------------ gather helpers -------------------------------


def gather_neighbors(t, idx):
    # t: [b, n, c], idx: [b, n, k] -> [b, n, k, c]
    return jax.vmap(lambda tb, ib: tb[ib])(t, idx)


# ------------------------------ module forward --------------------------------


def point_transformer_layer(x, pos, params, *, num_neighbors=None, mask=None):
    """Forward of PointTransformerLayer. x: [b, n, dim], pos: [b, n, 3]."""
    if mask is not None:
        # TODO(synk): mask branch (pairwise masking + masked_fill) not implemented.
        raise NotImplementedError("mask is not supported")
    b, n, dim = x.shape

    # to_qkv (no bias)
    qkv = fused_linear(x.reshape(b * n, dim), params["w_qkv"]).reshape(b, n, 3 * dim)
    q, k, v = qkv[..., :dim], qkv[..., dim:2 * dim], qkv[..., 2 * dim:]

    # pos_mlp stage 1: rel_pos @ W1 == pos_i@W1 - pos_j@W1, so the O(b*n^2) K=3 matmul
    # collapses to an O(b*n) one; BN stats over all b*n*n pairs are computed analytically.
    p_emb = fused_linear(pos.reshape(b * n, 3), params["w_pos1"])         # [b*n, H] fp32
    sc1, sh1 = bn_stats_pairwise_diff(p_emb, b, n,
                                      params["pos_bn_g"], params["pos_bn_b"])
    p_emb = p_emb.reshape(b, n, -1)

    # neighbor selection (torch.topk largest=False on rel_pos.norm)
    if num_neighbors is not None and num_neighbors < n:
        rel_pos = pos[:, :, None, :] - pos[:, None, :, :]
        rel_dist2 = jnp.sum(rel_pos * rel_pos, axis=-1)        # monotone in the norm
        _, idx = jax.lax.top_k(-rel_dist2, num_neighbors)      # [b, n, s] nearest (incl. self)
        s = num_neighbors
        h_sel = p_emb[:, :, None, :] - gather_neighbors(p_emb, idx)       # [b, n, s, H]
        k_sel = gather_neighbors(k, idx)
        v_sel = gather_neighbors(v, idx)
    else:
        s = n
        h_sel = p_emb[:, :, None, :] - p_emb[:, None, :, :]               # [b, n, n, H]
        k_sel = jnp.broadcast_to(k[:, None], (b, n, n, dim))
        v_sel = jnp.broadcast_to(v[:, None], (b, n, n, dim))

    rows = b * n * s

    # pos_mlp stage 2 (BN -> ReLU -> Linear) only on gathered neighbor rows, bf16 streamed.
    rpe = fused_linear(h_sel.reshape(rows, -1).astype(jnp.bfloat16), params["w_pos2"],
                       scale=sc1, shift=sh1, bias=params["b_pos2"],
                       out_dtype=jnp.bfloat16)                            # [rows, dim]

    qk_rel = (q[:, :, None, :] - k_sel).astype(jnp.bfloat16).reshape(rows, dim)
    v_sel = v_sel.astype(jnp.bfloat16).reshape(b * n, s, dim)

    # attn_mlp: BN -> ReLU -> Linear(dim, mult*dim) -> BN -> ReLU -> Linear(mult*dim, dim).
    # The "qk_rel + rel_pos_emb" add is fused into the first matmul's prologue; BN2 stats
    # come back as per-tile partials so h2 is never re-read for statistics.
    sc2, sh2 = bn_stats_of_sum(qk_rel, rpe, params["attn_bn1_g"], params["attn_bn1_b"])
    h2, h2_stats = fused_linear(qk_rel, params["w_attn1"], add=rpe,
                                scale=sc2, shift=sh2, bias=params["b_attn1"],
                                out_dtype=jnp.bfloat16, emit_stats=True)  # [rows, hid]
    sc3, sh3 = bn_stats_from_partials(h2_stats, rows,
                                      params["attn_bn2_g"], params["attn_bn2_b"])
    sim = fused_linear(h2, params["w_attn2"], scale=sc3, shift=sh3, bias=params["b_attn2"],
                       out_dtype=jnp.bfloat16)                            # [rows, dim]

    # softmax over neighbors + einsum('b i j d, b i j d -> b i d'), with v = v + rpe fused.
    agg = attn_softmax_reduce(sim.reshape(b * n, s, dim), v_sel,
                              rpe.reshape(b * n, s, dim))                 # [b*n, dim] fp32
    return agg.reshape(b, n, dim)


# --------------------------- deterministic params -----------------------------


def _uniform(key, shape, fan_in):
    bound = 1.0 / (fan_in ** 0.5)
    return jax.random.uniform(key, shape, jnp.float32, -bound, bound)


def init_params(key, dim, pos_hidden, attn_mult):
    ks = jax.random.split(key, 8)
    hid = dim * attn_mult
    return {
        "w_qkv": _uniform(ks[0], (dim, 3 * dim), dim),
        "w_pos1": _uniform(ks[1], (3, pos_hidden), 3),
        "pos_bn_g": jnp.ones((pos_hidden,), jnp.float32),
        "pos_bn_b": jnp.zeros((pos_hidden,), jnp.float32),
        "w_pos2": _uniform(ks[2], (pos_hidden, dim), pos_hidden),
        "b_pos2": _uniform(ks[3], (dim,), pos_hidden),
        "attn_bn1_g": jnp.ones((dim,), jnp.float32),
        "attn_bn1_b": jnp.zeros((dim,), jnp.float32),
        "w_attn1": _uniform(ks[4], (dim, hid), dim),
        "b_attn1": _uniform(ks[5], (hid,), dim),
        "attn_bn2_g": jnp.ones((hid,), jnp.float32),
        "attn_bn2_b": jnp.zeros((hid,), jnp.float32),
        "w_attn2": _uniform(ks[6], (hid, dim), hid),
        "b_attn2": _uniform(ks[7], (dim,), hid),
    }


# ----------------------------------- main --------------------------------------


if __name__ == "__main__":
    key = jax.random.PRNGKey(0)
    kx, kpos, kparam = jax.random.split(key, 3)

    b, n, dim = 2, 32, 32
    pos_mlp_hidden_dim = 64
    attn_mlp_hidden_mult = 4
    num_neighbors = 8

    x = jax.random.normal(kx, (b, n, dim), jnp.float32)
    pos = jax.random.normal(kpos, (b, n, 3), jnp.float32)
    params = init_params(kparam, dim, pos_mlp_hidden_dim, attn_mlp_hidden_mult)

    fwd = jax.jit(functools.partial(point_transformer_layer, num_neighbors=num_neighbors))
    out = fwd(x, pos, params)
    out = jax.block_until_ready(out)

    assert out.shape == (b, n, dim) and out.dtype == jnp.float32
    assert bool(jnp.all(jnp.isfinite(out)))
    print("KERNEL_OK")
</pallas_src>

<mosaic_0001>
module attributes {stable_mosaic.version = 11 : i64} {
  func.func @kernel(%arg0: i32, %arg1: memref<64x8xf32, #tpu.memory_space<vmem>>, %arg2: memref<8x64xbf16, #tpu.memory_space<vmem>>, %arg3: memref<1x64xf32, #tpu.memory_space<vmem>>, %arg4: memref<64x64xf32, #tpu.memory_space<vmem>>) attributes {dimension_semantics = [#tpu.dimension_semantics<parallel>], iteration_bounds = array<i64: 1>, scalar_prefetch = 0 : i64, scratch_operands = 0 : i64, tpu.core_type = #tpu.core_type<tc>, window_params = [{transform_indices = @transform_0, window_bounds = array<i64: 64, 8>}, {pipeline_mode = #tpu.pipeline_mode<synchronous>, transform_indices = @transform_1, window_bounds = array<i64: 8, 64>}, {pipeline_mode = #tpu.pipeline_mode<synchronous>, transform_indices = @transform_2, window_bounds = array<i64: 1, 64>}, {transform_indices = @transform_3, window_bounds = array<i64: 64, 64>}]} {
    %c0 = arith.constant 0 : index
    %c0_0 = arith.constant 0 : index
    %0 = vector.load %arg1[%c0, %c0_0] : memref<64x8xf32, #tpu.memory_space<vmem>>, vector<64x8xf32>
    %1 = arith.truncf %0 : vector<64x8xf32> to vector<64x8xbf16>
    %c0_1 = arith.constant 0 : index
    %c0_2 = arith.constant 0 : index
    %2 = vector.load %arg2[%c0_1, %c0_2] : memref<8x64xbf16, #tpu.memory_space<vmem>>, vector<8x64xbf16>
    %cst = arith.constant dense<0.000000e+00> : vector<64x64xf32>
    %3 = tpu.matmul %1, %2, %cst {dimension_numbers = #tpu.dot_dimension_numbers<[1], [0], [0], [1], [0, 0, 1, 1], [], []>} : vector<64x8xbf16>, vector<8x64xbf16>, vector<64x64xf32> -> vector<64x64xf32>
    %c0_3 = arith.constant 0 : index
    %c0_4 = arith.constant 0 : index
    %4 = vector.load %arg3[%c0_3, %c0_4] : memref<1x64xf32, #tpu.memory_space<vmem>>, vector<1x64xf32>
    %5 = vector.broadcast %4 : vector<1x64xf32> to vector<64x64xf32>
    %6 = arith.addf %3, %5 : vector<64x64xf32>
    %c0_5 = arith.constant 0 : index
    %c0_6 = arith.constant 0 : index
    %7 = vector.load %arg4[%c0_5, %c0_6] : memref<64x64xf32, #tpu.memory_space<vmem>>, vector<64x64xf32>
    tpu.vector_store %arg4[%c0_5, %c0_6], %6 {strides = array<i32>} : memref<64x64xf32, #tpu.memory_space<vmem>>, vector<64x64xf32>,
    return
  }
  func.func @transform_0(%arg0: i32) -> (i32, i32) {
    %c0_i32 = arith.constant 0 : i32
    %c0_i32_0 = arith.constant 0 : i32
    return %arg0, %c0_i32 : i32, i32
  }
  func.func @transform_1(%arg0: i32) -> (i32, i32) {
    %c0_i32 = arith.constant 0 : i32
    %c0_i32_0 = arith.constant 0 : i32
    %c0_i32_1 = arith.constant 0 : i32
    return %c0_i32, %c0_i32_0 : i32, i32
  }
  func.func @transform_2(%arg0: i32) -> (i32, i32) {
    %c0_i32 = arith.constant 0 : i32
    %c0_i32_0 = arith.constant 0 : i32
    %c0_i32_1 = arith.constant 0 : i32
    return %c0_i32, %c0_i32_0 : i32, i32
  }
  func.func @transform_3(%arg0: i32) -> (i32, i32) {
    %c0_i32 = arith.constant 0 : i32
    %c0_i32_0 = arith.constant 0 : i32
    return %arg0, %c0_i32 : i32, i32
  }
}

module attributes {stable_mosaic.version = 11 : i64} {
  func.func @kernel(%arg0: i32, %arg1: memref<512x64xbf16, #tpu.memory_space<vmem>>, %arg2: memref<64x32xbf16, #tpu.memory_space<vmem>>, %arg3: memref<1x64xf32, #tpu.memory_space<vmem>>, %arg4: memref<1x64xf32, #tpu.memory_space<vmem>>, %arg5: memref<1x32xf32, #tpu.memory_space<vmem>>, %arg6: memref<512x32xbf16, #tpu.memory_space<vmem>>) attributes {dimension_semantics = [#tpu.dimension_semantics<parallel>], iteration_bounds = array<i64: 1>, scalar_prefetch = 0 : i64, scratch_operands = 0 : i64, tpu.core_type = #tpu.core_type<tc>, window_params = [{transform_indices = @transform_0, window_bounds = array<i64: 512, 64>}, {pipeline_mode = #tpu.pipeline_mode<synchronous>, transform_indices = @transform_1, window_bounds = array<i64: 64, 32>}, {pipeline_mode = #tpu.pipeline_mode<synchronous>, transform_indices = @transform_2, window_bounds = array<i64: 1, 64>}, {pipeline_mode = #tpu.pipeline_mode<synchronous>, transform_indices = @transform_3, window_bounds = array<i64: 1, 64>}, {pipeline_mode = #tpu.pipeline_mode<synchronous>, transform_indices = @transform_4, window_bounds = array<i64: 1, 32>}, {transform_indices = @transform_5, window_bounds = array<i64: 512, 32>}]} {
    %c0 = arith.constant 0 : index
    %c0_0 = arith.constant 0 : index
    %0 = vector.load %arg1[%c0, %c0_0] : memref<512x64xbf16, #tpu.memory_space<vmem>>, vector<512x64xbf16>
    %1 = arith.extf %0 : vector<512x64xbf16> to vector<512x64xf32>
    %c0_1 = arith.constant 0 : index
    %c0_2 = arith.constant 0 : index
    %2 = vector.load %arg3[%c0_1, %c0_2] : memref<1x64xf32, #tpu.memory_space<vmem>>, vector<1x64xf32>
    %3 = vector.broadcast %2 : vector<1x64xf32> to vector<512x64xf32>
    %4 = arith.mulf %1, %3 : vector<512x64xf32>
    %c0_3 = arith.constant 0 : index
    %c0_4 = arith.constant 0 : index
    %5 = vector.load %arg4[%c0_3, %c0_4] : memref<1x64xf32, #tpu.memory_space<vmem>>, vector<1x64xf32>
    %6 = vector.broadcast %5 : vector<1x64xf32> to vector<512x64xf32>
    %7 = arith.addf %4, %6 : vector<512x64xf32>
    %cst = arith.constant 0.000000e+00 : f32
    %8 = vector.broadcast %cst : f32 to vector<512x64xf32>
    %9 = arith.maximumf %7, %8 : vector<512x64xf32>
    %10 = arith.truncf %9 : vector<512x64xf32> to vector<512x64xbf16>
    %c0_5 = arith.constant 0 : index
    %c0_6 = arith.constant 0 : index
    %11 = vector.load %arg2[%c0_5, %c0_6] : memref<64x32xbf16, #tpu.memory_space<vmem>>, vector<64x32xbf16>
    %cst_7 = arith.constant dense<0.000000e+00> : vector<512x32xf32>
    %12 = tpu.matmul %10, %11, %cst_7 {dimension_numbers = #tpu.dot_dimension_numbers<[1], [0], [0], [1], [0, 0, 1, 1], [], []>} : vector<512x64xbf16>, vector<64x32xbf16>, vector<512x32xf32> -> vector<512x32xf32>
    %c0_8 = arith.constant 0 : index
    %c0_9 = arith.constant 0 : index
    %13 = vector.load %arg5[%c0_8, %c0_9] : memref<1x32xf32, #tpu.memory_space<vmem>>, vector<1x32xf32>
    %14 = vector.broadcast %13 : vector<1x32xf32> to vector<512x32xf32>
    %15 = arith.addf %12, %14 : vector<512x32xf32>
    %16 = arith.truncf %15 : vector<512x32xf32> to vector<512x32xbf16>
    %c0_10 = arith.constant 0 : index
    %c0_11 = arith.constant 0 : index
    %17 = vector.load %arg6[%c0_10, %c0_11] : memref<512x32xbf16, #tpu.memory_space<vmem>>, vector<512x32xbf16>
    tpu.vector_store %arg6[%c0_10, %c0_11], %16 {strides = array<i32>} : memref<512x32xbf16, #tpu.memory_space<vmem>>, vector<512x32xbf16>,
    return
  }
  func.func @transform_0(%arg0: i32) -> (i32, i32) {
    %c0_i32 = arith.constant 0 : i32
    %c0_i32_0 = arith.constant 0 : i32
    return %arg0, %c0_i32 : i32, i32
  }
  func.func @transform_1(%arg0: i32) -> (i32, i32) {
    %c0_i32 = arith.constant 0 : i32
    %c0_i32_0 = arith.constant 0 : i32
    %c0_i32_1 = arith.constant 0 : i32
    return %c0_i32, %c0_i32_0 : i32, i32
  }
  func.func @transform_2(%arg0: i32) -> (i32, i32) {
    %c0_i32 = arith.constant 0 : i32
    %c0_i32_0 = arith.constant 0 : i32
    %c0_i32_1 = arith.constant 0 : i32
    return %c0_i32, %c0_i32_0 : i32, i32
  }
  func.func @transform_3(%arg0: i32) -> (i32, i32) {
    %c0_i32 = arith.constant 0 : i32
    %c0_i32_0 = arith.constant 0 : i32
    %c0_i32_1 = arith.constant 0 : i32
    return %c0_i32, %c0_i32_0 : i32, i32
  }
  func.func @transform_4(%arg0: i32) -> (i32, i32) {
    %c0_i32 = arith.constant 0 : i32
    %c0_i32_0 = arith.constant 0 : i32
    %c0_i32_1 = arith.constant 0 : i32
    return %c0_i32, %c0_i32_0 : i32, i32
  }
  func.func @transform_5(%arg0: i32) -> (i32, i32) {
    %c0_i32 = arith.constant 0 : i32
    %c0_i32_0 = arith.constant 0 : i32
    return %arg0, %c0_i32 : i32, i32
  }
}

module attributes {stable_mosaic.version = 11 : i64} {
  func.func @kernel(%arg0: i32, %arg1: memref<64x32xf32, #tpu.memory_space<vmem>>, %arg2: memref<32x96xbf16, #tpu.memory_space<vmem>>, %arg3: memref<1x96xf32, #tpu.memory_space<vmem>>, %arg4: memref<64x96xf32, #tpu.memory_space<vmem>>) attributes {dimension_semantics = [#tpu.dimension_semantics<parallel>], iteration_bounds = array<i64: 1>, scalar_prefetch = 0 : i64, scratch_operands = 0 : i64, tpu.core_type = #tpu.core_type<tc>, window_params = [{transform_indices = @transform_0, window_bounds = array<i64: 64, 32>}, {pipeline_mode = #tpu.pipeline_mode<synchronous>, transform_indices = @transform_1, window_bounds = array<i64: 32, 96>}, {pipeline_mode = #tpu.pipeline_mode<synchronous>, transform_indices = @transform_2, window_bounds = array<i64: 1, 96>}, {transform_indices = @transform_3, window_bounds = array<i64: 64, 96>}]} {
    %c0 = arith.constant 0 : index
    %c0_0 = arith.constant 0 : index
    %0 = vector.load %arg1[%c0, %c0_0] : memref<64x32xf32, #tpu.memory_space<vmem>>, vector<64x32xf32>
    %1 = arith.truncf %0 : vector<64x32xf32> to vector<64x32xbf16>
    %c0_1 = arith.constant 0 : index
    %c0_2 = arith.constant 0 : index
    %2 = vector.load %arg2[%c0_1, %c0_2] : memref<32x96xbf16, #tpu.memory_space<vmem>>, vector<32x96xbf16>
    %cst = arith.constant dense<0.000000e+00> : vector<64x96xf32>
    %3 = tpu.matmul %1, %2, %cst {dimension_numbers = #tpu.dot_dimension_numbers<[1], [0], [0], [1], [0, 0, 1, 1], [], []>} : vector<64x32xbf16>, vector<32x96xbf16>, vector<64x96xf32> -> vector<64x96xf32>
    %c0_3 = arith.constant 0 : index
    %c0_4 = arith.constant 0 : index
    %4 = vector.load %arg3[%c0_3, %c0_4] : memref<1x96xf32, #tpu.memory_space<vmem>>, vector<1x96xf32>
    %5 = vector.broadcast %4 : vector<1x96xf32> to vector<64x96xf32>
    %6 = arith.addf %3, %5 : vector<64x96xf32>
    %c0_5 = arith.constant 0 : index
    %c0_6 = arith.constant 0 : index
    %7 = vector.load %arg4[%c0_5, %c0_6] : memref<64x96xf32, #tpu.memory_space<vmem>>, vector<64x96xf32>
    tpu.vector_store %arg4[%c0_5, %c0_6], %6 {strides = array<i32>} : memref<64x96xf32, #tpu.memory_space<vmem>>, vector<64x96xf32>,
    return
  }
  func.func @transform_0(%arg0: i32) -> (i32, i32) {
    %c0_i32 = arith.constant 0 : i32
    %c0_i32_0 = arith.constant 0 : i32
    return %arg0, %c0_i32 : i32, i32
  }
  func.func @transform_1(%arg0: i32) -> (i32, i32) {
    %c0_i32 = arith.constant 0 : i32
    %c0_i32_0 = arith.constant 0 : i32
    %c0_i32_1 = arith.constant 0 : i32
    return %c0_i32, %c0_i32_0 : i32, i32
  }
  func.func @transform_2(%arg0: i32) -> (i32, i32) {
    %c0_i32 = arith.constant 0 : i32
    %c0_i32_0 = arith.constant 0 : i32
    %c0_i32_1 = arith.constant 0 : i32
    return %c0_i32, %c0_i32_0 : i32, i32
  }
  func.func @transform_3(%arg0: i32) -> (i32, i32) {
    %c0_i32 = arith.constant 0 : i32
    %c0_i32_0 = arith.constant 0 : i32
    return %arg0, %c0_i32 : i32, i32
  }
}

module attributes {stable_mosaic.version = 11 : i64} {
  func.func @kernel(%arg0: i32, %arg1: memref<512x32xbf16, #tpu.memory_space<vmem>>, %arg2: memref<512x32xbf16, #tpu.memory_space<vmem>>, %arg3: memref<32x128xbf16, #tpu.memory_space<vmem>>, %arg4: memref<1x32xf32, #tpu.memory_space<vmem>>, %arg5: memref<1x32xf32, #tpu.memory_space<vmem>>, %arg6: memref<1x128xf32, #tpu.memory_space<vmem>>, %arg7: memref<512x128xbf16, #tpu.memory_space<vmem>>, %arg8: memref<8x128xf32, #tpu.memory_space<vmem>>) attributes {dimension_semantics = [#tpu.dimension_semantics<parallel>], iteration_bounds = array<i64: 1>, scalar_prefetch = 0 : i64, scratch_operands = 0 : i64, tpu.core_type = #tpu.core_type<tc>, window_params = [{transform_indices = @transform_0, window_bounds = array<i64: 512, 32>}, {transform_indices = @transform_1, window_bounds = array<i64: 512, 32>}, {pipeline_mode = #tpu.pipeline_mode<synchronous>, transform_indices = @transform_2, window_bounds = array<i64: 32, 128>}, {pipeline_mode = #tpu.pipeline_mode<synchronous>, transform_indices = @transform_3, window_bounds = array<i64: 1, 32>}, {pipeline_mode = #tpu.pipeline_mode<synchronous>, transform_indices = @transform_4, window_bounds = array<i64: 1, 32>}, {pipeline_mode = #tpu.pipeline_mode<synchronous>, transform_indices = @transform_5, window_bounds = array<i64: 1, 128>}, {transform_indices = @transform_6, window_bounds = array<i64: 512, 128>}, {transform_indices = @transform_7, window_bounds = array<i64: 8, 128>}]} {
    %c0 = arith.constant 0 : index
    %c0_0 = arith.constant 0 : index
    %0 = vector.load %arg1[%c0, %c0_0] : memref<512x32xbf16, #tpu.memory_space<vmem>>, vector<512x32xbf16>
    %1 = arith.extf %0 : vector<512x32xbf16> to vector<512x32xf32>
    %c0_1 = arith.constant 0 : index
    %c0_2 = arith.constant 0 : index
    %2 = vector.load %arg2[%c0_1, %c0_2] : memref<512x32xbf16, #tpu.memory_space<vmem>>, vector<512x32xbf16>
    %3 = arith.extf %2 : vector<512x32xbf16> to vector<512x32xf32>
    %4 = arith.addf %1, %3 : vector<512x32xf32>
    %c0_3 = arith.constant 0 : index
    %c0_4 = arith.constant 0 : index
    %5 = vector.load %arg4[%c0_3, %c0_4] : memref<1x32xf32, #tpu.memory_space<vmem>>, vector<1x32xf32>
    %6 = vector.broadcast %5 : vector<1x32xf32> to vector<512x32xf32>
    %7 = arith.mulf %4, %6 : vector<512x32xf32>
    %c0_5 = arith.constant 0 : index
    %c0_6 = arith.constant 0 : index
    %8 = vector.load %arg5[%c0_5, %c0_6] : memref<1x32xf32, #tpu.memory_space<vmem>>, vector<1x32xf32>
    %9 = vector.broadcast %8 : vector<1x32xf32> to vector<512x32xf32>
    %10 = arith.addf %7, %9 : vector<512x32xf32>
    %cst = arith.constant 0.000000e+00 : f32
    %11 = vector.broadcast %cst : f32 to vector<512x32xf32>
    %12 = arith.maximumf %10, %11 : vector<512x32xf32>
    %13 = arith.truncf %12 : vector<512x32xf32> to vector<512x32xbf16>
    %c0_7 = arith.constant 0 : index
    %c0_8 = arith.constant 0 : index
    %14 = vector.load %arg3[%c0_7, %c0_8] : memref<32x128xbf16, #tpu.memory_space<vmem>>, vector<32x128xbf16>
    %cst_9 = arith.constant dense<0.000000e+00> : vector<512x128xf32>
    %15 = tpu.matmul %13, %14, %cst_9 {dimension_numbers = #tpu.dot_dimension_numbers<[1], [0], [0], [1], [0, 0, 1, 1], [], []>} : vector<512x32xbf16>, vector<32x128xbf16>, vector<512x128xf32> -> vector<512x128xf32>
    %c0_10 = arith.constant 0 : index
    %c0_11 = arith.constant 0 : index
    %16 = vector.load %arg6[%c0_10, %c0_11] : memref<1x128xf32, #tpu.memory_space<vmem>>, vector<1x128xf32>
    %17 = vector.broadcast %16 : vector<1x128xf32> to vector<512x128xf32>
    %18 = arith.addf %15, %17 : vector<512x128xf32>
    %19 = arith.truncf %18 : vector<512x128xf32> to vector<512x128xbf16>
    %c0_12 = arith.constant 0 : index
    %c0_13 = arith.constant 0 : index
    %20 = vector.load %arg7[%c0_12, %c0_13] : memref<512x128xbf16, #tpu.memory_space<vmem>>, vector<512x128xbf16>
    tpu.vector_store %arg7[%c0_12, %c0_13], %19 {strides = array<i32>} : memref<512x128xbf16, #tpu.memory_space<vmem>>, vector<512x128xbf16>,
    %c512_i32 = arith.constant 512 : i32
    %21 = arith.muli %arg0, %c512_i32 : i32
    %22 = tpu.iota {dimensions = array<i32: 0>} : vector<512x128xi32>
    %23 = vector.broadcast %21 : i32 to vector<512x128xi32>
    %24 = arith.addi %23, %22 : vector<512x128xi32>
    %c512_i32_14 = arith.constant 512 : i32
    %25 = vector.broadcast %c512_i32_14 : i32 to vector<512x128xi32>
    %26 = arith.cmpi slt, %24, %25 : vector<512x128xi32>
    %cst_15 = arith.constant 0.000000e+00 : f32
    %27 = vector.broadcast %cst_15 : f32 to vector<512x128xf32>
    %28 = arith.select %26, %18, %27 : vector<512x128xi1>, vector<512x128xf32>
    %cst_16 = arith.constant dense<0.000000e+00> : vector<128xf32>
    %29 = vector.multi_reduction <add>, %28, %cst_16 [0] : vector<512x128xf32> to vector<128xf32>
    %30 = vector.shape_cast %29 : vector<128xf32> to vector<1x128xf32>
    %31 = arith.mulf %28, %28 : vector<512x128xf32>
    %cst_17 = arith.constant dense<0.000000e+00> : vector<128xf32>
    %32 = vector.multi_reduction <add>, %31, %cst_17 [0] : vector<512x128xf32> to vector<128xf32>
    %33 = vector.shape_cast %32 : vector<128xf32> to vector<1x128xf32>
    %34 = tpu.iota {dimensions = array<i32: 0>} : vector<8x128xi32>
    %c0_i32 = arith.constant 0 : i32
    %35 = vector.broadcast %c0_i32 : i32 to vector<8x128xi32>
    %36 = arith.cmpi eq, %34, %35 : vector<8x128xi32>
    %37 = vector.shape_cast %30 : vector<1x128xf32> to vector<1x128xf32>
    %38 = vector.broadcast %37 : vector<1x128xf32> to vector<8x128xf32>
    %c1_i32 = arith.constant 1 : i32
    %39 = vector.broadcast %c1_i32 : i32 to vector<8x128xi32>
    %40 = arith.cmpi eq, %34, %39 : vector<8x128xi32>
    %41 = vector.shape_cast %33 : vector<1x128xf32> to vector<1x128xf32>
    %42 = vector.broadcast %41 : vector<1x128xf32> to vector<8x128xf32>
    %cst_18 = arith.constant 0.000000e+00 : f32
    %43 = vector.broadcast %cst_18 : f32 to vector<8x128xf32>
    %44 = arith.select %40, %42, %43 : vector<8x128xi1>, vector<8x128xf32>
    %45 = arith.select %36, %38, %44 : vector<8x128xi1>, vector<8x128xf32>
    %c0_19 = arith.constant 0 : index
    %c0_20 = arith.constant 0 : index
    %46 = vector.load %arg8[%c0_19, %c0_20] : memref<8x128xf32, #tpu.memory_space<vmem>>, vector<8x128xf32>
    tpu.vector_store %arg8[%c0_19, %c0_20], %45 {strides = array<i32>} : memref<8x128xf32, #tpu.memory_space<vmem>>, vector<8x128xf32>,
    return
  }
  func.func @transform_0(%arg0: i32) -> (i32, i32) {
    %c0_i32 = arith.constant 0 : i32
    %c0_i32_0 = arith.constant 0 : i32
    return %arg0, %c0_i32 : i32, i32
  }
  func.func @transform_1(%arg0: i32) -> (i32, i32) {
    %c0_i32 = arith.constant 0 : i32
    %c0_i32_0 = arith.constant 0 : i32
    return %arg0, %c0_i32 : i32, i32
  }
  func.func @transform_2(%arg0: i32) -> (i32, i32) {
    %c0_i32 = arith.constant 0 : i32
    %c0_i32_0 = arith.constant 0 : i32
    %c0_i32_1 = arith.constant 0 : i32
    return %c0_i32, %c0_i32_0 : i32, i32
  }
  func.func @transform_3(%arg0: i32) -> (i32, i32) {
    %c0_i32 = arith.constant 0 : i32
    %c0_i32_0 = arith.constant 0 : i32
    %c0_i32_1 = arith.constant 0 : i32
    return %c0_i32, %c0_i32_0 : i32, i32
  }
  func.func @transform_4(%arg0: i32) -> (i32, i32) {
    %c0_i32 = arith.constant 0 : i32
    %c0_i32_0 = arith.constant 0 : i32
    %c0_i32_1 = arith.constant 0 : i32
    return %c0_i32, %c0_i32_0 : i32, i32
  }
  func.func @transform_5(%arg0: i32) -> (i32, i32) {
    %c0_i32 = arith.constant 0 : i32
    %c0_i32_0 = arith.constant 0 : i32
    %c0_i32_1 = arith.constant 0 : i32
    return %c0_i32, %c0_i32_0 : i32, i32
  }
  func.func @transform_6(%arg0: i32) -> (i32, i32) {
    %c0_i32 = arith.constant 0 : i32
    %c0_i32_0 = arith.constant 0 : i32
    return %arg0, %c0_i32 : i32, i32
  }
  func.func @transform_7(%arg0: i32) -> (i32, i32) {
    %c0_i32 = arith.constant 0 : i32
    %c0_i32_0 = arith.constant 0 : i32
    return %arg0, %c0_i32 : i32, i32
  }
}

module attributes {stable_mosaic.version = 11 : i64} {
  func.func @kernel(%arg0: i32, %arg1: memref<512x128xbf16, #tpu.memory_space<vmem>>, %arg2: memref<128x32xbf16, #tpu.memory_space<vmem>>, %arg3: memref<1x128xf32, #tpu.memory_space<vmem>>, %arg4: memref<1x128xf32, #tpu.memory_space<vmem>>, %arg5: memref<1x32xf32, #tpu.memory_space<vmem>>, %arg6: memref<512x32xbf16, #tpu.memory_space<vmem>>) attributes {dimension_semantics = [#tpu.dimension_semantics<parallel>], iteration_bounds = array<i64: 1>, scalar_prefetch = 0 : i64, scratch_operands = 0 : i64, tpu.core_type = #tpu.core_type<tc>, window_params = [{transform_indices = @transform_0, window_bounds = array<i64: 512, 128>}, {pipeline_mode = #tpu.pipeline_mode<synchronous>, transform_indices = @transform_1, window_bounds = array<i64: 128, 32>}, {pipeline_mode = #tpu.pipeline_mode<synchronous>, transform_indices = @transform_2, window_bounds = array<i64: 1, 128>}, {pipeline_mode = #tpu.pipeline_mode<synchronous>, transform_indices = @transform_3, window_bounds = array<i64: 1, 128>}, {pipeline_mode = #tpu.pipeline_mode<synchronous>, transform_indices = @transform_4, window_bounds = array<i64: 1, 32>}, {transform_indices = @transform_5, window_bounds = array<i64: 512, 32>}]} {
    %c0 = arith.constant 0 : index
    %c0_0 = arith.constant 0 : index
    %0 = vector.load %arg1[%c0, %c0_0] : memref<512x128xbf16, #tpu.memory_space<vmem>>, vector<512x128xbf16>
    %1 = arith.extf %0 : vector<512x128xbf16> to vector<512x128xf32>
    %c0_1 = arith.constant 0 : index
    %c0_2 = arith.constant 0 : index
    %2 = vector.load %arg3[%c0_1, %c0_2] : memref<1x128xf32, #tpu.memory_space<vmem>>, vector<1x128xf32>
    %3 = vector.broadcast %2 : vector<1x128xf32> to vector<512x128xf32>
    %4 = arith.mulf %1, %3 : vector<512x128xf32>
    %c0_3 = arith.constant 0 : index
    %c0_4 = arith.constant 0 : index
    %5 = vector.load %arg4[%c0_3, %c0_4] : memref<1x128xf32, #tpu.memory_space<vmem>>, vector<1x128xf32>
    %6 = vector.broadcast %5 : vector<1x128xf32> to vector<512x128xf32>
    %7 = arith.addf %4, %6 : vector<512x128xf32>
    %cst = arith.constant 0.000000e+00 : f32
    %8 = vector.broadcast %cst : f32 to vector<512x128xf32>
    %9 = arith.maximumf %7, %8 : vector<512x128xf32>
    %10 = arith.truncf %9 : vector<512x128xf32> to vector<512x128xbf16>
    %c0_5 = arith.constant 0 : index
    %c0_6 = arith.constant 0 : index
    %11 = vector.load %arg2[%c0_5, %c0_6] : memref<128x32xbf16, #tpu.memory_space<vmem>>, vector<128x32xbf16>
    %cst_7 = arith.constant dense<0.000000e+00> : vector<512x32xf32>
    %12 = tpu.matmul %10, %11, %cst_7 {dimension_numbers = #tpu.dot_dimension_numbers<[1], [0], [0], [1], [0, 0, 1, 1], [], []>} : vector<512x128xbf16>, vector<128x32xbf16>, vector<512x32xf32> -> vector<512x32xf32>
    %c0_8 = arith.constant 0 : index
    %c0_9 = arith.constant 0 : index
    %13 = vector.load %arg5[%c0_8, %c0_9] : memref<1x32xf32, #tpu.memory_space<vmem>>, vector<1x32xf32>
    %14 = vector.broadcast %13 : vector<1x32xf32> to vector<512x32xf32>
    %15 = arith.addf %12, %14 : vector<512x32xf32>
    %16 = arith.truncf %15 : vector<512x32xf32> to vector<512x32xbf16>
    %c0_10 = arith.constant 0 : index
    %c0_11 = arith.constant 0 : index
    %17 = vector.load %arg6[%c0_10, %c0_11] : memref<512x32xbf16, #tpu.memory_space<vmem>>, vector<512x32xbf16>
    tpu.vector_store %arg6[%c0_10, %c0_11], %16 {strides = array<i32>} : memref<512x32xbf16, #tpu.memory_space<vmem>>, vector<512x32xbf16>,
    return
  }
  func.func @transform_0(%arg0: i32) -> (i32, i32) {
    %c0_i32 = arith.constant 0 : i32
    %c0_i32_0 = arith.constant 0 : i32
    return %arg0, %c0_i32 : i32, i32
  }
  func.func @transform_1(%arg0: i32) -> (i32, i32) {
    %c0_i32 = arith.constant 0 : i32
    %c0_i32_0 = arith.constant 0 : i32
    %c0_i32_1 = arith.constant 0 : i32
    return %c0_i32, %c0_i32_0 : i32, i32
  }
  func.func @transform_2(%arg0: i32) -> (i32, i32) {
    %c0_i32 = arith.constant 0 : i32
    %c0_i32_0 = arith.constant 0 : i32
    %c0_i32_1 = arith.constant 0 : i32
    return %c0_i32, %c0_i32_0 : i32, i32
  }
  func.func @transform_3(%arg0: i32) -> (i32, i32) {
    %c0_i32 = arith.constant 0 : i32
    %c0_i32_0 = arith.constant 0 : i32
    %c0_i32_1 = arith.constant 0 : i32
    return %c0_i32, %c0_i32_0 : i32, i32
  }
  func.func @transform_4(%arg0: i32) -> (i32, i32) {
    %c0_i32 = arith.constant 0 : i32
    %c0_i32_0 = arith.constant 0 : i32
    %c0_i32_1 = arith.constant 0 : i32
    return %c0_i32, %c0_i32_0 : i32, i32
  }
  func.func @transform_5(%arg0: i32) -> (i32, i32) {
    %c0_i32 = arith.constant 0 : i32
    %c0_i32_0 = arith.constant 0 : i32
    return %arg0, %c0_i32 : i32, i32
  }
}

module attributes {stable_mosaic.version = 11 : i64} {
  func.func @_attn_reduce_kernel(%arg0: i32, %arg1: memref<64x8x32xbf16, #tpu.memory_space<vmem>>, %arg2: memref<64x8x32xbf16, #tpu.memory_space<vmem>>, %arg3: memref<64x8x32xbf16, #tpu.memory_space<vmem>>, %arg4: memref<64x32xf32, #tpu.memory_space<vmem>>) attributes {dimension_semantics = [#tpu.dimension_semantics<parallel>], iteration_bounds = array<i64: 1>, scalar_prefetch = 0 : i64, scratch_operands = 0 : i64, tpu.core_type = #tpu.core_type<tc>, window_params = [{transform_indices = @transform_0, window_bounds = array<i64: 64, 8, 32>}, {transform_indices = @transform_1, window_bounds = array<i64: 64, 8, 32>}, {transform_indices = @transform_2, window_bounds = array<i64: 64, 8, 32>}, {transform_indices = @transform_3, window_bounds = array<i64: 64, 32>}]} {
    %c0 = arith.constant 0 : index
    %c0_0 = arith.constant 0 : index
    %c0_1 = arith.constant 0 : index
    %0 = vector.load %arg1[%c0, %c0_0, %c0_1] : memref<64x8x32xbf16, #tpu.memory_space<vmem>>, vector<64x8x32xbf16>
    %1 = arith.extf %0 : vector<64x8x32xbf16> to vector<64x8x32xf32>
    %c0_2 = arith.constant 0 : index
    %c0_3 = arith.constant 0 : index
    %c0_4 = arith.constant 0 : index
    %2 = vector.load %arg2[%c0_2, %c0_3, %c0_4] : memref<64x8x32xbf16, #tpu.memory_space<vmem>>, vector<64x8x32xbf16>
    %3 = arith.extf %2 : vector<64x8x32xbf16> to vector<64x8x32xf32>
    %c0_5 = arith.constant 0 : index
    %c0_6 = arith.constant 0 : index
    %c0_7 = arith.constant 0 : index
    %4 = vector.load %arg3[%c0_5, %c0_6, %c0_7] : memref<64x8x32xbf16, #tpu.memory_space<vmem>>, vector<64x8x32xbf16>
    %5 = arith.extf %4 : vector<64x8x32xbf16> to vector<64x8x32xf32>
    %6 = arith.addf %3, %5 : vector<64x8x32xf32>
    %cst = arith.constant dense<0xFF800000> : vector<64x32xf32>
    %7 = vector.multi_reduction <maximumf>, %1, %cst [1] : vector<64x8x32xf32> to vector<64x32xf32>
    %8 = vector.shape_cast %7 : vector<64x32xf32> to vector<64x1x32xf32>
    %9 = vector.broadcast %8 : vector<64x1x32xf32> to vector<64x8x32xf32>
    %10 = arith.subf %1, %9 : vector<64x8x32xf32>
    %11 = math.exp %10 : vector<64x8x32xf32>
    %cst_8 = arith.constant dense<0.000000e+00> : vector<64x32xf32>
    %12 = vector.multi_reduction <add>, %11, %cst_8 [1] : vector<64x8x32xf32> to vector<64x32xf32>
    %13 = arith.mulf %11, %6 : vector<64x8x32xf32>
    %cst_9 = arith.constant dense<0.000000e+00> : vector<64x32xf32>
    %14 = vector.multi_reduction <add>, %13, %cst_9 [1] : vector<64x8x32xf32> to vector<64x32xf32>
    %15 = tpu.reciprocal %12 {approx = true} : vector<64x32xf32> -> vector<64x32xf32>
    %16 = arith.mulf %14, %15 : vector<64x32xf32>
    %c0_10 = arith.constant 0 : index
    %c0_11 = arith.constant 0 : index
    %17 = vector.load %arg4[%c0_10, %c0_11] : memref<64x32xf32, #tpu.memory_space<vmem>>, vector<64x32xf32>
    tpu.vector_store %arg4[%c0_10, %c0_11], %16 {strides = array<i32>} : memref<64x32xf32, #tpu.memory_space<vmem>>, vector<64x32xf32>,
    return
  }
  func.func @transform_0(%arg0: i32) -> (i32, i32, i32) {
    %c0_i32 = arith.constant 0 : i32
    %c0_i32_0 = arith.constant 0 : i32
    %c0_i32_1 = arith.constant 0 : i32
    return %arg0, %c0_i32, %c0_i32_0 : i32, i32, i32
  }
  func.func @transform_1(%arg0: i32) -> (i32, i32, i32) {
    %c0_i32 = arith.constant 0 : i32
    %c0_i32_0 = arith.constant 0 : i32
    %c0_i32_1 = arith.constant 0 : i32
    return %arg0, %c0_i32, %c0_i32_0 : i32, i32, i32
  }
  func.func @transform_2(%arg0: i32) -> (i32, i32, i32) {
    %c0_i32 = arith.constant 0 : i32
    %c0_i32_0 = arith.constant 0 : i32
    %c0_i32_1 = arith.constant 0 : i32
    return %arg0, %c0_i32, %c0_i32_0 : i32, i32, i32
  }
  func.func @transform_3(%arg0: i32) -> (i32, i32) {
    %c0_i32 = arith.constant 0 : i32
    %c0_i32_0 = arith.constant 0 : i32
    return %arg0, %c0_i32 : i32, i32
  }
}

</mosaic_0001>

<llo_original>
// kernel: neg.1
$region0: #{neg.1}
  #allocation0 [shape = 's32[1]{0}', space=sflag, size = 0x4, scoped, tag = 'scoped memory for neg.1']
  %s0 = inlined_call_operand.vmem [shape: f32[2,32,32], index: 0, kind: input, shape index: {}]
  %s1 = inlined_call_operand.vmem [shape: f32[2,32,32], index: 1, kind: output, shape index: {}]
  %v2 = vld [vmem:[%s0] sm:$0xff]
  %3 = xla_tuple %v2
  %4 = xla_tuple %3
  %v5 = vxor.u32 %v2, 2147483648
  %6 = xla_tuple %v5
  %7 = vst [vmem:[%s1] sm:$0xff] %v5
  %s8 = scalar_lea.vmem %s0, 32
  %v9 = vld [vmem:[%s8] sm:$0xff]
  %10 = xla_tuple %v9
  %11 = xla_tuple %10
  %v12 = vxor.u32 %v9, 2147483648
  %13 = xla_tuple %v12
  %s14 = scalar_lea.vmem %s1, 32
  %15 = vst [vmem:[%s14] sm:$0xff] %v12
  %s16 = scalar_lea.vmem %s0, 8
  %v17 = vld [vmem:[%s16] sm:$0xff]
  %18 = xla_tuple %v17
  %19 = xla_tuple %18
  %v20 = vxor.u32 %v17, 2147483648
  %21 = xla_tuple %v20
  %s22 = scalar_lea.vmem %s1, 8
  %23 = vst [vmem:[%s22] sm:$0xff] %v20
  %s24 = scalar_lea.vmem %s0, 40
  %v25 = vld [vmem:[%s24] sm:$0xff]
  %26 = xla_tuple %v25
  %27 = xla_tuple %26
  %v28 = vxor.u32 %v25, 2147483648
  %29 = xla_tuple %v28
  %s30 = scalar_lea.vmem %s1, 40
  %31 = vst [vmem:[%s30] sm:$0xff] %v28
  %s32 = scalar_lea.vmem %s0, 16
  %v33 = vld [vmem:[%s32] sm:$0xff]
  %34 = xla_tuple %v33
  %35 = xla_tuple %34
  %v36 = vxor.u32 %v33, 2147483648
  %37 = xla_tuple %v36
  %s38 = scalar_lea.vmem %s1, 16
  %39 = vst [vmem:[%s38] sm:$0xff] %v36
  %s40 = scalar_lea.vmem %s0, 48
  %v41 = vld [vmem:[%s40] sm:$0xff]
  %42 = xla_tuple %v41
  %43 = xla_tuple %42
  %v44 = vxor.u32 %v41, 2147483648
  %45 = xla_tuple %v44
  %s46 = scalar_lea.vmem %s1, 48
  %47 = vst [vmem:[%s46] sm:$0xff] %v44
  %s48 = scalar_lea.vmem %s0, 24
  %v49 = vld [vmem:[%s48] sm:$0xff]
  %50 = xla_tuple %v49
  %51 = xla_tuple %50
  %v52 = vxor.u32 %v49, 2147483648
  %53 = xla_tuple %v52
  %s54 = scalar_lea.vmem %s1, 24
  %55 = vst [vmem:[%s54] sm:$0xff] %v52
  %s56 = scalar_lea.vmem %s0, 56
  %v57 = vld [vmem:[%s56] sm:$0xff]
  %58 = xla_tuple %v57
  %59 = xla_tuple %58
  %v60 = vxor.u32 %v57, 2147483648
  %61 = xla_tuple %v60
  %s62 = scalar_lea.vmem %s1, 56
  %63 = vst [vmem:[%s62] sm:$0xff] %v60

// kernel: point_transformer_layer.7
$region0: #{point_transformer_layer.7}
  #allocation0 [shape = 'u32[]', space=smem, size = 0x4, offset = 0x4, fixed_abs, tag = 'smem constant byte address 0x4 - core index']
  #allocation1 [shape = 'u32[72,128]{1,0:T(1,128)}', space=vmem, size = 0x9000, scoped, tag = 'internal scratch']
  %s0 = inlined_call_operand.vmem [shape: f32[64,8], index: 0, kind: input, shape index: {}]
  %s1 = inlined_call_operand.vmem [shape: bf16[8,64], index: 1, kind: input, shape index: {}]
  %s2 = inlined_call_operand.vmem [shape: f32[1,64], index: 2, kind: input, shape index: {}]
  %s3 = inlined_call_operand.vmem [shape: f32[64,64], index: 3, kind: output, shape index: {}]
  %s4 = sld [smem:[#allocation0]]
  $region22: #{point_transformer_layer.7} parent=0
    _
  %s6 = ssub.s32 1, %s4
  %s7 = scalar_select 0, %s6, %s4
  // Predicated region
  $region2: #{point_transformer_layer.7} parent=0 // pred_check
    _
  $region3: #{point_transformer_layer.7} parent=0 // pred_check_branch
    %9 = sbr.rel (0) target = $region5
  $region4: #{point_transformer_layer.7} parent=0 // pred_region
    _
  $region5: #{point_transformer_layer.7} parent=0 // pred_fallthru
    _
  // Predicated region
  $region6: #{point_transformer_layer.7} parent=0 // pred_check
    _
  $region7: #{point_transformer_layer.7} parent=0 // pred_check_branch
    %11 = sbr.rel (0) target = $region9
  $region8: #{point_transformer_layer.7} parent=0 // pred_region
    _
  $region9: #{point_transformer_layer.7} parent=0 // pred_fallthru
    _
  // Predicated region
  $region10: #{point_transformer_layer.7} parent=0 // pred_check
    _
  $region11: #{point_transformer_layer.7} parent=0 // pred_check_branch
    %13 = sbr.rel (0) target = $region13
  $region12: #{point_transformer_layer.7} parent=0 // pred_region
    _
  $region13: #{point_transformer_layer.7} parent=0 // pred_fallthru
    _
  %v15 = vld [vmem:[%s0] sm:$0xff]
  %v16 = vld [vmem:[%s0 + $0x8] sm:$0xff]
  %v17 = vld [vmem:[%s0 + $0x10] sm:$0xff]
  %v18 = vld [vmem:[%s0 + $0x18] sm:$0xff]
  %v19 = vld [vmem:[%s0 + $0x20] sm:$0xff]
  %v20 = vld [vmem:[%s0 + $0x28] sm:$0xff]
  %v21 = vld [vmem:[%s0 + $0x30] sm:$0xff]
  %v22 = vld [vmem:[%s0 + $0x38] sm:$0xff]
  %v23 = vpack.c.bf16 %v16, %v15
  %v24 = vpack.c.bf16 %v18, %v17
  %v25 = vpack.c.bf16 %v20, %v19
  %v26 = vpack.c.bf16 %v22, %v21
  %v27 = vld [vmem:[%s1] sm:$0xf]
  %v28 = vld [vmem:[%s2] sm:$0x1]
  %v30 = vperm.slane %v28, 0
  %vm32 = vcmask 64512
  %v34 = vsel %vm32, %v23, 0
  %v37 = vsel %vm32, %v24, 0
  %v40 = vsel %vm32, %v25, 0
  %v43 = vsel %vm32, %v26, 0
  %vm45 = vcmask 1043456
  %v47 = vsel %vm45, %v27, 0
  %49 = vmatpush.bf16.msra.mxu0 0
  %50 = vmatpush.bf16.msra.mxu0 0
  %51 = vmatpush.bf16.msra.mxu0 0
  %52 = vmatpush.bf16.msra.mxu0 0
  %53 = vmatpush.bf16.msra.mxu0 0
  %54 = vmatpush.bf16.msra.mxu0 0
  %55 = vmatpush.bf16.msra.mxu0 0
  %56 = vmatpush.bf16.msra.mxu0 %v47
  %57 = vmatmul.bf16.gmra.mxu0 %v34
  %v58 = vpop.f32.mrf.mxu0
  %v59 = vadd.f32 %v30, %v58
  %v60 = vpop.f32.mrf.mxu0
  %v61 = vadd.f32 %v30, %v60
  %62 = vmatmul.bf16.gmra.mxu0 %v37
  %v63 = vpop.f32.mrf.mxu0
  %v64 = vadd.f32 %v30, %v63
  %v65 = vpop.f32.mrf.mxu0
  %v66 = vadd.f32 %v30, %v65
  %67 = vmatmul.bf16.gmra.mxu0 %v40
  %v68 = vpop.f32.mrf.mxu0
  %v69 = vadd.f32 %v30, %v68
  %v70 = vpop.f32.mrf.mxu0
  %v71 = vadd.f32 %v30, %v70
  %72 = vmatmul.bf16.gmra.mxu0 %v43
  %v73 = vpop.f32.mrf.mxu0
  %v74 = vadd.f32 %v30, %v73
  %v75 = vpop.f32.mrf.mxu0
  %v76 = vadd.f32 %v30, %v75
  %77 = vdwg.mxu0
  %vm78 = vcmask 523264
  %79 = vst.msk [vmem:[%s3] sm:$0xff] %vm78, %v59
  %80 = vst.msk [vmem:[%s3 + $0x8] sm:$0xff] %vm78, %v61
  %81 = vst.msk [vmem:[%s3 + $0x10] sm:$0xff] %vm78, %v64
  %82 = vst.msk [vmem:[%s3 + $0x18] sm:$0xff] %vm78, %v66
  %83 = vst.msk [vmem:[%s3 + $0x20] sm:$0xff] %vm78, %v69
  %84 = vst.msk [vmem:[%s3 + $0x28] sm:$0xff] %vm78, %v71
  %85 = vst.msk [vmem:[%s3 + $0x30] sm:$0xff] %vm78, %v74
  %86 = vst.msk [vmem:[%s3 + $0x38] sm:$0xff] %vm78, %v76
  // Predicated region
  $region14: #{point_transformer_layer.7} parent=0 // pred_check
    _
  $region15: #{point_transformer_layer.7} parent=0 // pred_check_branch
    %88 = sbr.rel (0) target = $region17
  $region16: #{point_transformer_layer.7} parent=0 // pred_region
    _
  $region17: #{point_transformer_layer.7} parent=0 // pred_fallthru
    _
  // Predicated region
  $region18: #{point_transformer_layer.7} parent=0 // pred_check
    _
  $region19: #{point_transformer_layer.7} parent=0 // pred_check_branch
    %90 = sbr.rel (0) target = $region21
  $region20: #{point_transformer_layer.7} parent=0 // pred_region
    _
  $region21: #{point_transformer_layer.7} parent=0 // pred_fallthru
    _

// kernel: point_transformer_layer.6
$region0: #{point_transformer_layer.6}
  #allocation0 [shape = 'u32[]', space=smem, size = 0x4, offset = 0x4, fixed_abs, tag = 'smem constant byte address 0x4 - core index']
  #allocation1 [shape = 'u32[72,128]{1,0:T(1,128)}', space=vmem, size = 0x9000, scoped, tag = 'internal scratch']
  %s0 = inlined_call_operand.vmem [shape: f32[64,32], index: 0, kind: input, shape index: {}]
  %s1 = inlined_call_operand.vmem [shape: bf16[32,96], index: 1, kind: input, shape index: {}]
  %s2 = inlined_call_operand.vmem [shape: f32[1,96], index: 2, kind: input, shape index: {}]
  %s3 = inlined_call_operand.vmem [shape: f32[64,96], index: 3, kind: output, shape index: {}]
  %s4 = sld [smem:[#allocation0]]
  $region22: #{point_transformer_layer.6} parent=0
    _
  %s6 = ssub.s32 1, %s4
  %s7 = scalar_select 0, %s6, %s4
  // Predicated region
  $region2: #{point_transformer_layer.6} parent=0 // pred_check
    _
  $region3: #{point_transformer_layer.6} parent=0 // pred_check_branch
    %9 = sbr.rel (0) target = $region5
  $region4: #{point_transformer_layer.6} parent=0 // pred_region
    _
  $region5: #{point_transformer_layer.6} parent=0 // pred_fallthru
    _
  // Predicated region
  $region6: #{point_transformer_layer.6} parent=0 // pred_check
    _
  $region7: #{point_transformer_layer.6} parent=0 // pred_check_branch
    %11 = sbr.rel (0) target = $region9
  $region8: #{point_transformer_layer.6} parent=0 // pred_region
    _
  $region9: #{point_transformer_layer.6} parent=0 // pred_fallthru
    _
  // Predicated region
  $region10: #{point_transformer_layer.6} parent=0 // pred_check
    _
  $region11: #{point_transformer_layer.6} parent=0 // pred_check_branch
    %13 = sbr.rel (0) target = $region13
  $region12: #{point_transformer_layer.6} parent=0 // pred_region
    _
  $region13: #{point_transformer_layer.6} parent=0 // pred_fallthru
    _
  %v15 = vld [vmem:[%s0] sm:$0xff]
  %v16 = vld [vmem:[%s0 + $0x8] sm:$0xff]
  %v17 = vld [vmem:[%s0 + $0x10] sm:$0xff]
  %v18 = vld [vmem:[%s0 + $0x18] sm:$0xff]
  %v19 = vld [vmem:[%s0 + $0x20] sm:$0xff]
  %v20 = vld [vmem:[%s0 + $0x28] sm:$0xff]
  %v21 = vld [vmem:[%s0 + $0x30] sm:$0xff]
  %v22 = vld [vmem:[%s0 + $0x38] sm:$0xff]
  %v23 = vpack.c.bf16 %v16, %v15
  %v24 = vpack.c.bf16 %v18, %v17
  %v25 = vpack.c.bf16 %v20, %v19
  %v26 = vpack.c.bf16 %v22, %v21
  %v27 = vld [vmem:[%s1] sm:$0xf]
  %v28 = vld [vmem:[%s1 + $0x4] sm:$0xf]
  %v29 = vld [vmem:[%s1 + $0x8] sm:$0xf]
  %v30 = vld [vmem:[%s1 + $0xc] sm:$0xf]
  %v31 = vld [vmem:[%s2] sm:$0x1]
  %v33 = vperm.slane %v31, 0
  %v39 = vunpack.c.l.b16 %v27
  %v40 = vunpack.c.l.b16 %v28
  %v41 = vunpack.c.l.b16 %v29
  %v42 = vunpack.c.l.b16 %v30
  %v43 = vpack.c.b16 %v40, %v39
  %v44 = vpack.c.b16 %v42, %v41
  %vm47 = vcmask 261120
  %v49 = vsel %vm47, %v23, 0
  %v52 = vsel %vm47, %v24, 0
  %v55 = vsel %vm47, %v25, 0
  %v58 = vsel %vm47, %v26, 0
  %60 = vmatpush.bf16.msra.mxu0 0
  %61 = vmatpush.bf16.msra.mxu0 0
  %62 = vmatpush.bf16.msra.mxu0 0
  %63 = vmatpush.bf16.msra.mxu0 0
  %64 = vmatpush.bf16.msra.mxu0 0
  %65 = vmatpush.bf16.msra.mxu0 0
  %66 = vmatpush.bf16.msra.mxu0 %v44
  %67 = vmatpush.bf16.msra.mxu0 %v43
  %68 = vmatmul.bf16.gmra.mxu0 %v49
  %v69 = vpop.f32.mrf.mxu0
  %v70 = vadd.f32 %v33, %v69
  %v71 = vpop.f32.mrf.mxu0
  %v72 = vadd.f32 %v33, %v71
  %73 = vmatmul.bf16.gmra.mxu0 %v52
  %v74 = vpop.f32.mrf.mxu0
  %v75 = vadd.f32 %v33, %v74
  %v76 = vpop.f32.mrf.mxu0
  %v77 = vadd.f32 %v33, %v76
  %78 = vmatmul.bf16.gmra.mxu0 %v55
  %v79 = vpop.f32.mrf.mxu0
  %v80 = vadd.f32 %v33, %v79
  %v81 = vpop.f32.mrf.mxu0
  %v82 = vadd.f32 %v33, %v81
  %83 = vmatmul.bf16.gmra.mxu0 %v58
  %v84 = vpop.f32.mrf.mxu0
  %v85 = vadd.f32 %v33, %v84
  %v86 = vpop.f32.mrf.mxu0
  %v87 = vadd.f32 %v33, %v86
  %88 = vdwg.mxu0
  %vm89 = vcmask 785408
  %90 = vst.msk [vmem:[%s3] sm:$0xff] %vm89, %v70
  %91 = vst.msk [vmem:[%s3 + $0x8] sm:$0xff] %vm89, %v72
  %92 = vst.msk [vmem:[%s3 + $0x10] sm:$0xff] %vm89, %v75
  %93 = vst.msk [vmem:[%s3 + $0x18] sm:$0xff] %vm89, %v77
  %94 = vst.msk [vmem:[%s3 + $0x20] sm:$0xff] %vm89, %v80
  %95 = vst.msk [vmem:[%s3 + $0x28] sm:$0xff] %vm89, %v82
  %96 = vst.msk [vmem:[%s3 + $0x30] sm:$0xff] %vm89, %v85
  %97 = vst.msk [vmem:[%s3 + $0x38] sm:$0xff] %vm89, %v87
  // Predicated region
  $region14: #{point_transformer_layer.6} parent=0 // pred_check
    _
  $region15: #{point_transformer_layer.6} parent=0 // pred_check_branch
    %99 = sbr.rel (0) target = $region17
  $region16: #{point_transformer_layer.6} parent=0 // pred_region
    _
  $region17: #{point_transformer_layer.6} parent=0 // pred_fallthru
    _
  // Predicated region
  $region18: #{point_transformer_layer.6} parent=0 // pred_check
    _
  $region19: #{point_transformer_layer.6} parent=0 // pred_check_branch
    %101 = sbr.rel (0) target = $region21
  $region20: #{point_transformer_layer.6} parent=0 // pred_region
    _
  $region21: #{point_transformer_layer.6} parent=0 // pred_fallthru
    _

// kernel: point_transformer_layer.8
$region0: #{point_transformer_layer.8}
  #allocation0 [shape = 'u32[]', space=smem, size = 0x4, offset = 0x4, fixed_abs, tag = 'smem constant byte address 0x4 - core index']
  #allocation1 [shape = 'u32[72,128]{1,0:T(1,128)}', space=vmem, size = 0x9000, scoped, tag = 'internal scratch']
  %s0 = inlined_call_operand.vmem [shape: bf16[512,64], index: 0, kind: input, shape index: {}]
  %s1 = inlined_call_operand.vmem [shape: bf16[64,32], index: 1, kind: input, shape index: {}]
  %s2 = inlined_call_operand.vmem [shape: f32[1,64], index: 2, kind: input, shape index: {}]
  %s3 = inlined_call_operand.vmem [shape: f32[1,64], index: 3, kind: input, shape index: {}]
  %s4 = inlined_call_operand.vmem [shape: f32[1,32], index: 4, kind: input, shape index: {}]
  %s5 = inlined_call_operand.vmem [shape: bf16[512,32], index: 5, kind: output, shape index: {}]
  %s6 = sld [smem:[#allocation0]]
  $region30: #{point_transformer_layer.8} parent=0
    _
  %s8 = ssub.s32 1, %s6
  %s9 = scalar_select 0, %s8, %s6
  // Predicated region
  $region2: #{point_transformer_layer.8} parent=0 // pred_check
    _
  $region3: #{point_transformer_layer.8} parent=0 // pred_check_branch
    %11 = sbr.rel (0) target = $region5
  $region4: #{point_transformer_layer.8} parent=0 // pred_region
    _
  $region5: #{point_transformer_layer.8} parent=0 // pred_fallthru
    _
  // Predicated region
  $region6: #{point_transformer_layer.8} parent=0 // pred_check
    _
  $region7: #{point_transformer_layer.8} parent=0 // pred_check_branch
    %13 = sbr.rel (0) target = $region9
  $region8: #{point_transformer_layer.8} parent=0 // pred_region
    _
  $region9: #{point_transformer_layer.8} parent=0 // pred_fallthru
    _
  // Predicated region
  $region10: #{point_transformer_layer.8} parent=0 // pred_check
    _
  $region11: #{point_transformer_layer.8} parent=0 // pred_check_branch
    %15 = sbr.rel (0) target = $region13
  $region12: #{point_transformer_layer.8} parent=0 // pred_region
    _
  $region13: #{point_transformer_layer.8} parent=0 // pred_fallthru
    _
  // Predicated region
  $region14: #{point_transformer_layer.8} parent=0 // pred_check
    _
  $region15: #{point_transformer_layer.8} parent=0 // pred_check_branch
    %17 = sbr.rel (0) target = $region17
  $region16: #{point_transformer_layer.8} parent=0 // pred_region
    _
  $region17: #{point_transformer_layer.8} parent=0 // pred_fallthru
    _
  // Predicated region
  $region18: #{point_transformer_layer.8} parent=0 // pred_check
    _
  $region19: #{point_transformer_layer.8} parent=0 // pred_check_branch
    %19 = sbr.rel (0) target = $region21
  $region20: #{point_transformer_layer.8} parent=0 // pred_region
    _
  $region21: #{point_transformer_layer.8} parent=0 // pred_fallthru
    _
  %v21 = vld [vmem:[%s0] sm:$0xf]
  %v22 = vld [vmem:[%s0 + $0x4] sm:$0xf]
  %v23 = vld [vmem:[%s0 + $0x8] sm:$0xf]
  %v24 = vld [vmem:[%s0 + $0xc] sm:$0xf]
  %v25 = vld [vmem:[%s0 + $0x10] sm:$0xf]
  %v26 = vld [vmem:[%s0 + $0x14] sm:$0xf]
  %v27 = vld [vmem:[%s0 + $0x18] sm:$0xf]
  %v28 = vld [vmem:[%s0 + $0x1c] sm:$0xf]
  %v29 = vld [vmem:[%s0 + $0x20] sm:$0xf]
  %v30 = vld [vmem:[%s0 + $0x24] sm:$0xf]
  %v31 = vld [vmem:[%s0 + $0x28] sm:$0xf]
  %v32 = vld [vmem:[%s0 + $0x2c] sm:$0xf]
  %v33 = vld [vmem:[%s0 + $0x30] sm:$0xf]
  %v34 = vld [vmem:[%s0 + $0x34] sm:$0xf]
  %v35 = vld [vmem:[%s0 + $0x38] sm:$0xf]
  %v36 = vld [vmem:[%s0 + $0x3c] sm:$0xf]
  %v37 = vld [vmem:[%s0 + $0x40] sm:$0xf]
  %v38 = vld [vmem:[%s0 + $0x44] sm:$0xf]
  %v39 = vld [vmem:[%s0 + $0x48] sm:$0xf]
  %v40 = vld [vmem:[%s0 + $0x4c] sm:$0xf]
  %v41 = vld [vmem:[%s0 + $0x50] sm:$0xf]
  %v42 = vld [vmem:[%s0 + $0x54] sm:$0xf]
  %v43 = vld [vmem:[%s0 + $0x58] sm:$0xf]
  %v44 = vld [vmem:[%s0 + $0x5c] sm:$0xf]
  %v45 = vld [vmem:[%s0 + $0x60] sm:$0xf]
  %v46 = vld [vmem:[%s0 + $0x64] sm:$0xf]
  %v47 = vld [vmem:[%s0 + $0x68] sm:$0xf]
  %v48 = vld [vmem:[%s0 + $0x6c] sm:$0xf]
  %v49 = vld [vmem:[%s0 + $0x70] sm:$0xf]
  %v50 = vld [vmem:[%s0 + $0x74] sm:$0xf]
  %v51 = vld [vmem:[%s0 + $0x78] sm:$0xf]
  %v52 = vld [vmem:[%s0 + $0x7c] sm:$0xf]
  %v53 = vld [vmem:[%s0 + $0x80] sm:$0xf]
  %v54 = vld [vmem:[%s0 + $0x84] sm:$0xf]
  %v55 = vld [vmem:[%s0 + $0x88] sm:$0xf]
  %v56 = vld [vmem:[%s0 + $0x8c] sm:$0xf]
  %v57 = vld [vmem:[%s0 + $0x90] sm:$0xf]
  %v58 = vld [vmem:[%s0 + $0x94] sm:$0xf]
  %v59 = vld [vmem:[%s0 + $0x98] sm:$0xf]
  %v60 = vld [vmem:[%s0 + $0x9c] sm:$0xf]
  %v61 = vld [vmem:[%s0 + $0xa0] sm:$0xf]
  %v62 = vld [vmem:[%s0 + $0xa4] sm:$0xf]
  %v63 = vld [vmem:[%s0 + $0xa8] sm:$0xf]
  %v64 = vld [vmem:[%s0 + $0xac] sm:$0xf]
  %v65 = vld [vmem:[%s0 + $0xb0] sm:$0xf]
  %v66 = vld [vmem:[%s0 + $0xb4] sm:$0xf]
  %v67 = vld [vmem:[%s0 + $0xb8] sm:$0xf]
  %v68 = vld [vmem:[%s0 + $0xbc] sm:$0xf]
  %v69 = vld [vmem:[%s0 + $0xc0] sm:$0xf]
  %v70 = vld [vmem:[%s0 + $0xc4] sm:$0xf]
  %v71 = vld [vmem:[%s0 + $0xc8] sm:$0xf]
  %v72 = vld [vmem:[%s0 + $0xcc] sm:$0xf]
  %v73 = vld [vmem:[%s0 + $0xd0] sm:$0xf]
  %v74 = vld [vmem:[%s0 + $0xd4] sm:$0xf]
  %v75 = vld [vmem:[%s0 + $0xd8] sm:$0xf]
  %v76 = vld [vmem:[%s0 + $0xdc] sm:$0xf]
  %v77 = vld [vmem:[%s0 + $0xe0] sm:$0xf]
  %v78 = vld [vmem:[%s0 + $0xe4] sm:$0xf]
  %v79 = vld [vmem:[%s0 + $0xe8] sm:$0xf]
  %v80 = vld [vmem:[%s0 + $0xec] sm:$0xf]
  %v81 = vld [vmem:[%s0 + $0xf0] sm:$0xf]
  %v82 = vld [vmem:[%s0 + $0xf4] sm:$0xf]
  %v83 = vld [vmem:[%s0 + $0xf8] sm:$0xf]
  %v84 = vld [vmem:[%s0 + $0xfc] sm:$0xf]
  %v85 = vunpack.c.l.bf16 %v21
  %v86 = vunpack.c.l.bf16 %v22
  %v87 = vunpack.c.l.bf16 %v23
  %v88 = vunpack.c.l.bf16 %v24
  %v89 = vunpack.c.l.bf16 %v25
  %v90 = vunpack.c.l.bf16 %v26
  %v91 = vunpack.c.l.bf16 %v27
  %v92 = vunpack.c.l.bf16 %v28
  %v93 = vunpack.c.l.bf16 %v29
  %v94 = vunpack.c.l.bf16 %v30
  %v95 = vunpack.c.l.bf16 %v31
  %v96 = vunpack.c.l.bf16 %v32
  %v97 = vunpack.c.l.bf16 %v33
  %v98 = vunpack.c.l.bf16 %v34
  %v99 = vunpack.c.l.bf16 %v35
  %v100 = vunpack.c.l.bf16 %v36
  %v101 = vunpack.c.l.bf16 %v37
  %v102 = vunpack.c.l.bf16 %v38
  %v103 = vunpack.c.l.bf16 %v39
  %v104 = vunpack.c.l.bf16 %v40
  %v105 = vunpack.c.l.bf16 %v41
  %v106 = vunpack.c.l.bf16 %v42
  %v107 = vunpack.c.l.bf16 %v43
  %v108 = vunpack.c.l.bf16 %v44
  %v109 = vunpack.c.l.bf16 %v45
  %v110 = vunpack.c.l.bf16 %v46
  %v111 = vunpack.c.l.bf16 %v47
  %v112 = vunpack.c.l.bf16 %v48
  %v113 = vunpack.c.l.bf16 %v49
  %v114 = vunpack.c.l.bf16 %v50
  %v115 = vunpack.c.l.bf16 %v51
  %v116 = vunpack.c.l.bf16 %v52
  %v117 = vunpack.c.l.bf16 %v53
  %v118 = vunpack.c.l.bf16 %v54
  %v119 = vunpack.c.l.bf16 %v55
  %v120 = vunpack.c.l.bf16 %v56
  %v121 = vunpack.c.l.bf16 %v57
  %v122 = vunpack.c.l.bf16 %v58
  %v123 = vunpack.c.l.bf16 %v59
  %v124 = vunpack.c.l.bf16 %v60
  %v125 = vunpack.c.l.bf16 %v61
  %v126 = vunpack.c.l.bf16 %v62
  %v127 = vunpack.c.l.bf16 %v63
  %v128 = vunpack.c.l.bf16 %v64
  %v129 = vunpack.c.l.bf16 %v65
  %v130 = vunpack.c.l.bf16 %v66
  %v131 = vunpack.c.l.bf16 %v67
  %v132 = vunpack.c.l.bf16 %v68
  %v133 = vunpack.c.l.bf16 %v69
  %v134 = vunpack.c.l.bf16 %v70
  %v135 = vunpack.c.l.bf16 %v71
  %v136 = vunpack.c.l.bf16 %v72
  %v137 = vunpack.c.l.bf16 %v73
  %v138 = vunpack.c.l.bf16 %v74
  %v139 = vunpack.c.l.bf16 %v75
  %v140 = vunpack.c.l.bf16 %v76
  %v141 = vunpack.c.l.bf16 %v77
  %v142 = vunpack.c.l.bf16 %v78
  %v143 = vunpack.c.l.bf16 %v79
  %v144 = vunpack.c.l.bf16 %v80
  %v145 = vunpack.c.l.bf16 %v81
  %v146 = vunpack.c.l.bf16 %v82
  %v147 = vunpack.c.l.bf16 %v83
  %v148 = vunpack.c.l.bf16 %v84
  %v149 = vld [vmem:[%s2] sm:$0x1]
  %v151 = vperm.slane %v149, 0
  %v153 = vmul.f32 %v85, %v151
  %v154 = vmul.f32 %v86, %v151
  %v155 = vmul.f32 %v87, %v151
  %v156 = vmul.f32 %v88, %v151
  %v157 = vmul.f32 %v89, %v151
  %v158 = vmul.f32 %v90, %v151
  %v159 = vmul.f32 %v91, %v151
  %v160 = vmul.f32 %v92, %v151
  %v161 = vmul.f32 %v93, %v151
  %v162 = vmul.f32 %v94, %v151
  %v163 = vmul.f32 %v95, %v151
  %v164 = vmul.f32 %v96, %v151
  %v165 = vmul.f32 %v97, %v151
  %v166 = vmul.f32 %v98, %v151
  %v167 = vmul.f32 %v99, %v151
  %v168 = vmul.f32 %v100, %v151
  %v169 = vmul.f32 %v101, %v151
  %v170 = vmul.f32 %v102, %v151
  %v171 = vmul.f32 %v103, %v151
  %v172 = vmul.f32 %v104, %v151
  %v173 = vmul.f32 %v105, %v151
  %v174 = vmul.f32 %v106, %v151
  %v175 = vmul.f32 %v107, %v151
  %v176 = vmul.f32 %v108, %v151
  %v177 = vmul.f32 %v109, %v151
  %v178 = vmul.f32 %v110, %v151
  %v179 = vmul.f32 %v111, %v151
  %v180 = vmul.f32 %v112, %v151
  %v181 = vmul.f32 %v113, %v151
  %v182 = vmul.f32 %v114, %v151
  %v183 = vmul.f32 %v115, %v151
  %v184 = vmul.f32 %v116, %v151
  %v185 = vmul.f32 %v117, %v151
  %v186 = vmul.f32 %v118, %v151
  %v187 = vmul.f32 %v119, %v151
  %v188 = vmul.f32 %v120, %v151
  %v189 = vmul.f32 %v121, %v151
  %v190 = vmul.f32 %v122, %v151
  %v191 = vmul.f32 %v123, %v151
  %v192 = vmul.f32 %v124, %v151
  %v193 = vmul.f32 %v125, %v151
  %v194 = vmul.f32 %v126, %v151
  %v195 = vmul.f32 %v127, %v151
  %v196 = vmul.f32 %v128, %v151
  %v197 = vmul.f32 %v129, %v151
  %v198 = vmul.f32 %v130, %v151
  %v199 = vmul.f32 %v131, %v151
  %v200 = vmul.f32 %v132, %v151
  %v201 = vmul.f32 %v133, %v151
  %v202 = vmul.f32 %v134, %v151
  %v203 = vmul.f32 %v135, %v151
  %v204 = vmul.f32 %v136, %v151
  %v205 = vmul.f32 %v137, %v151
  %v206 = vmul.f32 %v138, %v151
  %v207 = vmul.f32 %v139, %v151
  %v208 = vmul.f32 %v140, %v151
  %v209 = vmul.f32 %v141, %v151
  %v210 = vmul.f32 %v142, %v151
  %v211 = vmul.f32 %v143, %v151
  %v212 = vmul.f32 %v144, %v151
  %v213 = vmul.f32 %v145, %v151
  %v214 = vmul.f32 %v146, %v151
  %v215 = vmul.f32 %v147, %v151
  %v216 = vmul.f32 %v148, %v151
  %v217 = vld [vmem:[%s3] sm:$0x1]
  %v219 = vperm.slane %v217, 0
  %v221 = vadd.f32 %v153, %v219
  %v222 = vadd.f32 %v154, %v219
  %v223 = vadd.f32 %v155, %v219
  %v224 = vadd.f32 %v156, %v219
  %v225 = vadd.f32 %v157, %v219
  %v226 = vadd.f32 %v158, %v219
  %v227 = vadd.f32 %v159, %v219
  %v228 = vadd.f32 %v160, %v219
  %v229 = vadd.f32 %v161, %v219
  %v230 = vadd.f32 %v162, %v219
  %v231 = vadd.f32 %v163, %v219
  %v232 = vadd.f32 %v164, %v219
  %v233 = vadd.f32 %v165, %v219
  %v234 = vadd.f32 %v166, %v219
  %v235 = vadd.f32 %v167, %v219
  %v236 = vadd.f32 %v168, %v219
  %v237 = vadd.f32 %v169, %v219
  %v238 = vadd.f32 %v170, %v219
  %v239 = vadd.f32 %v171, %v219
  %v240 = vadd.f32 %v172, %v219
  %v241 = vadd.f32 %v173, %v219
  %v242 = vadd.f32 %v174, %v219
  %v243 = vadd.f32 %v175, %v219
  %v244 = vadd.f32 %v176, %v219
  %v245 = vadd.f32 %v177, %v219
  %v246 = vadd.f32 %v178, %v219
  %v247 = vadd.f32 %v179, %v219
  %v248 = vadd.f32 %v180, %v219
  %v249 = vadd.f32 %v181, %v219
  %v250 = vadd.f32 %v182, %v219
  %v251 = vadd.f32 %v183, %v219
  %v252 = vadd.f32 %v184, %v219
  %v253 = vadd.f32 %v185, %v219
  %v254 = vadd.f32 %v186, %v219
  %v255 = vadd.f32 %v187, %v219
  %v256 = vadd.f32 %v188, %v219
  %v257 = vadd.f32 %v189, %v219
  %v258 = vadd.f32 %v190, %v219
  %v259 = vadd.f32 %v191, %v219
  %v260 = vadd.f32 %v192, %v219
  %v261 = vadd.f32 %v193, %v219
  %v262 = vadd.f32 %v194, %v219
  %v263 = vadd.f32 %v195, %v219
  %v264 = vadd.f32 %v196, %v219
  %v265 = vadd.f32 %v197, %v219
  %v266 = vadd.f32 %v198, %v219
  %v267 = vadd.f32 %v199, %v219
  %v268 = vadd.f32 %v200, %v219
  %v269 = vadd.f32 %v201, %v219
  %v270 = vadd.f32 %v202, %v219
  %v271 = vadd.f32 %v203, %v219
  %v272 = vadd.f32 %v204, %v219
  %v273 = vadd.f32 %v205, %v219
  %v274 = vadd.f32 %v206, %v219
  %v275 = vadd.f32 %v207, %v219
  %v276 = vadd.f32 %v208, %v219
  %v277 = vadd.f32 %v209, %v219
  %v278 = vadd.f32 %v210, %v219
  %v279 = vadd.f32 %v211, %v219
  %v280 = vadd.f32 %v212, %v219
  %v281 = vadd.f32 %v213, %v219
  %v282 = vadd.f32 %v214, %v219
  %v283 = vadd.f32 %v215, %v219
  %v284 = vadd.f32 %v216, %v219
  %v285 = vmax.f32 %v221, 0.0
  %v286 = vmax.f32 %v222, 0.0
  %v287 = vmax.f32 %v223, 0.0
  %v288 = vmax.f32 %v224, 0.0
  %v289 = vmax.f32 %v225, 0.0
  %v290 = vmax.f32 %v226, 0.0
  %v291 = vmax.f32 %v227, 0.0
  %v292 = vmax.f32 %v228, 0.0
  %v293 = vmax.f32 %v229, 0.0
  %v294 = vmax.f32 %v230, 0.0
  %v295 = vmax.f32 %v231, 0.0
  %v296 = vmax.f32 %v232, 0.0
  %v297 = vmax.f32 %v233, 0.0
  %v298 = vmax.f32 %v234, 0.0
  %v299 = vmax.f32 %v235, 0.0
  %v300 = vmax.f32 %v236, 0.0
  %v301 = vmax.f32 %v237, 0.0
  %v302 = vmax.f32 %v238, 0.0
  %v303 = vmax.f32 %v239, 0.0
  %v304 = vmax.f32 %v240, 0.0
  %v305 = vmax.f32 %v241, 0.0
  %v306 = vmax.f32 %v242, 0.0
  %v307 = vmax.f32 %v243, 0.0
  %v308 = vmax.f32 %v244, 0.0
  %v309 = vmax.f32 %v245, 0.0
  %v310 = vmax.f32 %v246, 0.0
  %v311 = vmax.f32 %v247, 0.0
  %v312 = vmax.f32 %v248, 0.0
  %v313 = vmax.f32 %v249, 0.0
  %v314 = vmax.f32 %v250, 0.0
  %v315 = vmax.f32 %v251, 0.0
  %v316 = vmax.f32 %v252, 0.0
  %v317 = vmax.f32 %v253, 0.0
  %v318 = vmax.f32 %v254, 0.0
  %v319 = vmax.f32 %v255, 0.0
  %v320 = vmax.f32 %v256, 0.0
  %v321 = vmax.f32 %v257, 0.0
  %v322 = vmax.f32 %v258, 0.0
  %v323 = vmax.f32 %v259, 0.0
  %v324 = vmax.f32 %v260, 0.0
  %v325 = vmax.f32 %v261, 0.0
  %v326 = vmax.f32 %v262, 0.0
  %v327 = vmax.f32 %v263, 0.0
  %v328 = vmax.f32 %v264, 0.0
  %v329 = vmax.f32 %v265, 0.0
  %v330 = vmax.f32 %v266, 0.0
  %v331 = vmax.f32 %v267, 0.0
  %v332 = vmax.f32 %v268, 0.0
  %v333 = vmax.f32 %v269, 0.0
  %v334 = vmax.f32 %v270, 0.0
  %v335 = vmax.f32 %v271, 0.0
  %v336 = vmax.f32 %v272, 0.0
  %v337 = vmax.f32 %v273, 0.0
  %v338 = vmax.f32 %v274, 0.0
  %v339 = vmax.f32 %v275, 0.0
  %v340 = vmax.f32 %v276, 0.0
  %v341 = vmax.f32 %v277, 0.0
  %v342 = vmax.f32 %v278, 0.0
  %v343 = vmax.f32 %v279, 0.0
  %v344 = vmax.f32 %v280, 0.0
  %v345 = vmax.f32 %v281, 0.0
  %v346 = vmax.f32 %v282, 0.0
  %v347 = vmax.f32 %v283, 0.0
  %v348 = vmax.f32 %v284, 0.0
  %v349 = vpack.c.bf16 %v286, %v285
  %v350 = vpack.c.bf16 %v288, %v287
  %v351 = vpack.c.bf16 %v290, %v289
  %v352 = vpack.c.bf16 %v292, %v291
  %v353 = vpack.c.bf16 %v294, %v293
  %v354 = vpack.c.bf16 %v296, %v295
  %v355 = vpack.c.bf16 %v298, %v297
  %v356 = vpack.c.bf16 %v300, %v299
  %v357 = vpack.c.bf16 %v302, %v301
  %v358 = vpack.c.bf16 %v304, %v303
  %v359 = vpack.c.bf16 %v306, %v305
  %v360 = vpack.c.bf16 %v308, %v307
  %v361 = vpack.c.bf16 %v310, %v309
  %v362 = vpack.c.bf16 %v312, %v311
  %v363 = vpack.c.bf16 %v314, %v313
  %v364 = vpack.c.bf16 %v316, %v315
  %v365 = vpack.c.bf16 %v318, %v317
  %v366 = vpack.c.bf16 %v320, %v319
  %v367 = vpack.c.bf16 %v322, %v321
  %v368 = vpack.c.bf16 %v324, %v323
  %v369 = vpack.c.bf16 %v326, %v325
  %v370 = vpack.c.bf16 %v328, %v327
  %v371 = vpack.c.bf16 %v330, %v329
  %v372 = vpack.c.bf16 %v332, %v331
  %v373 = vpack.c.bf16 %v334, %v333
  %v374 = vpack.c.bf16 %v336, %v335
  %v375 = vpack.c.bf16 %v338, %v337
  %v376 = vpack.c.bf16 %v340, %v339
  %v377 = vpack.c.bf16 %v342, %v341
  %v378 = vpack.c.bf16 %v344, %v343
  %v379 = vpack.c.bf16 %v346, %v345
  %v380 = vpack.c.bf16 %v348, %v347
  %v381 = vld [vmem:[%s1] sm:$0xf]
  %v382 = vld [vmem:[%s1 + $0x4] sm:$0xf]
  %v383 = vld [vmem:[%s1 + $0x8] sm:$0xf]
  %v384 = vld [vmem:[%s1 + $0xc] sm:$0xf]
  %v385 = vld [vmem:[%s1 + $0x10] sm:$0xf]
  %v386 = vld [vmem:[%s1 + $0x14] sm:$0xf]
  %v387 = vld [vmem:[%s1 + $0x18] sm:$0xf]
  %v388 = vld [vmem:[%s1 + $0x1c] sm:$0xf]
  %v389 = vld [vmem:[%s4] sm:$0x1]
  %v391 = vperm.slane %v389, 0
  %v401 = vunpack.c.l.b16 %v381
  %v402 = vunpack.c.l.b16 %v382
  %v403 = vunpack.c.l.b16 %v383
  %v404 = vunpack.c.l.b16 %v384
  %v405 = vunpack.c.l.b16 %v385
  %v406 = vunpack.c.l.b16 %v386
  %v407 = vunpack.c.l.b16 %v387
  %v408 = vunpack.c.l.b16 %v388
  %v409 = vpack.c.b16 %v402, %v401
  %v410 = vpack.c.b16 %v404, %v403
  %v411 = vpack.c.b16 %v406, %v405
  %v412 = vpack.c.b16 %v408, %v407
  %vm417 = vcmask 523264
  %v419 = vsel %vm417, %v349, 0
  %v422 = vsel %vm417, %v350, 0
  %v425 = vsel %vm417, %v351, 0
  %v428 = vsel %vm417, %v352, 0
  %v431 = vsel %vm417, %v353, 0
  %v434 = vsel %vm417, %v354, 0
  %v437 = vsel %vm417, %v355, 0
  %v440 = vsel %vm417, %v356, 0
  %v443 = vsel %vm417, %v357, 0
  %v446 = vsel %vm417, %v358, 0
  %v449 = vsel %vm417, %v359, 0
  %v452 = vsel %vm417, %v360, 0
  %v455 = vsel %vm417, %v361, 0
  %v458 = vsel %vm417, %v362, 0
  %v461 = vsel %vm417, %v363, 0
  %v464 = vsel %vm417, %v364, 0
  %v467 = vsel %vm417, %v365, 0
  %v470 = vsel %vm417, %v366, 0
  %v473 = vsel %vm417, %v367, 0
  %v476 = vsel %vm417, %v368, 0
  %v479 = vsel %vm417, %v369, 0
  %v482 = vsel %vm417, %v370, 0
  %v485 = vsel %vm417, %v371, 0
  %v488 = vsel %vm417, %v372, 0
  %v491 = vsel %vm417, %v373, 0
  %v494 = vsel %vm417, %v374, 0
  %v497 = vsel %vm417, %v375, 0
  %v500 = vsel %vm417, %v376, 0
  %v503 = vsel %vm417, %v377, 0
  %v506 = vsel %vm417, %v378, 0
  %v509 = vsel %vm417, %v379, 0
  %v512 = vsel %vm417, %v380, 0
  %514 = vmatpush.bf16.msra.mxu0 0
  %515 = vmatpush.bf16.msra.mxu0 0
  %516 = vmatpush.bf16.msra.mxu0 0
  %517 = vmatpush.bf16.msra.mxu0 0
  %518 = vmatpush.bf16.msra.mxu0 %v412
  %519 = vmatpush.bf16.msra.mxu0 %v411
  %520 = vmatpush.bf16.msra.mxu0 %v410
  %521 = vmatpush.bf16.msra.mxu0 %v409
  %522 = vmatmul.bf16.gmra.mxu0 %v419
  %v523 = vpop.f32.mrf.mxu0
  %v524 = vadd.f32 %v391, %v523
  %v525 = vpop.f32.mrf.mxu0
  %v526 = vadd.f32 %v391, %v525
  %527 = vmatmul.bf16.gmra.mxu0 %v422
  %v528 = vpop.f32.mrf.mxu0
  %v529 = vadd.f32 %v391, %v528
  %v530 = vpop.f32.mrf.mxu0
  %v531 = vadd.f32 %v391, %v530
  %532 = vmatmul.bf16.gmra.mxu0 %v425
  %v533 = vpop.f32.mrf.mxu0
  %v534 = vadd.f32 %v391, %v533
  %v535 = vpop.f32.mrf.mxu0
  %v536 = vadd.f32 %v391, %v535
  %537 = vmatmul.bf16.gmra.mxu0 %v428
  %v538 = vpop.f32.mrf.mxu0
  %v539 = vadd.f32 %v391, %v538
  %v540 = vpop.f32.mrf.mxu0
  %v541 = vadd.f32 %v391, %v540
  %542 = vmatmul.bf16.gmra.mxu0 %v431
  %v543 = vpop.f32.mrf.mxu0
  %v544 = vadd.f32 %v391, %v543
  %v545 = vpop.f32.mrf.mxu0
  %v546 = vadd.f32 %v391, %v545
  %547 = vmatmul.bf16.gmra.mxu0 %v434
  %v548 = vpop.f32.mrf.mxu0
  %v549 = vadd.f32 %v391, %v548
  %v550 = vpop.f32.mrf.mxu0
  %v551 = vadd.f32 %v391, %v550
  %552 = vmatmul.bf16.gmra.mxu0 %v437
  %v553 = vpop.f32.mrf.mxu0
  %v554 = vadd.f32 %v391, %v553
  %v555 = vpop.f32.mrf.mxu0
  %v556 = vadd.f32 %v391, %v555
  %557 = vmatmul.bf16.gmra.mxu0 %v440
  %v558 = vpop.f32.mrf.mxu0
  %v559 = vadd.f32 %v391, %v558
  %v560 = vpop.f32.mrf.mxu0
  %v561 = vadd.f32 %v391, %v560
  %562 = vmatmul.bf16.gmra.mxu0 %v443
  %v563 = vpop.f32.mrf.mxu0
  %v564 = vadd.f32 %v391, %v563
  %v565 = vpop.f32.mrf.mxu0
  %v566 = vadd.f32 %v391, %v565
  %567 = vmatmul.bf16.gmra.mxu0 %v446
  %v568 = vpop.f32.mrf.mxu0
  %v569 = vadd.f32 %v391, %v568
  %v570 = vpop.f32.mrf.mxu0
  %v571 = vadd.f32 %v391, %v570
  %572 = vmatmul.bf16.gmra.mxu0 %v449
  %v573 = vpop.f32.mrf.mxu0
  %v574 = vadd.f32 %v391, %v573
  %v575 = vpop.f32.mrf.mxu0
  %v576 = vadd.f32 %v391, %v575
  %577 = vmatmul.bf16.gmra.mxu0 %v452
  %v578 = vpop.f32.mrf.mxu0
  %v579 = vadd.f32 %v391, %v578
  %v580 = vpop.f32.mrf.mxu0
  %v581 = vadd.f32 %v391, %v580
  %582 = vmatmul.bf16.gmra.mxu0 %v455
  %v583 = vpop.f32.mrf.mxu0
  %v584 = vadd.f32 %v391, %v583
  %v585 = vpop.f32.mrf.mxu0
  %v586 = vadd.f32 %v391, %v585
  %587 = vmatmul.bf16.gmra.mxu0 %v458
  %v588 = vpop.f32.mrf.mxu0
  %v589 = vadd.f32 %v391, %v588
  %v590 = vpop.f32.mrf.mxu0
  %v591 = vadd.f32 %v391, %v590
  %592 = vmatmul.bf16.gmra.mxu0 %v461
  %v593 = vpop.f32.mrf.mxu0
  %v594 = vadd.f32 %v391, %v593
  %v595 = vpop.f32.mrf.mxu0
  %v596 = vadd.f32 %v391, %v595
  %597 = vmatmul.bf16.gmra.mxu0 %v464
  %v598 = vpop.f32.mrf.mxu0
  %v599 = vadd.f32 %v391, %v598
  %v600 = vpop.f32.mrf.mxu0
  %v601 = vadd.f32 %v391, %v600
  %602 = vmatmul.bf16.gmra.mxu0 %v467
  %v603 = vpop.f32.mrf.mxu0
  %v604 = vadd.f32 %v391, %v603
  %v605 = vpop.f32.mrf.mxu0
  %v606 = vadd.f32 %v391, %v605
  %607 = vmatmul.bf16.gmra.mxu0 %v470
  %v608 = vpop.f32.mrf.mxu0
  %v609 = vadd.f32 %v391, %v608
  %v610 = vpop.f32.mrf.mxu0
  %v611 = vadd.f32 %v391, %v610
  %612 = vmatmul.bf16.gmra.mxu0 %v473
  %v613 = vpop.f32.mrf.mxu0
  %v614 = vadd.f32 %v391, %v613
  %v615 = vpop.f32.mrf.mxu0
  %v616 = vadd.f32 %v391, %v615
  %617 = vmatmul.bf16.gmra.mxu0 %v476
  %v618 = vpop.f32.mrf.mxu0
  %v619 = vadd.f32 %v391, %v618
  %v620 = vpop.f32.mrf.mxu0
  %v621 = vadd.f32 %v391, %v620
  %622 = vmatmul.bf16.gmra.mxu0 %v479
  %v623 = vpop.f32.mrf.mxu0
  %v624 = vadd.f32 %v391, %v623
  %v625 = vpop.f32.mrf.mxu0
  %v626 = vadd.f32 %v391, %v625
  %627 = vmatmul.bf16.gmra.mxu0 %v482
  %v628 = vpop.f32.mrf.mxu0
  %v629 = vadd.f32 %v391, %v628
  %v630 = vpop.f32.mrf.mxu0
  %v631 = vadd.f32 %v391, %v630
  %632 = vmatmul.bf16.gmra.mxu0 %v485
  %v633 = vpop.f32.mrf.mxu0
  %v634 = vadd.f32 %v391, %v633
  %v635 = vpop.f32.mrf.mxu0
  %v636 = vadd.f32 %v391, %v635
  %637 = vmatmul.bf16.gmra.mxu0 %v488
  %v638 = vpop.f32.mrf.mxu0
  %v639 = vadd.f32 %v391, %v638
  %v640 = vpop.f32.mrf.mxu0
  %v641 = vadd.f32 %v391, %v640
  %642 = vmatmul.bf16.gmra.mxu0 %v491
  %v643 = vpop.f32.mrf.mxu0
  %v644 = vadd.f32 %v391, %v643
  %v645 = vpop.f32.mrf.mxu0
  %v646 = vadd.f32 %v391, %v645
  %647 = vmatmul.bf16.gmra.mxu0 %v494
  %v648 = vpop.f32.mrf.mxu0
  %v649 = vadd.f32 %v391, %v648
  %v650 = vpop.f32.mrf.mxu0
  %v651 = vadd.f32 %v391, %v650
  %652 = vmatmul.bf16.gmra.mxu0 %v497
  %v653 = vpop.f32.mrf.mxu0
  %v654 = vadd.f32 %v391, %v653
  %v655 = vpop.f32.mrf.mxu0
  %v656 = vadd.f32 %v391, %v655
  %657 = vmatmul.bf16.gmra.mxu0 %v500
  %v658 = vpop.f32.mrf.mxu0
  %v659 = vadd.f32 %v391, %v658
  %v660 = vpop.f32.mrf.mxu0
  %v661 = vadd.f32 %v391, %v660
  %662 = vmatmul.bf16.gmra.mxu0 %v503
  %v663 = vpop.f32.mrf.mxu0
  %v664 = vadd.f32 %v391, %v663
  %v665 = vpop.f32.mrf.mxu0
  %v666 = vadd.f32 %v391, %v665
  %667 = vmatmul.bf16.gmra.mxu0 %v506
  %v668 = vpop.f32.mrf.mxu0
  %v669 = vadd.f32 %v391, %v668
  %v670 = vpop.f32.mrf.mxu0
  %v671 = vadd.f32 %v391, %v670
  %672 = vmatmul.bf16.gmra.mxu0 %v509
  %v673 = vpop.f32.mrf.mxu0
  %v674 = vadd.f32 %v391, %v673
  %v675 = vpop.f32.mrf.mxu0
  %v676 = vadd.f32 %v391, %v675
  %677 = vmatmul.bf16.gmra.mxu0 %v512
  %v678 = vpop.f32.mrf.mxu0
  %v679 = vadd.f32 %v391, %v678
  %v680 = vpop.f32.mrf.mxu0
  %v681 = vadd.f32 %v391, %v680
  %682 = vdwg.mxu0
  %v683 = vpack.c.bf16 %v524, %v524
  %v684 = vpack.c.bf16 %v526, %v526
  %v685 = vpack.c.bf16 %v529, %v529
  %v686 = vpack.c.bf16 %v531, %v531
  %v687 = vpack.c.bf16 %v534, %v534
  %v688 = vpack.c.bf16 %v536, %v536
  %v689 = vpack.c.bf16 %v539, %v539
  %v690 = vpack.c.bf16 %v541, %v541
  %v691 = vpack.c.bf16 %v544, %v544
  %v692 = vpack.c.bf16 %v546, %v546
  %v693 = vpack.c.bf16 %v549, %v549
  %v694 = vpack.c.bf16 %v551, %v551
  %v695 = vpack.c.bf16 %v554, %v554
  %v696 = vpack.c.bf16 %v556, %v556
  %v697 = vpack.c.bf16 %v559, %v559
  %v698 = vpack.c.bf16 %v561, %v561
  %v699 = vpack.c.bf16 %v564, %v564
  %v700 = vpack.c.bf16 %v566, %v566
  %v701 = vpack.c.bf16 %v569, %v569
  %v702 = vpack.c.bf16 %v571, %v571
  %v703 = vpack.c.bf16 %v574, %v574
  %v704 = vpack.c.bf16 %v576, %v576
  %v705 = vpack.c.bf16 %v579, %v579
  %v706 = vpack.c.bf16 %v581, %v581
  %v707 = vpack.c.bf16 %v584, %v584
  %v708 = vpack.c.bf16 %v586, %v586
  %v709 = vpack.c.bf16 %v589, %v589
  %v710 = vpack.c.bf16 %v591, %v591
  %v711 = vpack.c.bf16 %v594, %v594
  %v712 = vpack.c.bf16 %v596, %v596
  %v713 = vpack.c.bf16 %v599, %v599
  %v714 = vpack.c.bf16 %v601, %v601
  %v715 = vpack.c.bf16 %v604, %v604
  %v716 = vpack.c.bf16 %v606, %v606
  %v717 = vpack.c.bf16 %v609, %v609
  %v718 = vpack.c.bf16 %v611, %v611
  %v719 = vpack.c.bf16 %v614, %v614
  %v720 = vpack.c.bf16 %v616, %v616
  %v721 = vpack.c.bf16 %v619, %v619
  %v722 = vpack.c.bf16 %v621, %v621
  %v723 = vpack.c.bf16 %v624, %v624
  %v724 = vpack.c.bf16 %v626, %v626
  %v725 = vpack.c.bf16 %v629, %v629
  %v726 = vpack.c.bf16 %v631, %v631
  %v727 = vpack.c.bf16 %v634, %v634
  %v728 = vpack.c.bf16 %v636, %v636
  %v729 = vpack.c.bf16 %v639, %v639
  %v730 = vpack.c.bf16 %v641, %v641
  %v731 = vpack.c.bf16 %v644, %v644
  %v732 = vpack.c.bf16 %v646, %v646
  %v733 = vpack.c.bf16 %v649, %v649
  %v734 = vpack.c.bf16 %v651, %v651
  %v735 = vpack.c.bf16 %v654, %v654
  %v736 = vpack.c.bf16 %v656, %v656
  %v737 = vpack.c.bf16 %v659, %v659
  %v738 = vpack.c.bf16 %v661, %v661
  %v739 = vpack.c.bf16 %v664, %v664
  %v740 = vpack.c.bf16 %v666, %v666
  %v741 = vpack.c.bf16 %v669, %v669
  %v742 = vpack.c.bf16 %v671, %v671
  %v743 = vpack.c.bf16 %v674, %v674
  %v744 = vpack.c.bf16 %v676, %v676
  %v745 = vpack.c.bf16 %v679, %v679
  %v746 = vpack.c.bf16 %v681, %v681
  %vm747 = vcmask 257024
  %748 = vst.msk [vmem:[%s5] sm:$0xf] %vm747, %v683
  %749 = vst.msk [vmem:[%s5 + $0x4] sm:$0xf] %vm747, %v684
  %750 = vst.msk [vmem:[%s5 + $0x8] sm:$0xf] %vm747, %v685
  %751 = vst.msk [vmem:[%s5 + $0xc] sm:$0xf] %vm747, %v686
  %752 = vst.msk [vmem:[%s5 + $0x10] sm:$0xf] %vm747, %v687
  %753 = vst.msk [vmem:[%s5 + $0x14] sm:$0xf] %vm747, %v688
  %754 = vst.msk [vmem:[%s5 + $0x18] sm:$0xf] %vm747, %v689
  %755 = vst.msk [vmem:[%s5 + $0x1c] sm:$0xf] %vm747, %v690
  %756 = vst.msk [vmem:[%s5 + $0x20] sm:$0xf] %vm747, %v691
  %757 = vst.msk [vmem:[%s5 + $0x24] sm:$0xf] %vm747, %v692
  %758 = vst.msk [vmem:[%s5 + $0x28] sm:$0xf] %vm747, %v693
  %759 = vst.msk [vmem:[%s5 + $0x2c] sm:$0xf] %vm747, %v694
  %760 = vst.msk [vmem:[%s5 + $0x30] sm:$0xf] %vm747, %v695
  %761 = vst.msk [vmem:[%s5 + $0x34] sm:$0xf] %vm747, %v696
  %762 = vst.msk [vmem:[%s5 + $0x38] sm:$0xf] %vm747, %v697
  %763 = vst.msk [vmem:[%s5 + $0x3c] sm:$0xf] %vm747, %v698
  %764 = vst.msk [vmem:[%s5 + $0x40] sm:$0xf] %vm747, %v699
  %765 = vst.msk [vmem:[%s5 + $0x44] sm:$0xf] %vm747, %v700
  %766 = vst.msk [vmem:[%s5 + $0x48] sm:$0xf] %vm747, %v701
  %767 = vst.msk [vmem:[%s5 + $0x4c] sm:$0xf] %vm747, %v702
  %768 = vst.msk [vmem:[%s5 + $0x50] sm:$0xf] %vm747, %v703
  %769 = vst.msk [vmem:[%s5 + $0x54] sm:$0xf] %vm747, %v704
  %770 = vst.msk [vmem:[%s5 + $0x58] sm:$0xf] %vm747, %v705
  %771 = vst.msk [vmem:[%s5 + $0x5c] sm:$0xf] %vm747, %v706
  %772 = vst.msk [vmem:[%s5 + $0x60] sm:$0xf] %vm747, %v707
  %773 = vst.msk [vmem:[%s5 + $0x64] sm:$0xf] %vm747, %v708
  %774 = vst.msk [vmem:[%s5 + $0x68] sm:$0xf] %vm747, %v709
  %775 = vst.msk [vmem:[%s5 + $0x6c] sm:$0xf] %vm747, %v710
  %776 = vst.msk [vmem:[%s5 + $0x70] sm:$0xf] %vm747, %v711
  %777 = vst.msk [vmem:[%s5 + $0x74] sm:$0xf] %vm747, %v712
  %778 = vst.msk [vmem:[%s5 + $0x78] sm:$0xf] %vm747, %v713
  %779 = vst.msk [vmem:[%s5 + $0x7c] sm:$0xf] %vm747, %v714
  %780 = vst.msk [vmem:[%s5 + $0x80] sm:$0xf] %vm747, %v715
  %781 = vst.msk [vmem:[%s5 + $0x84] sm:$0xf] %vm747, %v716
  %782 = vst.msk [vmem:[%s5 + $0x88] sm:$0xf] %vm747, %v717
  %783 = vst.msk [vmem:[%s5 + $0x8c] sm:$0xf] %vm747, %v718
  %784 = vst.msk [vmem:[%s5 + $0x90] sm:$0xf] %vm747, %v719
  %785 = vst.msk [vmem:[%s5 + $0x94] sm:$0xf] %vm747, %v720
  %786 = vst.msk [vmem:[%s5 + $0x98] sm:$0xf] %vm747, %v721
  %787 = vst.msk [vmem:[%s5 + $0x9c] sm:$0xf] %vm747, %v722
  %788 = vst.msk [vmem:[%s5 + $0xa0] sm:$0xf] %vm747, %v723
  %789 = vst.msk [vmem:[%s5 + $0xa4] sm:$0xf] %vm747, %v724
  %790 = vst.msk [vmem:[%s5 + $0xa8] sm:$0xf] %vm747, %v725
  %791 = vst.msk [vmem:[%s5 + $0xac] sm:$0xf] %vm747, %v726
  %792 = vst.msk [vmem:[%s5 + $0xb0] sm:$0xf] %vm747, %v727
  %793 = vst.msk [vmem:[%s5 + $0xb4] sm:$0xf] %vm747, %v728
  %794 = vst.msk [vmem:[%s5 + $0xb8] sm:$0xf] %vm747, %v729
  %795 = vst.msk [vmem:[%s5 + $0xbc] sm:$0xf] %vm747, %v730
  %796 = vst.msk [vmem:[%s5 + $0xc0] sm:$0xf] %vm747, %v731
  %797 = vst.msk [vmem:[%s5 + $0xc4] sm:$0xf] %vm747, %v732
  %798 = vst.msk [vmem:[%s5 + $0xc8] sm:$0xf] %vm747, %v733
  %799 = vst.msk [vmem:[%s5 + $0xcc] sm:$0xf] %vm747, %v734
  %800 = vst.msk [vmem:[%s5 + $0xd0] sm:$0xf] %vm747, %v735
  %801 = vst.msk [vmem:[%s5 + $0xd4] sm:$0xf] %vm747, %v736
  %802 = vst.msk [vmem:[%s5 + $0xd8] sm:$0xf] %vm747, %v737
  %803 = vst.msk [vmem:[%s5 + $0xdc] sm:$0xf] %vm747, %v738
  %804 = vst.msk [vmem:[%s5 + $0xe0] sm:$0xf] %vm747, %v739
  %805 = vst.msk [vmem:[%s5 + $0xe4] sm:$0xf] %vm747, %v740
  %806 = vst.msk [vmem:[%s5 + $0xe8] sm:$0xf] %vm747, %v741
  %807 = vst.msk [vmem:[%s5 + $0xec] sm:$0xf] %vm747, %v742
  %808 = vst.msk [vmem:[%s5 + $0xf0] sm:$0xf] %vm747, %v743
  %809 = vst.msk [vmem:[%s5 + $0xf4] sm:$0xf] %vm747, %v744
  %810 = vst.msk [vmem:[%s5 + $0xf8] sm:$0xf] %vm747, %v745
  %811 = vst.msk [vmem:[%s5 + $0xfc] sm:$0xf] %vm747, %v746
  // Predicated region
  $region22: #{point_transformer_layer.8} parent=0 // pred_check
    _
  $region23: #{point_transformer_layer.8} parent=0 // pred_check_branch
    %813 = sbr.rel (0) target = $region25
  $region24: #{point_transformer_layer.8} parent=0 // pred_region
    _
  $region25: #{point_transformer_layer.8} parent=0 // pred_fallthru
    _
  // Predicated region
  $region26: #{point_transformer_layer.8} parent=0 // pred_check
    _
  $region27: #{point_transformer_layer.8} parent=0 // pred_check_branch
    %815 = sbr.rel (0) target = $region29
  $region28: #{point_transformer_layer.8} parent=0 // pred_region
    _
  $region29: #{point_transformer_layer.8} parent=0 // pred_fallthru
    _

// kernel: point_transformer_layer.10
$region0: #{point_transformer_layer.10}
  #allocation0 [shape = 'u32[]', space=smem, size = 0x4, offset = 0x4, fixed_abs, tag = 'smem constant byte address 0x4 - core index']
  #allocation1 [shape = 'u32[72,128]{1,0:T(1,128)}', space=vmem, size = 0x9000, scoped, tag = 'internal scratch']
  %s0 = inlined_call_operand.vmem [shape: bf16[512,128], index: 0, kind: input, shape index: {}]
  %s1 = inlined_call_operand.vmem [shape: bf16[128,32], index: 1, kind: input, shape index: {}]
  %s2 = inlined_call_operand.vmem [shape: f32[1,128], index: 2, kind: input, shape index: {}]
  %s3 = inlined_call_operand.vmem [shape: f32[1,128], index: 3, kind: input, shape index: {}]
  %s4 = inlined_call_operand.vmem [shape: f32[1,32], index: 4, kind: input, shape index: {}]
  %s5 = inlined_call_operand.vmem [shape: bf16[512,32], index: 5, kind: output, shape index: {}]
  %s6 = sld [smem:[#allocation0]]
  $region30: #{point_transformer_layer.10} parent=0
    _
  %s8 = ssub.s32 1, %s6
  %s9 = scalar_select 0, %s8, %s6
  // Predicated region
  $region2: #{point_transformer_layer.10} parent=0 // pred_check
    _
  $region3: #{point_transformer_layer.10} parent=0 // pred_check_branch
    %11 = sbr.rel (0) target = $region5
  $region4: #{point_transformer_layer.10} parent=0 // pred_region
    _
  $region5: #{point_transformer_layer.10} parent=0 // pred_fallthru
    _
  // Predicated region
  $region6: #{point_transformer_layer.10} parent=0 // pred_check
    _
  $region7: #{point_transformer_layer.10} parent=0 // pred_check_branch
    %13 = sbr.rel (0) target = $region9
  $region8: #{point_transformer_layer.10} parent=0 // pred_region
    _
  $region9: #{point_transformer_layer.10} parent=0 // pred_fallthru
    _
  // Predicated region
  $region10: #{point_transformer_layer.10} parent=0 // pred_check
    _
  $region11: #{point_transformer_layer.10} parent=0 // pred_check_branch
    %15 = sbr.rel (0) target = $region13
  $region12: #{point_transformer_layer.10} parent=0 // pred_region
    _
  $region13: #{point_transformer_layer.10} parent=0 // pred_fallthru
    _
  // Predicated region
  $region14: #{point_transformer_layer.10} parent=0 // pred_check
    _
  $region15: #{point_transformer_layer.10} parent=0 // pred_check_branch
    %17 = sbr.rel (0) target = $region17
  $region16: #{point_transformer_layer.10} parent=0 // pred_region
    _
  $region17: #{point_transformer_layer.10} parent=0 // pred_fallthru
    _
  // Predicated region
  $region18: #{point_transformer_layer.10} parent=0 // pred_check
    _
  $region19: #{point_transformer_layer.10} parent=0 // pred_check_branch
    %19 = sbr.rel (0) target = $region21
  $region20: #{point_transformer_layer.10} parent=0 // pred_region
    _
  $region21: #{point_transformer_layer.10} parent=0 // pred_fallthru
    _
  %v20 = vld [vmem:[%s0] sm:$0xf]
  %v21 = vld [vmem:[%s0 + $0x4] sm:$0xf]
  %v22 = vld [vmem:[%s0 + $0x8] sm:$0xf]
  %v23 = vld [vmem:[%s0 + $0xc] sm:$0xf]
  %v24 = vld [vmem:[%s0 + $0x10] sm:$0xf]
  %v25 = vld [vmem:[%s0 + $0x14] sm:$0xf]
  %v26 = vld [vmem:[%s0 + $0x18] sm:$0xf]
  %v27 = vld [vmem:[%s0 + $0x1c] sm:$0xf]
  %v28 = vld [vmem:[%s0 + $0x20] sm:$0xf]
  %v29 = vld [vmem:[%s0 + $0x24] sm:$0xf]
  %v30 = vld [vmem:[%s0 + $0x28] sm:$0xf]
  %v31 = vld [vmem:[%s0 + $0x2c] sm:$0xf]
  %v32 = vld [vmem:[%s0 + $0x30] sm:$0xf]
  %v33 = vld [vmem:[%s0 + $0x34] sm:$0xf]
  %v34 = vld [vmem:[%s0 + $0x38] sm:$0xf]
  %v35 = vld [vmem:[%s0 + $0x3c] sm:$0xf]
  %v36 = vld [vmem:[%s0 + $0x40] sm:$0xf]
  %v37 = vld [vmem:[%s0 + $0x44] sm:$0xf]
  %v38 = vld [vmem:[%s0 + $0x48] sm:$0xf]
  %v39 = vld [vmem:[%s0 + $0x4c] sm:$0xf]
  %v40 = vld [vmem:[%s0 + $0x50] sm:$0xf]
  %v41 = vld [vmem:[%s0 + $0x54] sm:$0xf]
  %v42 = vld [vmem:[%s0 + $0x58] sm:$0xf]
  %v43 = vld [vmem:[%s0 + $0x5c] sm:$0xf]
  %v44 = vld [vmem:[%s0 + $0x60] sm:$0xf]
  %v45 = vld [vmem:[%s0 + $0x64] sm:$0xf]
  %v46 = vld [vmem:[%s0 + $0x68] sm:$0xf]
  %v47 = vld [vmem:[%s0 + $0x6c] sm:$0xf]
  %v48 = vld [vmem:[%s0 + $0x70] sm:$0xf]
  %v49 = vld [vmem:[%s0 + $0x74] sm:$0xf]
  %v50 = vld [vmem:[%s0 + $0x78] sm:$0xf]
  %v51 = vld [vmem:[%s0 + $0x7c] sm:$0xf]
  %v52 = vld [vmem:[%s0 + $0x80] sm:$0xf]
  %v53 = vld [vmem:[%s0 + $0x84] sm:$0xf]
  %v54 = vld [vmem:[%s0 + $0x88] sm:$0xf]
  %v55 = vld [vmem:[%s0 + $0x8c] sm:$0xf]
  %v56 = vld [vmem:[%s0 + $0x90] sm:$0xf]
  %v57 = vld [vmem:[%s0 + $0x94] sm:$0xf]
  %v58 = vld [vmem:[%s0 + $0x98] sm:$0xf]
  %v59 = vld [vmem:[%s0 + $0x9c] sm:$0xf]
  %v60 = vld [vmem:[%s0 + $0xa0] sm:$0xf]
  %v61 = vld [vmem:[%s0 + $0xa4] sm:$0xf]
  %v62 = vld [vmem:[%s0 + $0xa8] sm:$0xf]
  %v63 = vld [vmem:[%s0 + $0xac] sm:$0xf]
  %v64 = vld [vmem:[%s0 + $0xb0] sm:$0xf]
  %v65 = vld [vmem:[%s0 + $0xb4] sm:$0xf]
  %v66 = vld [vmem:[%s0 + $0xb8] sm:$0xf]
  %v67 = vld [vmem:[%s0 + $0xbc] sm:$0xf]
  %v68 = vld [vmem:[%s0 + $0xc0] sm:$0xf]
  %v69 = vld [vmem:[%s0 + $0xc4] sm:$0xf]
  %v70 = vld [vmem:[%s0 + $0xc8] sm:$0xf]
  %v71 = vld [vmem:[%s0 + $0xcc] sm:$0xf]
  %v72 = vld [vmem:[%s0 + $0xd0] sm:$0xf]
  %v73 = vld [vmem:[%s0 + $0xd4] sm:$0xf]
  %v74 = vld [vmem:[%s0 + $0xd8] sm:$0xf]
  %v75 = vld [vmem:[%s0 + $0xdc] sm:$0xf]
  %v76 = vld [vmem:[%s0 + $0xe0] sm:$0xf]
  %v77 = vld [vmem:[%s0 + $0xe4] sm:$0xf]
  %v78 = vld [vmem:[%s0 + $0xe8] sm:$0xf]
  %v79 = vld [vmem:[%s0 + $0xec] sm:$0xf]
  %v80 = vld [vmem:[%s0 + $0xf0] sm:$0xf]
  %v81 = vld [vmem:[%s0 + $0xf4] sm:$0xf]
  %v82 = vld [vmem:[%s0 + $0xf8] sm:$0xf]
  %v83 = vld [vmem:[%s0 + $0xfc] sm:$0xf]
  %v84 = vunpack.c.l.bf16 %v20
  %v85 = vunpack.c.l.bf16 %v21
  %v86 = vunpack.c.l.bf16 %v22
  %v87 = vunpack.c.l.bf16 %v23
  %v88 = vunpack.c.l.bf16 %v24
  %v89 = vunpack.c.l.bf16 %v25
  %v90 = vunpack.c.l.bf16 %v26
  %v91 = vunpack.c.l.bf16 %v27
  %v92 = vunpack.c.l.bf16 %v28
  %v93 = vunpack.c.l.bf16 %v29
  %v94 = vunpack.c.l.bf16 %v30
  %v95 = vunpack.c.l.bf16 %v31
  %v96 = vunpack.c.l.bf16 %v32
  %v97 = vunpack.c.l.bf16 %v33
  %v98 = vunpack.c.l.bf16 %v34
  %v99 = vunpack.c.l.bf16 %v35
  %v100 = vunpack.c.l.bf16 %v36
  %v101 = vunpack.c.l.bf16 %v37
  %v102 = vunpack.c.l.bf16 %v38
  %v103 = vunpack.c.l.bf16 %v39
  %v104 = vunpack.c.l.bf16 %v40
  %v105 = vunpack.c.l.bf16 %v41
  %v106 = vunpack.c.l.bf16 %v42
  %v107 = vunpack.c.l.bf16 %v43
  %v108 = vunpack.c.l.bf16 %v44
  %v109 = vunpack.c.l.bf16 %v45
  %v110 = vunpack.c.l.bf16 %v46
  %v111 = vunpack.c.l.bf16 %v47
  %v112 = vunpack.c.l.bf16 %v48
  %v113 = vunpack.c.l.bf16 %v49
  %v114 = vunpack.c.l.bf16 %v50
  %v115 = vunpack.c.l.bf16 %v51
  %v116 = vunpack.c.l.bf16 %v52
  %v117 = vunpack.c.l.bf16 %v53
  %v118 = vunpack.c.l.bf16 %v54
  %v119 = vunpack.c.l.bf16 %v55
  %v120 = vunpack.c.l.bf16 %v56
  %v121 = vunpack.c.l.bf16 %v57
  %v122 = vunpack.c.l.bf16 %v58
  %v123 = vunpack.c.l.bf16 %v59
  %v124 = vunpack.c.l.bf16 %v60
  %v125 = vunpack.c.l.bf16 %v61
  %v126 = vunpack.c.l.bf16 %v62
  %v127 = vunpack.c.l.bf16 %v63
  %v128 = vunpack.c.l.bf16 %v64
  %v129 = vunpack.c.l.bf16 %v65
  %v130 = vunpack.c.l.bf16 %v66
  %v131 = vunpack.c.l.bf16 %v67
  %v132 = vunpack.c.l.bf16 %v68
  %v133 = vunpack.c.l.bf16 %v69
  %v134 = vunpack.c.l.bf16 %v70
  %v135 = vunpack.c.l.bf16 %v71
  %v136 = vunpack.c.l.bf16 %v72
  %v137 = vunpack.c.l.bf16 %v73
  %v138 = vunpack.c.l.bf16 %v74
  %v139 = vunpack.c.l.bf16 %v75
  %v140 = vunpack.c.l.bf16 %v76
  %v141 = vunpack.c.l.bf16 %v77
  %v142 = vunpack.c.l.bf16 %v78
  %v143 = vunpack.c.l.bf16 %v79
  %v144 = vunpack.c.l.bf16 %v80
  %v145 = vunpack.c.l.bf16 %v81
  %v146 = vunpack.c.l.bf16 %v82
  %v147 = vunpack.c.l.bf16 %v83
  %v148 = vld [vmem:[%s2] sm:$0x1]
  %v150 = vperm.slane %v148, 0
  %v152 = vmul.f32 %v84, %v150
  %v153 = vmul.f32 %v85, %v150
  %v154 = vmul.f32 %v86, %v150
  %v155 = vmul.f32 %v87, %v150
  %v156 = vmul.f32 %v88, %v150
  %v157 = vmul.f32 %v89, %v150
  %v158 = vmul.f32 %v90, %v150
  %v159 = vmul.f32 %v91, %v150
  %v160 = vmul.f32 %v92, %v150
  %v161 = vmul.f32 %v93, %v150
  %v162 = vmul.f32 %v94, %v150
  %v163 = vmul.f32 %v95, %v150
  %v164 = vmul.f32 %v96, %v150
  %v165 = vmul.f32 %v97, %v150
  %v166 = vmul.f32 %v98, %v150
  %v167 = vmul.f32 %v99, %v150
  %v168 = vmul.f32 %v100, %v150
  %v169 = vmul.f32 %v101, %v150
  %v170 = vmul.f32 %v102, %v150
  %v171 = vmul.f32 %v103, %v150
  %v172 = vmul.f32 %v104, %v150
  %v173 = vmul.f32 %v105, %v150
  %v174 = vmul.f32 %v106, %v150
  %v175 = vmul.f32 %v107, %v150
  %v176 = vmul.f32 %v108, %v150
  %v177 = vmul.f32 %v109, %v150
  %v178 = vmul.f32 %v110, %v150
  %v179 = vmul.f32 %v111, %v150
  %v180 = vmul.f32 %v112, %v150
  %v181 = vmul.f32 %v113, %v150
  %v182 = vmul.f32 %v114, %v150
  %v183 = vmul.f32 %v115, %v150
  %v184 = vmul.f32 %v116, %v150
  %v185 = vmul.f32 %v117, %v150
  %v186 = vmul.f32 %v118, %v150
  %v187 = vmul.f32 %v119, %v150
  %v188 = vmul.f32 %v120, %v150
  %v189 = vmul.f32 %v121, %v150
  %v190 = vmul.f32 %v122, %v150
  %v191 = vmul.f32 %v123, %v150
  %v192 = vmul.f32 %v124, %v150
  %v193 = vmul.f32 %v125, %v150
  %v194 = vmul.f32 %v126, %v150
  %v195 = vmul.f32 %v127, %v150
  %v196 = vmul.f32 %v128, %v150
  %v197 = vmul.f32 %v129, %v150
  %v198 = vmul.f32 %v130, %v150
  %v199 = vmul.f32 %v131, %v150
  %v200 = vmul.f32 %v132, %v150
  %v201 = vmul.f32 %v133, %v150
  %v202 = vmul.f32 %v134, %v150
  %v203 = vmul.f32 %v135, %v150
  %v204 = vmul.f32 %v136, %v150
  %v205 = vmul.f32 %v137, %v150
  %v206 = vmul.f32 %v138, %v150
  %v207 = vmul.f32 %v139, %v150
  %v208 = vmul.f32 %v140, %v150
  %v209 = vmul.f32 %v141, %v150
  %v210 = vmul.f32 %v142, %v150
  %v211 = vmul.f32 %v143, %v150
  %v212 = vmul.f32 %v144, %v150
  %v213 = vmul.f32 %v145, %v150
  %v214 = vmul.f32 %v146, %v150
  %v215 = vmul.f32 %v147, %v150
  %v216 = vld [vmem:[%s3] sm:$0x1]
  %v218 = vperm.slane %v216, 0
  %v220 = vadd.f32 %v152, %v218
  %v221 = vadd.f32 %v153, %v218
  %v222 = vadd.f32 %v154, %v218
  %v223 = vadd.f32 %v155, %v218
  %v224 = vadd.f32 %v156, %v218
  %v225 = vadd.f32 %v157, %v218
  %v226 = vadd.f32 %v158, %v218
  %v227 = vadd.f32 %v159, %v218
  %v228 = vadd.f32 %v160, %v218
  %v229 = vadd.f32 %v161, %v218
  %v230 = vadd.f32 %v162, %v218
  %v231 = vadd.f32 %v163, %v218
  %v232 = vadd.f32 %v164, %v218
  %v233 = vadd.f32 %v165, %v218
  %v234 = vadd.f32 %v166, %v218
  %v235 = vadd.f32 %v167, %v218
  %v236 = vadd.f32 %v168, %v218
  %v237 = vadd.f32 %v169, %v218
  %v238 = vadd.f32 %v170, %v218
  %v239 = vadd.f32 %v171, %v218
  %v240 = vadd.f32 %v172, %v218
  %v241 = vadd.f32 %v173, %v218
  %v242 = vadd.f32 %v174, %v218
  %v243 = vadd.f32 %v175, %v218
  %v244 = vadd.f32 %v176, %v218
  %v245 = vadd.f32 %v177, %v218
  %v246 = vadd.f32 %v178, %v218
  %v247 = vadd.f32 %v179, %v218
  %v248 = vadd.f32 %v180, %v218
  %v249 = vadd.f32 %v181, %v218
  %v250 = vadd.f32 %v182, %v218
  %v251 = vadd.f32 %v183, %v218
  %v252 = vadd.f32 %v184, %v218
  %v253 = vadd.f32 %v185, %v218
  %v254 = vadd.f32 %v186, %v218
  %v255 = vadd.f32 %v187, %v218
  %v256 = vadd.f32 %v188, %v218
  %v257 = vadd.f32 %v189, %v218
  %v258 = vadd.f32 %v190, %v218
  %v259 = vadd.f32 %v191, %v218
  %v260 = vadd.f32 %v192, %v218
  %v261 = vadd.f32 %v193, %v218
  %v262 = vadd.f32 %v194, %v218
  %v263 = vadd.f32 %v195, %v218
  %v264 = vadd.f32 %v196, %v218
  %v265 = vadd.f32 %v197, %v218
  %v266 = vadd.f32 %v198, %v218
  %v267 = vadd.f32 %v199, %v218
  %v268 = vadd.f32 %v200, %v218
  %v269 = vadd.f32 %v201, %v218
  %v270 = vadd.f32 %v202, %v218
  %v271 = vadd.f32 %v203, %v218
  %v272 = vadd.f32 %v204, %v218
  %v273 = vadd.f32 %v205, %v218
  %v274 = vadd.f32 %v206, %v218
  %v275 = vadd.f32 %v207, %v218
  %v276 = vadd.f32 %v208, %v218
  %v277 = vadd.f32 %v209, %v218
  %v278 = vadd.f32 %v210, %v218
  %v279 = vadd.f32 %v211, %v218
  %v280 = vadd.f32 %v212, %v218
  %v281 = vadd.f32 %v213, %v218
  %v282 = vadd.f32 %v214, %v218
  %v283 = vadd.f32 %v215, %v218
  %v284 = vmax.f32 %v220, 0.0
  %v285 = vmax.f32 %v221, 0.0
  %v286 = vmax.f32 %v222, 0.0
  %v287 = vmax.f32 %v223, 0.0
  %v288 = vmax.f32 %v224, 0.0
  %v289 = vmax.f32 %v225, 0.0
  %v290 = vmax.f32 %v226, 0.0
  %v291 = vmax.f32 %v227, 0.0
  %v292 = vmax.f32 %v228, 0.0
  %v293 = vmax.f32 %v229, 0.0
  %v294 = vmax.f32 %v230, 0.0
  %v295 = vmax.f32 %v231, 0.0
  %v296 = vmax.f32 %v232, 0.0
  %v297 = vmax.f32 %v233, 0.0
  %v298 = vmax.f32 %v234, 0.0
  %v299 = vmax.f32 %v235, 0.0
  %v300 = vmax.f32 %v236, 0.0
  %v301 = vmax.f32 %v237, 0.0
  %v302 = vmax.f32 %v238, 0.0
  %v303 = vmax.f32 %v239, 0.0
  %v304 = vmax.f32 %v240, 0.0
  %v305 = vmax.f32 %v241, 0.0
  %v306 = vmax.f32 %v242, 0.0
  %v307 = vmax.f32 %v243, 0.0
  %v308 = vmax.f32 %v244, 0.0
  %v309 = vmax.f32 %v245, 0.0
  %v310 = vmax.f32 %v246, 0.0
  %v311 = vmax.f32 %v247, 0.0
  %v312 = vmax.f32 %v248, 0.0
  %v313 = vmax.f32 %v249, 0.0
  %v314 = vmax.f32 %v250, 0.0
  %v315 = vmax.f32 %v251, 0.0
  %v316 = vmax.f32 %v252, 0.0
  %v317 = vmax.f32 %v253, 0.0
  %v318 = vmax.f32 %v254, 0.0
  %v319 = vmax.f32 %v255, 0.0
  %v320 = vmax.f32 %v256, 0.0
  %v321 = vmax.f32 %v257, 0.0
  %v322 = vmax.f32 %v258, 0.0
  %v323 = vmax.f32 %v259, 0.0
  %v324 = vmax.f32 %v260, 0.0
  %v325 = vmax.f32 %v261, 0.0
  %v326 = vmax.f32 %v262, 0.0
  %v327 = vmax.f32 %v263, 0.0
  %v328 = vmax.f32 %v264, 0.0
  %v329 = vmax.f32 %v265, 0.0
  %v330 = vmax.f32 %v266, 0.0
  %v331 = vmax.f32 %v267, 0.0
  %v332 = vmax.f32 %v268, 0.0
  %v333 = vmax.f32 %v269, 0.0
  %v334 = vmax.f32 %v270, 0.0
  %v335 = vmax.f32 %v271, 0.0
  %v336 = vmax.f32 %v272, 0.0
  %v337 = vmax.f32 %v273, 0.0
  %v338 = vmax.f32 %v274, 0.0
  %v339 = vmax.f32 %v275, 0.0
  %v340 = vmax.f32 %v276, 0.0
  %v341 = vmax.f32 %v277, 0.0
  %v342 = vmax.f32 %v278, 0.0
  %v343 = vmax.f32 %v279, 0.0
  %v344 = vmax.f32 %v280, 0.0
  %v345 = vmax.f32 %v281, 0.0
  %v346 = vmax.f32 %v282, 0.0
  %v347 = vmax.f32 %v283, 0.0
  %v348 = vpack.c.bf16 %v285, %v284
  %v349 = vpack.c.bf16 %v287, %v286
  %v350 = vpack.c.bf16 %v289, %v288
  %v351 = vpack.c.bf16 %v291, %v290
  %v352 = vpack.c.bf16 %v293, %v292
  %v353 = vpack.c.bf16 %v295, %v294
  %v354 = vpack.c.bf16 %v297, %v296
  %v355 = vpack.c.bf16 %v299, %v298
  %v356 = vpack.c.bf16 %v301, %v300
  %v357 = vpack.c.bf16 %v303, %v302
  %v358 = vpack.c.bf16 %v305, %v304
  %v359 = vpack.c.bf16 %v307, %v306
  %v360 = vpack.c.bf16 %v309, %v308
  %v361 = vpack.c.bf16 %v311, %v310
  %v362 = vpack.c.bf16 %v313, %v312
  %v363 = vpack.c.bf16 %v315, %v314
  %v364 = vpack.c.bf16 %v317, %v316
  %v365 = vpack.c.bf16 %v319, %v318
  %v366 = vpack.c.bf16 %v321, %v320
  %v367 = vpack.c.bf16 %v323, %v322
  %v368 = vpack.c.bf16 %v325, %v324
  %v369 = vpack.c.bf16 %v327, %v326
  %v370 = vpack.c.bf16 %v329, %v328
  %v371 = vpack.c.bf16 %v331, %v330
  %v372 = vpack.c.bf16 %v333, %v332
  %v373 = vpack.c.bf16 %v335, %v334
  %v374 = vpack.c.bf16 %v337, %v336
  %v375 = vpack.c.bf16 %v339, %v338
  %v376 = vpack.c.bf16 %v341, %v340
  %v377 = vpack.c.bf16 %v343, %v342
  %v378 = vpack.c.bf16 %v345, %v344
  %v379 = vpack.c.bf16 %v347, %v346
  %v380 = vld [vmem:[%s1] sm:$0xf]
  %v381 = vld [vmem:[%s1 + $0x4] sm:$0xf]
  %v382 = vld [vmem:[%s1 + $0x8] sm:$0xf]
  %v383 = vld [vmem:[%s1 + $0xc] sm:$0xf]
  %v384 = vld [vmem:[%s1 + $0x10] sm:$0xf]
  %v385 = vld [vmem:[%s1 + $0x14] sm:$0xf]
  %v386 = vld [vmem:[%s1 + $0x18] sm:$0xf]
  %v387 = vld [vmem:[%s1 + $0x1c] sm:$0xf]
  %v388 = vld [vmem:[%s1 + $0x20] sm:$0xf]
  %v389 = vld [vmem:[%s1 + $0x24] sm:$0xf]
  %v390 = vld [vmem:[%s1 + $0x28] sm:$0xf]
  %v391 = vld [vmem:[%s1 + $0x2c] sm:$0xf]
  %v392 = vld [vmem:[%s1 + $0x30] sm:$0xf]
  %v393 = vld [vmem:[%s1 + $0x34] sm:$0xf]
  %v394 = vld [vmem:[%s1 + $0x38] sm:$0xf]
  %v395 = vld [vmem:[%s1 + $0x3c] sm:$0xf]
  %v396 = vld [vmem:[%s4] sm:$0x1]
  %v398 = vperm.slane %v396, 0
  %v416 = vunpack.c.l.b16 %v380
  %v417 = vunpack.c.l.b16 %v381
  %v418 = vunpack.c.l.b16 %v382
  %v419 = vunpack.c.l.b16 %v383
  %v420 = vunpack.c.l.b16 %v384
  %v421 = vunpack.c.l.b16 %v385
  %v422 = vunpack.c.l.b16 %v386
  %v423 = vunpack.c.l.b16 %v387
  %v424 = vunpack.c.l.b16 %v388
  %v425 = vunpack.c.l.b16 %v389
  %v426 = vunpack.c.l.b16 %v390
  %v427 = vunpack.c.l.b16 %v391
  %v428 = vunpack.c.l.b16 %v392
  %v429 = vunpack.c.l.b16 %v393
  %v430 = vunpack.c.l.b16 %v394
  %v431 = vunpack.c.l.b16 %v395
  %v432 = vpack.c.b16 %v417, %v416
  %v433 = vpack.c.b16 %v419, %v418
  %v434 = vpack.c.b16 %v421, %v420
  %v435 = vpack.c.b16 %v423, %v422
  %v436 = vpack.c.b16 %v425, %v424
  %v437 = vpack.c.b16 %v427, %v426
  %v438 = vpack.c.b16 %v429, %v428
  %v439 = vpack.c.b16 %v431, %v430
  %448 = vmatpush.bf16.msra.mxu0 %v439
  %449 = vmatpush.bf16.msra.mxu0 %v438
  %450 = vmatpush.bf16.msra.mxu0 %v437
  %451 = vmatpush.bf16.msra.mxu0 %v436
  %452 = vmatpush.bf16.msra.mxu0 %v435
  %453 = vmatpush.bf16.msra.mxu0 %v434
  %454 = vmatpush.bf16.msra.mxu0 %v433
  %455 = vmatpush.bf16.msra.mxu0 %v432
  %456 = vmatmul.bf16.gmra.mxu0 %v348
  %v457 = vpop.f32.mrf.mxu0
  %v458 = vadd.f32 %v398, %v457
  %v459 = vpop.f32.mrf.mxu0
  %v460 = vadd.f32 %v398, %v459
  %461 = vmatmul.bf16.gmra.mxu0 %v349
  %v462 = vpop.f32.mrf.mxu0
  %v463 = vadd.f32 %v398, %v462
  %v464 = vpop.f32.mrf.mxu0
  %v465 = vadd.f32 %v398, %v464
  %466 = vmatmul.bf16.gmra.mxu0 %v350
  %v467 = vpop.f32.mrf.mxu0
  %v468 = vadd.f32 %v398, %v467
  %v469 = vpop.f32.mrf.mxu0
  %v470 = vadd.f32 %v398, %v469
  %471 = vmatmul.bf16.gmra.mxu0 %v351
  %v472 = vpop.f32.mrf.mxu0
  %v473 = vadd.f32 %v398, %v472
  %v474 = vpop.f32.mrf.mxu0
  %v475 = vadd.f32 %v398, %v474
  %476 = vmatmul.bf16.gmra.mxu0 %v352
  %v477 = vpop.f32.mrf.mxu0
  %v478 = vadd.f32 %v398, %v477
  %v479 = vpop.f32.mrf.mxu0
  %v480 = vadd.f32 %v398, %v479
  %481 = vmatmul.bf16.gmra.mxu0 %v353
  %v482 = vpop.f32.mrf.mxu0
  %v483 = vadd.f32 %v398, %v482
  %v484 = vpop.f32.mrf.mxu0
  %v485 = vadd.f32 %v398, %v484
  %486 = vmatmul.bf16.gmra.mxu0 %v354
  %v487 = vpop.f32.mrf.mxu0
  %v488 = vadd.f32 %v398, %v487
  %v489 = vpop.f32.mrf.mxu0
  %v490 = vadd.f32 %v398, %v489
  %491 = vmatmul.bf16.gmra.mxu0 %v355
  %v492 = vpop.f32.mrf.mxu0
  %v493 = vadd.f32 %v398, %v492
  %v494 = vpop.f32.mrf.mxu0
  %v495 = vadd.f32 %v398, %v494
  %496 = vmatmul.bf16.gmra.mxu0 %v356
  %v497 = vpop.f32.mrf.mxu0
  %v498 = vadd.f32 %v398, %v497
  %v499 = vpop.f32.mrf.mxu0
  %v500 = vadd.f32 %v398, %v499
  %501 = vmatmul.bf16.gmra.mxu0 %v357
  %v502 = vpop.f32.mrf.mxu0
  %v503 = vadd.f32 %v398, %v502
  %v504 = vpop.f32.mrf.mxu0
  %v505 = vadd.f32 %v398, %v504
  %506 = vmatmul.bf16.gmra.mxu0 %v358
  %v507 = vpop.f32.mrf.mxu0
  %v508 = vadd.f32 %v398, %v507
  %v509 = vpop.f32.mrf.mxu0
  %v510 = vadd.f32 %v398, %v509
  %511 = vmatmul.bf16.gmra.mxu0 %v359
  %v512 = vpop.f32.mrf.mxu0
  %v513 = vadd.f32 %v398, %v512
  %v514 = vpop.f32.mrf.mxu0
  %v515 = vadd.f32 %v398, %v514
  %516 = vmatmul.bf16.gmra.mxu0 %v360
  %v517 = vpop.f32.mrf.mxu0
  %v518 = vadd.f32 %v398, %v517
  %v519 = vpop.f32.mrf.mxu0
  %v520 = vadd.f32 %v398, %v519
  %521 = vmatmul.bf16.gmra.mxu0 %v361
  %v522 = vpop.f32.mrf.mxu0
  %v523 = vadd.f32 %v398, %v522
  %v524 = vpop.f32.mrf.mxu0
  %v525 = vadd.f32 %v398, %v524
  %526 = vmatmul.bf16.gmra.mxu0 %v362
  %v527 = vpop.f32.mrf.mxu0
  %v528 = vadd.f32 %v398, %v527
  %v529 = vpop.f32.mrf.mxu0
  %v530 = vadd.f32 %v398, %v529
  %531 = vmatmul.bf16.gmra.mxu0 %v363
  %v532 = vpop.f32.mrf.mxu0
  %v533 = vadd.f32 %v398, %v532
  %v534 = vpop.f32.mrf.mxu0
  %v535 = vadd.f32 %v398, %v534
  %536 = vmatmul.bf16.gmra.mxu0 %v364
  %v537 = vpop.f32.mrf.mxu0
  %v538 = vadd.f32 %v398, %v537
  %v539 = vpop.f32.mrf.mxu0
  %v540 = vadd.f32 %v398, %v539
  %541 = vmatmul.bf16.gmra.mxu0 %v365
  %v542 = vpop.f32.mrf.mxu0
  %v543 = vadd.f32 %v398, %v542
  %v544 = vpop.f32.mrf.mxu0
  %v545 = vadd.f32 %v398, %v544
  %546 = vmatmul.bf16.gmra.mxu0 %v366
  %v547 = vpop.f32.mrf.mxu0
  %v548 = vadd.f32 %v398, %v547
  %v549 = vpop.f32.mrf.mxu0
  %v550 = vadd.f32 %v398, %v549
  %551 = vmatmul.bf16.gmra.mxu0 %v367
  %v552 = vpop.f32.mrf.mxu0
  %v553 = vadd.f32 %v398, %v552
  %v554 = vpop.f32.mrf.mxu0
  %v555 = vadd.f32 %v398, %v554
  %556 = vmatmul.bf16.gmra.mxu0 %v368
  %v557 = vpop.f32.mrf.mxu0
  %v558 = vadd.f32 %v398, %v557
  %v559 = vpop.f32.mrf.mxu0
  %v560 = vadd.f32 %v398, %v559
  %561 = vmatmul.bf16.gmra.mxu0 %v369
  %v562 = vpop.f32.mrf.mxu0
  %v563 = vadd.f32 %v398, %v562
  %v564 = vpop.f32.mrf.mxu0
  %v565 = vadd.f32 %v398, %v564
  %566 = vmatmul.bf16.gmra.mxu0 %v370
  %v567 = vpop.f32.mrf.mxu0
  %v568 = vadd.f32 %v398, %v567
  %v569 = vpop.f32.mrf.mxu0
  %v570 = vadd.f32 %v398, %v569
  %571 = vmatmul.bf16.gmra.mxu0 %v371
  %v572 = vpop.f32.mrf.mxu0
  %v573 = vadd.f32 %v398, %v572
  %v574 = vpop.f32.mrf.mxu0
  %v575 = vadd.f32 %v398, %v574
  %576 = vmatmul.bf16.gmra.mxu0 %v372
  %v577 = vpop.f32.mrf.mxu0
  %v578 = vadd.f32 %v398, %v577
  %v579 = vpop.f32.mrf.mxu0
  %v580 = vadd.f32 %v398, %v579
  %581 = vmatmul.bf16.gmra.mxu0 %v373
  %v582 = vpop.f32.mrf.mxu0
  %v583 = vadd.f32 %v398, %v582
  %v584 = vpop.f32.mrf.mxu0
  %v585 = vadd.f32 %v398, %v584
  %586 = vmatmul.bf16.gmra.mxu0 %v374
  %v587 = vpop.f32.mrf.mxu0
  %v588 = vadd.f32 %v398, %v587
  %v589 = vpop.f32.mrf.mxu0
  %v590 = vadd.f32 %v398, %v589
  %591 = vmatmul.bf16.gmra.mxu0 %v375
  %v592 = vpop.f32.mrf.mxu0
  %v593 = vadd.f32 %v398, %v592
  %v594 = vpop.f32.mrf.mxu0
  %v595 = vadd.f32 %v398, %v594
  %596 = vmatmul.bf16.gmra.mxu0 %v376
  %v597 = vpop.f32.mrf.mxu0
  %v598 = vadd.f32 %v398, %v597
  %v599 = vpop.f32.mrf.mxu0
  %v600 = vadd.f32 %v398, %v599
  %601 = vmatmul.bf16.gmra.mxu0 %v377
  %v602 = vpop.f32.mrf.mxu0
  %v603 = vadd.f32 %v398, %v602
  %v604 = vpop.f32.mrf.mxu0
  %v605 = vadd.f32 %v398, %v604
  %606 = vmatmul.bf16.gmra.mxu0 %v378
  %v607 = vpop.f32.mrf.mxu0
  %v608 = vadd.f32 %v398, %v607
  %v609 = vpop.f32.mrf.mxu0
  %v610 = vadd.f32 %v398, %v609
  %611 = vmatmul.bf16.gmra.mxu0 %v379
  %v612 = vpop.f32.mrf.mxu0
  %v613 = vadd.f32 %v398, %v612
  %v614 = vpop.f32.mrf.mxu0
  %v615 = vadd.f32 %v398, %v614
  %616 = vdwg.mxu0
  %v617 = vpack.c.bf16 %v458, %v458
  %v618 = vpack.c.bf16 %v460, %v460
  %v619 = vpack.c.bf16 %v463, %v463
  %v620 = vpack.c.bf16 %v465, %v465
  %v621 = vpack.c.bf16 %v468, %v468
  %v622 = vpack.c.bf16 %v470, %v470
  %v623 = vpack.c.bf16 %v473, %v473
  %v624 = vpack.c.bf16 %v475, %v475
  %v625 = vpack.c.bf16 %v478, %v478
  %v626 = vpack.c.bf16 %v480, %v480
  %v627 = vpack.c.bf16 %v483, %v483
  %v628 = vpack.c.bf16 %v485, %v485
  %v629 = vpack.c.bf16 %v488, %v488
  %v630 = vpack.c.bf16 %v490, %v490
  %v631 = vpack.c.bf16 %v493, %v493
  %v632 = vpack.c.bf16 %v495, %v495
  %v633 = vpack.c.bf16 %v498, %v498
  %v634 = vpack.c.bf16 %v500, %v500
  %v635 = vpack.c.bf16 %v503, %v503
  %v636 = vpack.c.bf16 %v505, %v505
  %v637 = vpack.c.bf16 %v508, %v508
  %v638 = vpack.c.bf16 %v510, %v510
  %v639 = vpack.c.bf16 %v513, %v513
  %v640 = vpack.c.bf16 %v515, %v515
  %v641 = vpack.c.bf16 %v518, %v518
  %v642 = vpack.c.bf16 %v520, %v520
  %v643 = vpack.c.bf16 %v523, %v523
  %v644 = vpack.c.bf16 %v525, %v525
  %v645 = vpack.c.bf16 %v528, %v528
  %v646 = vpack.c.bf16 %v530, %v530
  %v647 = vpack.c.bf16 %v533, %v533
  %v648 = vpack.c.bf16 %v535, %v535
  %v649 = vpack.c.bf16 %v538, %v538
  %v650 = vpack.c.bf16 %v540, %v540
  %v651 = vpack.c.bf16 %v543, %v543
  %v652 = vpack.c.bf16 %v545, %v545
  %v653 = vpack.c.bf16 %v548, %v548
  %v654 = vpack.c.bf16 %v550, %v550
  %v655 = vpack.c.bf16 %v553, %v553
  %v656 = vpack.c.bf16 %v555, %v555
  %v657 = vpack.c.bf16 %v558, %v558
  %v658 = vpack.c.bf16 %v560, %v560
  %v659 = vpack.c.bf16 %v563, %v563
  %v660 = vpack.c.bf16 %v565, %v565
  %v661 = vpack.c.bf16 %v568, %v568
  %v662 = vpack.c.bf16 %v570, %v570
  %v663 = vpack.c.bf16 %v573, %v573
  %v664 = vpack.c.bf16 %v575, %v575
  %v665 = vpack.c.bf16 %v578, %v578
  %v666 = vpack.c.bf16 %v580, %v580
  %v667 = vpack.c.bf16 %v583, %v583
  %v668 = vpack.c.bf16 %v585, %v585
  %v669 = vpack.c.bf16 %v588, %v588
  %v670 = vpack.c.bf16 %v590, %v590
  %v671 = vpack.c.bf16 %v593, %v593
  %v672 = vpack.c.bf16 %v595, %v595
  %v673 = vpack.c.bf16 %v598, %v598
  %v674 = vpack.c.bf16 %v600, %v600
  %v675 = vpack.c.bf16 %v603, %v603
  %v676 = vpack.c.bf16 %v605, %v605
  %v677 = vpack.c.bf16 %v608, %v608
  %v678 = vpack.c.bf16 %v610, %v610
  %v679 = vpack.c.bf16 %v613, %v613
  %v680 = vpack.c.bf16 %v615, %v615
  %vm681 = vcmask 257024
  %682 = vst.msk [vmem:[%s5] sm:$0xf] %vm681, %v617
  %683 = vst.msk [vmem:[%s5 + $0x4] sm:$0xf] %vm681, %v618
  %684 = vst.msk [vmem:[%s5 + $0x8] sm:$0xf] %vm681, %v619
  %685 = vst.msk [vmem:[%s5 + $0xc] sm:$0xf] %vm681, %v620
  %686 = vst.msk [vmem:[%s5 + $0x10] sm:$0xf] %vm681, %v621
  %687 = vst.msk [vmem:[%s5 + $0x14] sm:$0xf] %vm681, %v622
  %688 = vst.msk [vmem:[%s5 + $0x18] sm:$0xf] %vm681, %v623
  %689 = vst.msk [vmem:[%s5 + $0x1c] sm:$0xf] %vm681, %v624
  %690 = vst.msk [vmem:[%s5 + $0x20] sm:$0xf] %vm681, %v625
  %691 = vst.msk [vmem:[%s5 + $0x24] sm:$0xf] %vm681, %v626
  %692 = vst.msk [vmem:[%s5 + $0x28] sm:$0xf] %vm681, %v627
  %693 = vst.msk [vmem:[%s5 + $0x2c] sm:$0xf] %vm681, %v628
  %694 = vst.msk [vmem:[%s5 + $0x30] sm:$0xf] %vm681, %v629
  %695 = vst.msk [vmem:[%s5 + $0x34] sm:$0xf] %vm681, %v630
  %696 = vst.msk [vmem:[%s5 + $0x38] sm:$0xf] %vm681, %v631
  %697 = vst.msk [vmem:[%s5 + $0x3c] sm:$0xf] %vm681, %v632
  %698 = vst.msk [vmem:[%s5 + $0x40] sm:$0xf] %vm681, %v633
  %699 = vst.msk [vmem:[%s5 + $0x44] sm:$0xf] %vm681, %v634
  %700 = vst.msk [vmem:[%s5 + $0x48] sm:$0xf] %vm681, %v635
  %701 = vst.msk [vmem:[%s5 + $0x4c] sm:$0xf] %vm681, %v636
  %702 = vst.msk [vmem:[%s5 + $0x50] sm:$0xf] %vm681, %v637
  %703 = vst.msk [vmem:[%s5 + $0x54] sm:$0xf] %vm681, %v638
  %704 = vst.msk [vmem:[%s5 + $0x58] sm:$0xf] %vm681, %v639
  %705 = vst.msk [vmem:[%s5 + $0x5c] sm:$0xf] %vm681, %v640
  %706 = vst.msk [vmem:[%s5 + $0x60] sm:$0xf] %vm681, %v641
  %707 = vst.msk [vmem:[%s5 + $0x64] sm:$0xf] %vm681, %v642
  %708 = vst.msk [vmem:[%s5 + $0x68] sm:$0xf] %vm681, %v643
  %709 = vst.msk [vmem:[%s5 + $0x6c] sm:$0xf] %vm681, %v644
  %710 = vst.msk [vmem:[%s5 + $0x70] sm:$0xf] %vm681, %v645
  %711 = vst.msk [vmem:[%s5 + $0x74] sm:$0xf] %vm681, %v646
  %712 = vst.msk [vmem:[%s5 + $0x78] sm:$0xf] %vm681, %v647
  %713 = vst.msk [vmem:[%s5 + $0x7c] sm:$0xf] %vm681, %v648
  %714 = vst.msk [vmem:[%s5 + $0x80] sm:$0xf] %vm681, %v649
  %715 = vst.msk [vmem:[%s5 + $0x84] sm:$0xf] %vm681, %v650
  %716 = vst.msk [vmem:[%s5 + $0x88] sm:$0xf] %vm681, %v651
  %717 = vst.msk [vmem:[%s5 + $0x8c] sm:$0xf] %vm681, %v652
  %718 = vst.msk [vmem:[%s5 + $0x90] sm:$0xf] %vm681, %v653
  %719 = vst.msk [vmem:[%s5 + $0x94] sm:$0xf] %vm681, %v654
  %720 = vst.msk [vmem:[%s5 + $0x98] sm:$0xf] %vm681, %v655
  %721 = vst.msk [vmem:[%s5 + $0x9c] sm:$0xf] %vm681, %v656
  %722 = vst.msk [vmem:[%s5 + $0xa0] sm:$0xf] %vm681, %v657
  %723 = vst.msk [vmem:[%s5 + $0xa4] sm:$0xf] %vm681, %v658
  %724 = vst.msk [vmem:[%s5 + $0xa8] sm:$0xf] %vm681, %v659
  %725 = vst.msk [vmem:[%s5 + $0xac] sm:$0xf] %vm681, %v660
  %726 = vst.msk [vmem:[%s5 + $0xb0] sm:$0xf] %vm681, %v661
  %727 = vst.msk [vmem:[%s5 + $0xb4] sm:$0xf] %vm681, %v662
  %728 = vst.msk [vmem:[%s5 + $0xb8] sm:$0xf] %vm681, %v663
  %729 = vst.msk [vmem:[%s5 + $0xbc] sm:$0xf] %vm681, %v664
  %730 = vst.msk [vmem:[%s5 + $0xc0] sm:$0xf] %vm681, %v665
  %731 = vst.msk [vmem:[%s5 + $0xc4] sm:$0xf] %vm681, %v666
  %732 = vst.msk [vmem:[%s5 + $0xc8] sm:$0xf] %vm681, %v667
  %733 = vst.msk [vmem:[%s5 + $0xcc] sm:$0xf] %vm681, %v668
  %734 = vst.msk [vmem:[%s5 + $0xd0] sm:$0xf] %vm681, %v669
  %735 = vst.msk [vmem:[%s5 + $0xd4] sm:$0xf] %vm681, %v670
  %736 = vst.msk [vmem:[%s5 + $0xd8] sm:$0xf] %vm681, %v671
  %737 = vst.msk [vmem:[%s5 + $0xdc] sm:$0xf] %vm681, %v672
  %738 = vst.msk [vmem:[%s5 + $0xe0] sm:$0xf] %vm681, %v673
  %739 = vst.msk [vmem:[%s5 + $0xe4] sm:$0xf] %vm681, %v674
  %740 = vst.msk [vmem:[%s5 + $0xe8] sm:$0xf] %vm681, %v675
  %741 = vst.msk [vmem:[%s5 + $0xec] sm:$0xf] %vm681, %v676
  %742 = vst.msk [vmem:[%s5 + $0xf0] sm:$0xf] %vm681, %v677
  %743 = vst.msk [vmem:[%s5 + $0xf4] sm:$0xf] %vm681, %v678
  %744 = vst.msk [vmem:[%s5 + $0xf8] sm:$0xf] %vm681, %v679
  %745 = vst.msk [vmem:[%s5 + $0xfc] sm:$0xf] %vm681, %v680
  // Predicated region
  $region22: #{point_transformer_layer.10} parent=0 // pred_check
    _
  $region23: #{point_transformer_layer.10} parent=0 // pred_check_branch
    %747 = sbr.rel (0) target = $region25
  $region24: #{point_transformer_layer.10} parent=0 // pred_region
    _
  $region25: #{point_transformer_layer.10} parent=0 // pred_fallthru
    _
  // Predicated region
  $region26: #{point_transformer_layer.10} parent=0 // pred_check
    _
  $region27: #{point_transformer_layer.10} parent=0 // pred_check_branch
    %749 = sbr.rel (0) target = $region29
  $region28: #{point_transformer_layer.10} parent=0 // pred_region
    _
  $region29: #{point_transformer_layer.10} parent=0 // pred_fallthru
    _

// kernel: point_transformer_layer.9
$region0: #{point_transformer_layer.9}
  #allocation0 [shape = 'u32[]', space=smem, size = 0x4, offset = 0x4, fixed_abs, tag = 'smem constant byte address 0x4 - core index']
  #allocation1 [shape = 'u32[72,128]{1,0:T(1,128)}', space=vmem, size = 0x9000, scoped, tag = 'internal scratch']
  %s0 = inlined_call_operand.vmem [shape: bf16[512,32], index: 0, kind: input, shape index: {}]
  %s1 = inlined_call_operand.vmem [shape: bf16[512,32], index: 1, kind: input, shape index: {}]
  %s2 = inlined_call_operand.vmem [shape: bf16[32,128], index: 2, kind: input, shape index: {}]
  %s3 = inlined_call_operand.vmem [shape: f32[1,32], index: 3, kind: input, shape index: {}]
  %s4 = inlined_call_operand.vmem [shape: f32[1,32], index: 4, kind: input, shape index: {}]
  %s5 = inlined_call_operand.vmem [shape: f32[1,128], index: 5, kind: input, shape index: {}]
  %s6 = inlined_call_operand.vmem [shape: bf16[512,128], index: 6, kind: output, shape index: {0}]
  %s7 = inlined_call_operand.vmem [shape: f32[8,128], index: 7, kind: output, shape index: {1}]
  %8 = xla_tuple %s6, %s7
  %s9 = sld [smem:[#allocation0]]
  $region42: #{point_transformer_layer.9} parent=0
    _
  %s11 = ssub.s32 1, %s9
  %s12 = scalar_select 0, %s11, %s9
  // Predicated region
  $region2: #{point_transformer_layer.9} parent=0 // pred_check
    _
  $region3: #{point_transformer_layer.9} parent=0 // pred_check_branch
    %14 = sbr.rel (0) target = $region5
  $region4: #{point_transformer_layer.9} parent=0 // pred_region
    _
  $region5: #{point_transformer_layer.9} parent=0 // pred_fallthru
    _
  // Predicated region
  $region6: #{point_transformer_layer.9} parent=0 // pred_check
    _
  $region7: #{point_transformer_layer.9} parent=0 // pred_check_branch
    %16 = sbr.rel (0) target = $region9
  $region8: #{point_transformer_layer.9} parent=0 // pred_region
    _
  $region9: #{point_transformer_layer.9} parent=0 // pred_fallthru
    _
  // Predicated region
  $region10: #{point_transformer_layer.9} parent=0 // pred_check
    _
  $region11: #{point_transformer_layer.9} parent=0 // pred_check_branch
    %18 = sbr.rel (0) target = $region13
  $region12: #{point_transformer_layer.9} parent=0 // pred_region
    _
  $region13: #{point_transformer_layer.9} parent=0 // pred_fallthru
    _
  // Predicated region
  $region14: #{point_transformer_layer.9} parent=0 // pred_check
    _
  $region15: #{point_transformer_layer.9} parent=0 // pred_check_branch
    %20 = sbr.rel (0) target = $region17
  $region16: #{point_transformer_layer.9} parent=0 // pred_region
    _
  $region17: #{point_transformer_layer.9} parent=0 // pred_fallthru
    _
  // Predicated region
  $region18: #{point_transformer_layer.9} parent=0 // pred_check
    _
  $region19: #{point_transformer_layer.9} parent=0 // pred_check_branch
    %22 = sbr.rel (0) target = $region21
  $region20: #{point_transformer_layer.9} parent=0 // pred_region
    _
  $region21: #{point_transformer_layer.9} parent=0 // pred_fallthru
    _
  // Predicated region
  $region22: #{point_transformer_layer.9} parent=0 // pred_check
    _
  $region23: #{point_transformer_layer.9} parent=0 // pred_check_branch
    %24 = sbr.rel (0) target = $region25
  $region24: #{point_transformer_layer.9} parent=0 // pred_region
    _
  $region25: #{point_transformer_layer.9} parent=0 // pred_fallthru
    _
  %v26 = vld [vmem:[%s0] sm:$0xf]
  %v27 = vld [vmem:[%s0 + $0x4] sm:$0xf]
  %v28 = vld [vmem:[%s0 + $0x8] sm:$0xf]
  %v29 = vld [vmem:[%s0 + $0xc] sm:$0xf]
  %v30 = vld [vmem:[%s0 + $0x10] sm:$0xf]
  %v31 = vld [vmem:[%s0 + $0x14] sm:$0xf]
  %v32 = vld [vmem:[%s0 + $0x18] sm:$0xf]
  %v33 = vld [vmem:[%s0 + $0x1c] sm:$0xf]
  %v34 = vld [vmem:[%s0 + $0x20] sm:$0xf]
  %v35 = vld [vmem:[%s0 + $0x24] sm:$0xf]
  %v36 = vld [vmem:[%s0 + $0x28] sm:$0xf]
  %v37 = vld [vmem:[%s0 + $0x2c] sm:$0xf]
  %v38 = vld [vmem:[%s0 + $0x30] sm:$0xf]
  %v39 = vld [vmem:[%s0 + $0x34] sm:$0xf]
  %v40 = vld [vmem:[%s0 + $0x38] sm:$0xf]
  %v41 = vld [vmem:[%s0 + $0x3c] sm:$0xf]
  %v42 = vld [vmem:[%s0 + $0x40] sm:$0xf]
  %v43 = vld [vmem:[%s0 + $0x44] sm:$0xf]
  %v44 = vld [vmem:[%s0 + $0x48] sm:$0xf]
  %v45 = vld [vmem:[%s0 + $0x4c] sm:$0xf]
  %v46 = vld [vmem:[%s0 + $0x50] sm:$0xf]
  %v47 = vld [vmem:[%s0 + $0x54] sm:$0xf]
  %v48 = vld [vmem:[%s0 + $0x58] sm:$0xf]
  %v49 = vld [vmem:[%s0 + $0x5c] sm:$0xf]
  %v50 = vld [vmem:[%s0 + $0x60] sm:$0xf]
  %v51 = vld [vmem:[%s0 + $0x64] sm:$0xf]
  %v52 = vld [vmem:[%s0 + $0x68] sm:$0xf]
  %v53 = vld [vmem:[%s0 + $0x6c] sm:$0xf]
  %v54 = vld [vmem:[%s0 + $0x70] sm:$0xf]
  %v55 = vld [vmem:[%s0 + $0x74] sm:$0xf]
  %v56 = vld [vmem:[%s0 + $0x78] sm:$0xf]
  %v57 = vld [vmem:[%s0 + $0x7c] sm:$0xf]
  %v58 = vld [vmem:[%s0 + $0x80] sm:$0xf]
  %v59 = vld [vmem:[%s0 + $0x84] sm:$0xf]
  %v60 = vld [vmem:[%s0 + $0x88] sm:$0xf]
  %v61 = vld [vmem:[%s0 + $0x8c] sm:$0xf]
  %v62 = vld [vmem:[%s0 + $0x90] sm:$0xf]
  %v63 = vld [vmem:[%s0 + $0x94] sm:$0xf]
  %v64 = vld [vmem:[%s0 + $0x98] sm:$0xf]
  %v65 = vld [vmem:[%s0 + $0x9c] sm:$0xf]
  %v66 = vld [vmem:[%s0 + $0xa0] sm:$0xf]
  %v67 = vld [vmem:[%s0 + $0xa4] sm:$0xf]
  %v68 = vld [vmem:[%s0 + $0xa8] sm:$0xf]
  %v69 = vld [vmem:[%s0 + $0xac] sm:$0xf]
  %v70 = vld [vmem:[%s0 + $0xb0] sm:$0xf]
  %v71 = vld [vmem:[%s0 + $0xb4] sm:$0xf]
  %v72 = vld [vmem:[%s0 + $0xb8] sm:$0xf]
  %v73 = vld [vmem:[%s0 + $0xbc] sm:$0xf]
  %v74 = vld [vmem:[%s0 + $0xc0] sm:$0xf]
  %v75 = vld [vmem:[%s0 + $0xc4] sm:$0xf]
  %v76 = vld [vmem:[%s0 + $0xc8] sm:$0xf]
  %v77 = vld [vmem:[%s0 + $0xcc] sm:$0xf]
  %v78 = vld [vmem:[%s0 + $0xd0] sm:$0xf]
  %v79 = vld [vmem:[%s0 + $0xd4] sm:$0xf]
  %v80 = vld [vmem:[%s0 + $0xd8] sm:$0xf]
  %v81 = vld [vmem:[%s0 + $0xdc] sm:$0xf]
  %v82 = vld [vmem:[%s0 + $0xe0] sm:$0xf]
  %v83 = vld [vmem:[%s0 + $0xe4] sm:$0xf]
  %v84 = vld [vmem:[%s0 + $0xe8] sm:$0xf]
  %v85 = vld [vmem:[%s0 + $0xec] sm:$0xf]
  %v86 = vld [vmem:[%s0 + $0xf0] sm:$0xf]
  %v87 = vld [vmem:[%s0 + $0xf4] sm:$0xf]
  %v88 = vld [vmem:[%s0 + $0xf8] sm:$0xf]
  %v89 = vld [vmem:[%s0 + $0xfc] sm:$0xf]
  %v90 = vunpack.c.l.bf16 %v26
  %v91 = vunpack.c.l.bf16 %v27
  %v92 = vunpack.c.l.bf16 %v28
  %v93 = vunpack.c.l.bf16 %v29
  %v94 = vunpack.c.l.bf16 %v30
  %v95 = vunpack.c.l.bf16 %v31
  %v96 = vunpack.c.l.bf16 %v32
  %v97 = vunpack.c.l.bf16 %v33
  %v98 = vunpack.c.l.bf16 %v34
  %v99 = vunpack.c.l.bf16 %v35
  %v100 = vunpack.c.l.bf16 %v36
  %v101 = vunpack.c.l.bf16 %v37
  %v102 = vunpack.c.l.bf16 %v38
  %v103 = vunpack.c.l.bf16 %v39
  %v104 = vunpack.c.l.bf16 %v40
  %v105 = vunpack.c.l.bf16 %v41
  %v106 = vunpack.c.l.bf16 %v42
  %v107 = vunpack.c.l.bf16 %v43
  %v108 = vunpack.c.l.bf16 %v44
  %v109 = vunpack.c.l.bf16 %v45
  %v110 = vunpack.c.l.bf16 %v46
  %v111 = vunpack.c.l.bf16 %v47
  %v112 = vunpack.c.l.bf16 %v48
  %v113 = vunpack.c.l.bf16 %v49
  %v114 = vunpack.c.l.bf16 %v50
  %v115 = vunpack.c.l.bf16 %v51
  %v116 = vunpack.c.l.bf16 %v52
  %v117 = vunpack.c.l.bf16 %v53
  %v118 = vunpack.c.l.bf16 %v54
  %v119 = vunpack.c.l.bf16 %v55
  %v120 = vunpack.c.l.bf16 %v56
  %v121 = vunpack.c.l.bf16 %v57
  %v122 = vunpack.c.l.bf16 %v58
  %v123 = vunpack.c.l.bf16 %v59
  %v124 = vunpack.c.l.bf16 %v60
  %v125 = vunpack.c.l.bf16 %v61
  %v126 = vunpack.c.l.bf16 %v62
  %v127 = vunpack.c.l.bf16 %v63
  %v128 = vunpack.c.l.bf16 %v64
  %v129 = vunpack.c.l.bf16 %v65
  %v130 = vunpack.c.l.bf16 %v66
  %v131 = vunpack.c.l.bf16 %v67
  %v132 = vunpack.c.l.bf16 %v68
  %v133 = vunpack.c.l.bf16 %v69
  %v134 = vunpack.c.l.bf16 %v70
  %v135 = vunpack.c.l.bf16 %v71
  %v136 = vunpack.c.l.bf16 %v72
  %v137 = vunpack.c.l.bf16 %v73
  %v138 = vunpack.c.l.bf16 %v74
  %v139 = vunpack.c.l.bf16 %v75
  %v140 = vunpack.c.l.bf16 %v76
  %v141 = vunpack.c.l.bf16 %v77
  %v142 = vunpack.c.l.bf16 %v78
  %v143 = vunpack.c.l.bf16 %v79
  %v144 = vunpack.c.l.bf16 %v80
  %v145 = vunpack.c.l.bf16 %v81
  %v146 = vunpack.c.l.bf16 %v82
  %v147 = vunpack.c.l.bf16 %v83
  %v148 = vunpack.c.l.bf16 %v84
  %v149 = vunpack.c.l.bf16 %v85
  %v150 = vunpack.c.l.bf16 %v86
  %v151 = vunpack.c.l.bf16 %v87
  %v152 = vunpack.c.l.bf16 %v88
  %v153 = vunpack.c.l.bf16 %v89
  %v154 = vld [vmem:[%s1] sm:$0xf]
  %v155 = vld [vmem:[%s1 + $0x4] sm:$0xf]
  %v156 = vld [vmem:[%s1 + $0x8] sm:$0xf]
  %v157 = vld [vmem:[%s1 + $0xc] sm:$0xf]
  %v158 = vld [vmem:[%s1 + $0x10] sm:$0xf]
  %v159 = vld [vmem:[%s1 + $0x14] sm:$0xf]
  %v160 = vld [vmem:[%s1 + $0x18] sm:$0xf]
  %v161 = vld [vmem:[%s1 + $0x1c] sm:$0xf]
  %v162 = vld [vmem:[%s1 + $0x20] sm:$0xf]
  %v163 = vld [vmem:[%s1 + $0x24] sm:$0xf]
  %v164 = vld [vmem:[%s1 + $0x28] sm:$0xf]
  %v165 = vld [vmem:[%s1 + $0x2c] sm:$0xf]
  %v166 = vld [vmem:[%s1 + $0x30] sm:$0xf]
  %v167 = vld [vmem:[%s1 + $0x34] sm:$0xf]
  %v168 = vld [vmem:[%s1 + $0x38] sm:$0xf]
  %v169 = vld [vmem:[%s1 + $0x3c] sm:$0xf]
  %v170 = vld [vmem:[%s1 + $0x40] sm:$0xf]
  %v171 = vld [vmem:[%s1 + $0x44] sm:$0xf]
  %v172 = vld [vmem:[%s1 + $0x48] sm:$0xf]
  %v173 = vld [vmem:[%s1 + $0x4c] sm:$0xf]
  %v174 = vld [vmem:[%s1 + $0x50] sm:$0xf]
  %v175 = vld [vmem:[%s1 + $0x54] sm:$0xf]
  %v176 = vld [vmem:[%s1 + $0x58] sm:$0xf]
  %v177 = vld [vmem:[%s1 + $0x5c] sm:$0xf]
  %v178 = vld [vmem:[%s1 + $0x60] sm:$0xf]
  %v179 = vld [vmem:[%s1 + $0x64] sm:$0xf]
  %v180 = vld [vmem:[%s1 + $0x68] sm:$0xf]
  %v181 = vld [vmem:[%s1 + $0x6c] sm:$0xf]
  %v182 = vld [vmem:[%s1 + $0x70] sm:$0xf]
  %v183 = vld [vmem:[%s1 + $0x74] sm:$0xf]
  %v184 = vld [vmem:[%s1 + $0x78] sm:$0xf]
  %v185 = vld [vmem:[%s1 + $0x7c] sm:$0xf]
  %v186 = vld [vmem:[%s1 + $0x80] sm:$0xf]
  %v187 = vld [vmem:[%s1 + $0x84] sm:$0xf]
  %v188 = vld [vmem:[%s1 + $0x88] sm:$0xf]
  %v189 = vld [vmem:[%s1 + $0x8c] sm:$0xf]
  %v190 = vld [vmem:[%s1 + $0x90] sm:$0xf]
  %v191 = vld [vmem:[%s1 + $0x94] sm:$0xf]
  %v192 = vld [vmem:[%s1 + $0x98] sm:$0xf]
  %v193 = vld [vmem:[%s1 + $0x9c] sm:$0xf]
  %v194 = vld [vmem:[%s1 + $0xa0] sm:$0xf]
  %v195 = vld [vmem:[%s1 + $0xa4] sm:$0xf]
  %v196 = vld [vmem:[%s1 + $0xa8] sm:$0xf]
  %v197 = vld [vmem:[%s1 + $0xac] sm:$0xf]
  %v198 = vld [vmem:[%s1 + $0xb0] sm:$0xf]
  %v199 = vld [vmem:[%s1 + $0xb4] sm:$0xf]
  %v200 = vld [vmem:[%s1 + $0xb8] sm:$0xf]
  %v201 = vld [vmem:[%s1 + $0xbc] sm:$0xf]
  %v202 = vld [vmem:[%s1 + $0xc0] sm:$0xf]
  %v203 = vld [vmem:[%s1 + $0xc4] sm:$0xf]
  %v204 = vld [vmem:[%s1 + $0xc8] sm:$0xf]
  %v205 = vld [vmem:[%s1 + $0xcc] sm:$0xf]
  %v206 = vld [vmem:[%s1 + $0xd0] sm:$0xf]
  %v207 = vld [vmem:[%s1 + $0xd4] sm:$0xf]
  %v208 = vld [vmem:[%s1 + $0xd8] sm:$0xf]
  %v209 = vld [vmem:[%s1 + $0xdc] sm:$0xf]
  %v210 = vld [vmem:[%s1 + $0xe0] sm:$0xf]
  %v211 = vld [vmem:[%s1 + $0xe4] sm:$0xf]
  %v212 = vld [vmem:[%s1 + $0xe8] sm:$0xf]
  %v213 = vld [vmem:[%s1 + $0xec] sm:$0xf]
  %v214 = vld [vmem:[%s1 + $0xf0] sm:$0xf]
  %v215 = vld [vmem:[%s1 + $0xf4] sm:$0xf]
  %v216 = vld [vmem:[%s1 + $0xf8] sm:$0xf]
  %v217 = vld [vmem:[%s1 + $0xfc] sm:$0xf]
  %v218 = vunpack.c.l.bf16 %v154
  %v219 = vunpack.c.l.bf16 %v155
  %v220 = vunpack.c.l.bf16 %v156
  %v221 = vunpack.c.l.bf16 %v157
  %v222 = vunpack.c.l.bf16 %v158
  %v223 = vunpack.c.l.bf16 %v159
  %v224 = vunpack.c.l.bf16 %v160
  %v225 = vunpack.c.l.bf16 %v161
  %v226 = vunpack.c.l.bf16 %v162
  %v227 = vunpack.c.l.bf16 %v163
  %v228 = vunpack.c.l.bf16 %v164
  %v229 = vunpack.c.l.bf16 %v165
  %v230 = vunpack.c.l.bf16 %v166
  %v231 = vunpack.c.l.bf16 %v167
  %v232 = vunpack.c.l.bf16 %v168
  %v233 = vunpack.c.l.bf16 %v169
  %v234 = vunpack.c.l.bf16 %v170
  %v235 = vunpack.c.l.bf16 %v171
  %v236 = vunpack.c.l.bf16 %v172
  %v237 = vunpack.c.l.bf16 %v173
  %v238 = vunpack.c.l.bf16 %v174
  %v239 = vunpack.c.l.bf16 %v175
  %v240 = vunpack.c.l.bf16 %v176
  %v241 = vunpack.c.l.bf16 %v177
  %v242 = vunpack.c.l.bf16 %v178
  %v243 = vunpack.c.l.bf16 %v179
  %v244 = vunpack.c.l.bf16 %v180
  %v245 = vunpack.c.l.bf16 %v181
  %v246 = vunpack.c.l.bf16 %v182
  %v247 = vunpack.c.l.bf16 %v183
  %v248 = vunpack.c.l.bf16 %v184
  %v249 = vunpack.c.l.bf16 %v185
  %v250 = vunpack.c.l.bf16 %v186
  %v251 = vunpack.c.l.bf16 %v187
  %v252 = vunpack.c.l.bf16 %v188
  %v253 = vunpack.c.l.bf16 %v189
  %v254 = vunpack.c.l.bf16 %v190
  %v255 = vunpack.c.l.bf16 %v191
  %v256 = vunpack.c.l.bf16 %v192
  %v257 = vunpack.c.l.bf16 %v193
  %v258 = vunpack.c.l.bf16 %v194
  %v259 = vunpack.c.l.bf16 %v195
  %v260 = vunpack.c.l.bf16 %v196
  %v261 = vunpack.c.l.bf16 %v197
  %v262 = vunpack.c.l.bf16 %v198
  %v263 = vunpack.c.l.bf16 %v199
  %v264 = vunpack.c.l.bf16 %v200
  %v265 = vunpack.c.l.bf16 %v201
  %v266 = vunpack.c.l.bf16 %v202
  %v267 = vunpack.c.l.bf16 %v203
  %v268 = vunpack.c.l.bf16 %v204
  %v269 = vunpack.c.l.bf16 %v205
  %v270 = vunpack.c.l.bf16 %v206
  %v271 = vunpack.c.l.bf16 %v207
  %v272 = vunpack.c.l.bf16 %v208
  %v273 = vunpack.c.l.bf16 %v209
  %v274 = vunpack.c.l.bf16 %v210
  %v275 = vunpack.c.l.bf16 %v211
  %v276 = vunpack.c.l.bf16 %v212
  %v277 = vunpack.c.l.bf16 %v213
  %v278 = vunpack.c.l.bf16 %v214
  %v279 = vunpack.c.l.bf16 %v215
  %v280 = vunpack.c.l.bf16 %v216
  %v281 = vunpack.c.l.bf16 %v217
  %v282 = vadd.f32 %v90, %v218
  %v283 = vadd.f32 %v91, %v219
  %v284 = vadd.f32 %v92, %v220
  %v285 = vadd.f32 %v93, %v221
  %v286 = vadd.f32 %v94, %v222
  %v287 = vadd.f32 %v95, %v223
  %v288 = vadd.f32 %v96, %v224
  %v289 = vadd.f32 %v97, %v225
  %v290 = vadd.f32 %v98, %v226
  %v291 = vadd.f32 %v99, %v227
  %v292 = vadd.f32 %v100, %v228
  %v293 = vadd.f32 %v101, %v229
  %v294 = vadd.f32 %v102, %v230
  %v295 = vadd.f32 %v103, %v231
  %v296 = vadd.f32 %v104, %v232
  %v297 = vadd.f32 %v105, %v233
  %v298 = vadd.f32 %v106, %v234
  %v299 = vadd.f32 %v107, %v235
  %v300 = vadd.f32 %v108, %v236
  %v301 = vadd.f32 %v109, %v237
  %v302 = vadd.f32 %v110, %v238
  %v303 = vadd.f32 %v111, %v239
  %v304 = vadd.f32 %v112, %v240
  %v305 = vadd.f32 %v113, %v241
  %v306 = vadd.f32 %v114, %v242
  %v307 = vadd.f32 %v115, %v243
  %v308 = vadd.f32 %v116, %v244
  %v309 = vadd.f32 %v117, %v245
  %v310 = vadd.f32 %v118, %v246
  %v311 = vadd.f32 %v119, %v247
  %v312 = vadd.f32 %v120, %v248
  %v313 = vadd.f32 %v121, %v249
  %v314 = vadd.f32 %v122, %v250
  %v315 = vadd.f32 %v123, %v251
  %v316 = vadd.f32 %v124, %v252
  %v317 = vadd.f32 %v125, %v253
  %v318 = vadd.f32 %v126, %v254
  %v319 = vadd.f32 %v127, %v255
  %v320 = vadd.f32 %v128, %v256
  %v321 = vadd.f32 %v129, %v257
  %v322 = vadd.f32 %v130, %v258
  %v323 = vadd.f32 %v131, %v259
  %v324 = vadd.f32 %v132, %v260
  %v325 = vadd.f32 %v133, %v261
  %v326 = vadd.f32 %v134, %v262
  %v327 = vadd.f32 %v135, %v263
  %v328 = vadd.f32 %v136, %v264
  %v329 = vadd.f32 %v137, %v265
  %v330 = vadd.f32 %v138, %v266
  %v331 = vadd.f32 %v139, %v267
  %v332 = vadd.f32 %v140, %v268
  %v333 = vadd.f32 %v141, %v269
  %v334 = vadd.f32 %v142, %v270
  %v335 = vadd.f32 %v143, %v271
  %v336 = vadd.f32 %v144, %v272
  %v337 = vadd.f32 %v145, %v273
  %v338 = vadd.f32 %v146, %v274
  %v339 = vadd.f32 %v147, %v275
  %v340 = vadd.f32 %v148, %v276
  %v341 = vadd.f32 %v149, %v277
  %v342 = vadd.f32 %v150, %v278
  %v343 = vadd.f32 %v151, %v279
  %v344 = vadd.f32 %v152, %v280
  %v345 = vadd.f32 %v153, %v281
  %v346 = vld [vmem:[%s3] sm:$0x1]
  %v348 = vperm.slane %v346, 0
  %v350 = vmul.f32 %v282, %v348
  %v351 = vmul.f32 %v283, %v348
  %v352 = vmul.f32 %v284, %v348
  %v353 = vmul.f32 %v285, %v348
  %v354 = vmul.f32 %v286, %v348
  %v355 = vmul.f32 %v287, %v348
  %v356 = vmul.f32 %v288, %v348
  %v357 = vmul.f32 %v289, %v348
  %v358 = vmul.f32 %v290, %v348
  %v359 = vmul.f32 %v291, %v348
  %v360 = vmul.f32 %v292, %v348
  %v361 = vmul.f32 %v293, %v348
  %v362 = vmul.f32 %v294, %v348
  %v363 = vmul.f32 %v295, %v348
  %v364 = vmul.f32 %v296, %v348
  %v365 = vmul.f32 %v297, %v348
  %v366 = vmul.f32 %v298, %v348
  %v367 = vmul.f32 %v299, %v348
  %v368 = vmul.f32 %v300, %v348
  %v369 = vmul.f32 %v301, %v348
  %v370 = vmul.f32 %v302, %v348
  %v371 = vmul.f32 %v303, %v348
  %v372 = vmul.f32 %v304, %v348
  %v373 = vmul.f32 %v305, %v348
  %v374 = vmul.f32 %v306, %v348
  %v375 = vmul.f32 %v307, %v348
  %v376 = vmul.f32 %v308, %v348
  %v377 = vmul.f32 %v309, %v348
  %v378 = vmul.f32 %v310, %v348
  %v379 = vmul.f32 %v311, %v348
  %v380 = vmul.f32 %v312, %v348
  %v381 = vmul.f32 %v313, %v348
  %v382 = vmul.f32 %v314, %v348
  %v383 = vmul.f32 %v315, %v348
  %v384 = vmul.f32 %v316, %v348
  %v385 = vmul.f32 %v317, %v348
  %v386 = vmul.f32 %v318, %v348
  %v387 = vmul.f32 %v319, %v348
  %v388 = vmul.f32 %v320, %v348
  %v389 = vmul.f32 %v321, %v348
  %v390 = vmul.f32 %v322, %v348
  %v391 = vmul.f32 %v323, %v348
  %v392 = vmul.f32 %v324, %v348
  %v393 = vmul.f32 %v325, %v348
  %v394 = vmul.f32 %v326, %v348
  %v395 = vmul.f32 %v327, %v348
  %v396 = vmul.f32 %v328, %v348
  %v397 = vmul.f32 %v329, %v348
  %v398 = vmul.f32 %v330, %v348
  %v399 = vmul.f32 %v331, %v348
  %v400 = vmul.f32 %v332, %v348
  %v401 = vmul.f32 %v333, %v348
  %v402 = vmul.f32 %v334, %v348
  %v403 = vmul.f32 %v335, %v348
  %v404 = vmul.f32 %v336, %v348
  %v405 = vmul.f32 %v337, %v348
  %v406 = vmul.f32 %v338, %v348
  %v407 = vmul.f32 %v339, %v348
  %v408 = vmul.f32 %v340, %v348
  %v409 = vmul.f32 %v341, %v348
  %v410 = vmul.f32 %v342, %v348
  %v411 = vmul.f32 %v343, %v348
  %v412 = vmul.f32 %v344, %v348
  %v413 = vmul.f32 %v345, %v348
  %v414 = vld [vmem:[%s4] sm:$0x1]
  %v416 = vperm.slane %v414, 0
  %v418 = vadd.f32 %v350, %v416
  %v419 = vadd.f32 %v351, %v416
  %v420 = vadd.f32 %v352, %v416
  %v421 = vadd.f32 %v353, %v416
  %v422 = vadd.f32 %v354, %v416
  %v423 = vadd.f32 %v355, %v416
  %v424 = vadd.f32 %v356, %v416
  %v425 = vadd.f32 %v357, %v416
  %v426 = vadd.f32 %v358, %v416
  %v427 = vadd.f32 %v359, %v416
  %v428 = vadd.f32 %v360, %v416
  %v429 = vadd.f32 %v361, %v416
  %v430 = vadd.f32 %v362, %v416
  %v431 = vadd.f32 %v363, %v416
  %v432 = vadd.f32 %v364, %v416
  %v433 = vadd.f32 %v365, %v416
  %v434 = vadd.f32 %v366, %v416
  %v435 = vadd.f32 %v367, %v416
  %v436 = vadd.f32 %v368, %v416
  %v437 = vadd.f32 %v369, %v416
  %v438 = vadd.f32 %v370, %v416
  %v439 = vadd.f32 %v371, %v416
  %v440 = vadd.f32 %v372, %v416
  %v441 = vadd.f32 %v373, %v416
  %v442 = vadd.f32 %v374, %v416
  %v443 = vadd.f32 %v375, %v416
  %v444 = vadd.f32 %v376, %v416
  %v445 = vadd.f32 %v377, %v416
  %v446 = vadd.f32 %v378, %v416
  %v447 = vadd.f32 %v379, %v416
  %v448 = vadd.f32 %v380, %v416
  %v449 = vadd.f32 %v381, %v416
  %v450 = vadd.f32 %v382, %v416
  %v451 = vadd.f32 %v383, %v416
  %v452 = vadd.f32 %v384, %v416
  %v453 = vadd.f32 %v385, %v416
  %v454 = vadd.f32 %v386, %v416
  %v455 = vadd.f32 %v387, %v416
  %v456 = vadd.f32 %v388, %v416
  %v457 = vadd.f32 %v389, %v416
  %v458 = vadd.f32 %v390, %v416
  %v459 = vadd.f32 %v391, %v416
  %v460 = vadd.f32 %v392, %v416
  %v461 = vadd.f32 %v393, %v416
  %v462 = vadd.f32 %v394, %v416
  %v463 = vadd.f32 %v395, %v416
  %v464 = vadd.f32 %v396, %v416
  %v465 = vadd.f32 %v397, %v416
  %v466 = vadd.f32 %v398, %v416
  %v467 = vadd.f32 %v399, %v416
  %v468 = vadd.f32 %v400, %v416
  %v469 = vadd.f32 %v401, %v416
  %v470 = vadd.f32 %v402, %v416
  %v471 = vadd.f32 %v403, %v416
  %v472 = vadd.f32 %v404, %v416
  %v473 = vadd.f32 %v405, %v416
  %v474 = vadd.f32 %v406, %v416
  %v475 = vadd.f32 %v407, %v416
  %v476 = vadd.f32 %v408, %v416
  %v477 = vadd.f32 %v409, %v416
  %v478 = vadd.f32 %v410, %v416
  %v479 = vadd.f32 %v411, %v416
  %v480 = vadd.f32 %v412, %v416
  %v481 = vadd.f32 %v413, %v416
  %v482 = vmax.f32 %v418, 0.0
  %v483 = vmax.f32 %v419, 0.0
  %v484 = vmax.f32 %v420, 0.0
  %v485 = vmax.f32 %v421, 0.0
  %v486 = vmax.f32 %v422, 0.0
  %v487 = vmax.f32 %v423, 0.0
  %v488 = vmax.f32 %v424, 0.0
  %v489 = vmax.f32 %v425, 0.0
  %v490 = vmax.f32 %v426, 0.0
  %v491 = vmax.f32 %v427, 0.0
  %v492 = vmax.f32 %v428, 0.0
  %v493 = vmax.f32 %v429, 0.0
  %v494 = vmax.f32 %v430, 0.0
  %v495 = vmax.f32 %v431, 0.0
  %v496 = vmax.f32 %v432, 0.0
  %v497 = vmax.f32 %v433, 0.0
  %v498 = vmax.f32 %v434, 0.0
  %v499 = vmax.f32 %v435, 0.0
  %v500 = vmax.f32 %v436, 0.0
  %v501 = vmax.f32 %v437, 0.0
  %v502 = vmax.f32 %v438, 0.0
  %v503 = vmax.f32 %v439, 0.0
  %v504 = vmax.f32 %v440, 0.0
  %v505 = vmax.f32 %v441, 0.0
  %v506 = vmax.f32 %v442, 0.0
  %v507 = vmax.f32 %v443, 0.0
  %v508 = vmax.f32 %v444, 0.0
  %v509 = vmax.f32 %v445, 0.0
  %v510 = vmax.f32 %v446, 0.0
  %v511 = vmax.f32 %v447, 0.0
  %v512 = vmax.f32 %v448, 0.0
  %v513 = vmax.f32 %v449, 0.0
  %v514 = vmax.f32 %v450, 0.0
  %v515 = vmax.f32 %v451, 0.0
  %v516 = vmax.f32 %v452, 0.0
  %v517 = vmax.f32 %v453, 0.0
  %v518 = vmax.f32 %v454, 0.0
  %v519 = vmax.f32 %v455, 0.0
  %v520 = vmax.f32 %v456, 0.0
  %v521 = vmax.f32 %v457, 0.0
  %v522 = vmax.f32 %v458, 0.0
  %v523 = vmax.f32 %v459, 0.0
  %v524 = vmax.f32 %v460, 0.0
  %v525 = vmax.f32 %v461, 0.0
  %v526 = vmax.f32 %v462, 0.0
  %v527 = vmax.f32 %v463, 0.0
  %v528 = vmax.f32 %v464, 0.0
  %v529 = vmax.f32 %v465, 0.0
  %v530 = vmax.f32 %v466, 0.0
  %v531 = vmax.f32 %v467, 0.0
  %v532 = vmax.f32 %v468, 0.0
  %v533 = vmax.f32 %v469, 0.0
  %v534 = vmax.f32 %v470, 0.0
  %v535 = vmax.f32 %v471, 0.0
  %v536 = vmax.f32 %v472, 0.0
  %v537 = vmax.f32 %v473, 0.0
  %v538 = vmax.f32 %v474, 0.0
  %v539 = vmax.f32 %v475, 0.0
  %v540 = vmax.f32 %v476, 0.0
  %v541 = vmax.f32 %v477, 0.0
  %v542 = vmax.f32 %v478, 0.0
  %v543 = vmax.f32 %v479, 0.0
  %v544 = vmax.f32 %v480, 0.0
  %v545 = vmax.f32 %v481, 0.0
  %v546 = vpack.c.bf16 %v483, %v482
  %v547 = vpack.c.bf16 %v485, %v484
  %v548 = vpack.c.bf16 %v487, %v486
  %v549 = vpack.c.bf16 %v489, %v488
  %v550 = vpack.c.bf16 %v491, %v490
  %v551 = vpack.c.bf16 %v493, %v492
  %v552 = vpack.c.bf16 %v495, %v494
  %v553 = vpack.c.bf16 %v497, %v496
  %v554 = vpack.c.bf16 %v499, %v498
  %v555 = vpack.c.bf16 %v501, %v500
  %v556 = vpack.c.bf16 %v503, %v502
  %v557 = vpack.c.bf16 %v505, %v504
  %v558 = vpack.c.bf16 %v507, %v506
  %v559 = vpack.c.bf16 %v509, %v508
  %v560 = vpack.c.bf16 %v511, %v510
  %v561 = vpack.c.bf16 %v513, %v512
  %v562 = vpack.c.bf16 %v515, %v514
  %v563 = vpack.c.bf16 %v517, %v516
  %v564 = vpack.c.bf16 %v519, %v518
  %v565 = vpack.c.bf16 %v521, %v520
  %v566 = vpack.c.bf16 %v523, %v522
  %v567 = vpack.c.bf16 %v525, %v524
  %v568 = vpack.c.bf16 %v527, %v526
  %v569 = vpack.c.bf16 %v529, %v528
  %v570 = vpack.c.bf16 %v531, %v530
  %v571 = vpack.c.bf16 %v533, %v532
  %v572 = vpack.c.bf16 %v535, %v534
  %v573 = vpack.c.bf16 %v537, %v536
  %v574 = vpack.c.bf16 %v539, %v538
  %v575 = vpack.c.bf16 %v541, %v540
  %v576 = vpack.c.bf16 %v543, %v542
  %v577 = vpack.c.bf16 %v545, %v544
  %v578 = vld [vmem:[%s2] sm:$0xf]
  %v579 = vld [vmem:[%s2 + $0x4] sm:$0xf]
  %v580 = vld [vmem:[%s2 + $0x8] sm:$0xf]
  %v581 = vld [vmem:[%s2 + $0xc] sm:$0xf]
  %v582 = vld [vmem:[%s5] sm:$0x1]
  %v584 = vperm.slane %v582, 0
  %v590 = vunpack.c.l.b16 %v578
  %v591 = vunpack.c.l.b16 %v579
  %v592 = vunpack.c.l.b16 %v580
  %v593 = vunpack.c.l.b16 %v581
  %v594 = vpack.c.b16 %v591, %v590
  %v595 = vpack.c.b16 %v593, %v592
  %vm598 = vcmask 261120
  %v600 = vsel %vm598, %v546, 0
  %v603 = vsel %vm598, %v547, 0
  %v606 = vsel %vm598, %v548, 0
  %v609 = vsel %vm598, %v549, 0
  %v612 = vsel %vm598, %v550, 0
  %v615 = vsel %vm598, %v551, 0
  %v618 = vsel %vm598, %v552, 0
  %v621 = vsel %vm598, %v553, 0
  %v624 = vsel %vm598, %v554, 0
  %v627 = vsel %vm598, %v555, 0
  %v630 = vsel %vm598, %v556, 0
  %v633 = vsel %vm598, %v557, 0
  %v636 = vsel %vm598, %v558, 0
  %v639 = vsel %vm598, %v559, 0
  %v642 = vsel %vm598, %v560, 0
  %v645 = vsel %vm598, %v561, 0
  %v648 = vsel %vm598, %v562, 0
  %v651 = vsel %vm598, %v563, 0
  %v654 = vsel %vm598, %v564, 0
  %v657 = vsel %vm598, %v565, 0
  %v660 = vsel %vm598, %v566, 0
  %v663 = vsel %vm598, %v567, 0
  %v666 = vsel %vm598, %v568, 0
  %v669 = vsel %vm598, %v569, 0
  %v672 = vsel %vm598, %v570, 0
  %v675 = vsel %vm598, %v571, 0
  %v678 = vsel %vm598, %v572, 0
  %v681 = vsel %vm598, %v573, 0
  %v684 = vsel %vm598, %v574, 0
  %v687 = vsel %vm598, %v575, 0
  %v690 = vsel %vm598, %v576, 0
  %v693 = vsel %vm598, %v577, 0
  %695 = vmatpush.bf16.msra.mxu0 0
  %696 = vmatpush.bf16.msra.mxu0 0
  %697 = vmatpush.bf16.msra.mxu0 0
  %698 = vmatpush.bf16.msra.mxu0 0
  %699 = vmatpush.bf16.msra.mxu0 0
  %700 = vmatpush.bf16.msra.mxu0 0
  %701 = vmatpush.bf16.msra.mxu0 %v595
  %702 = vmatpush.bf16.msra.mxu0 %v594
  %703 = vmatmul.bf16.gmra.mxu0 %v600
  %v704 = vpop.f32.mrf.mxu0
  %v705 = vadd.f32 %v584, %v704
  %v706 = vpop.f32.mrf.mxu0
  %v707 = vadd.f32 %v584, %v706
  %708 = vmatmul.bf16.gmra.mxu0 %v603
  %v709 = vpop.f32.mrf.mxu0
  %v710 = vadd.f32 %v584, %v709
  %v711 = vpop.f32.mrf.mxu0
  %v712 = vadd.f32 %v584, %v711
  %713 = vmatmul.bf16.gmra.mxu0 %v606
  %v714 = vpop.f32.mrf.mxu0
  %v715 = vadd.f32 %v584, %v714
  %v716 = vpop.f32.mrf.mxu0
  %v717 = vadd.f32 %v584, %v716
  %718 = vmatmul.bf16.gmra.mxu0 %v609
  %v719 = vpop.f32.mrf.mxu0
  %v720 = vadd.f32 %v584, %v719
  %v721 = vpop.f32.mrf.mxu0
  %v722 = vadd.f32 %v584, %v721
  %723 = vmatmul.bf16.gmra.mxu0 %v612
  %v724 = vpop.f32.mrf.mxu0
  %v725 = vadd.f32 %v584, %v724
  %v726 = vpop.f32.mrf.mxu0
  %v727 = vadd.f32 %v584, %v726
  %728 = vmatmul.bf16.gmra.mxu0 %v615
  %v729 = vpop.f32.mrf.mxu0
  %v730 = vadd.f32 %v584, %v729
  %v731 = vpop.f32.mrf.mxu0
  %v732 = vadd.f32 %v584, %v731
  %733 = vmatmul.bf16.gmra.mxu0 %v618
  %v734 = vpop.f32.mrf.mxu0
  %v735 = vadd.f32 %v584, %v734
  %v736 = vpop.f32.mrf.mxu0
  %v737 = vadd.f32 %v584, %v736
  %738 = vmatmul.bf16.gmra.mxu0 %v621
  %v739 = vpop.f32.mrf.mxu0
  %v740 = vadd.f32 %v584, %v739
  %v741 = vpop.f32.mrf.mxu0
  %v742 = vadd.f32 %v584, %v741
  %743 = vmatmul.bf16.gmra.mxu0 %v624
  %v744 = vpop.f32.mrf.mxu0
  %v745 = vadd.f32 %v584, %v744
  %v746 = vpop.f32.mrf.mxu0
  %v747 = vadd.f32 %v584, %v746
  %748 = vmatmul.bf16.gmra.mxu0 %v627
  %v749 = vpop.f32.mrf.mxu0
  %v750 = vadd.f32 %v584, %v749
  %v751 = vpop.f32.mrf.mxu0
  %v752 = vadd.f32 %v584, %v751
  %753 = vmatmul.bf16.gmra.mxu0 %v630
  %v754 = vpop.f32.mrf.mxu0
  %v755 = vadd.f32 %v584, %v754
  %v756 = vpop.f32.mrf.mxu0
  %v757 = vadd.f32 %v584, %v756
  %758 = vmatmul.bf16.gmra.mxu0 %v633
  %v759 = vpop.f32.mrf.mxu0
  %v760 = vadd.f32 %v584, %v759
  %v761 = vpop.f32.mrf.mxu0
  %v762 = vadd.f32 %v584, %v761
  %763 = vmatmul.bf16.gmra.mxu0 %v636
  %v764 = vpop.f32.mrf.mxu0
  %v765 = vadd.f32 %v584, %v764
  %v766 = vpop.f32.mrf.mxu0
  %v767 = vadd.f32 %v584, %v766
  %768 = vmatmul.bf16.gmra.mxu0 %v639
  %v769 = vpop.f32.mrf.mxu0
  %v770 = vadd.f32 %v584, %v769
  %v771 = vpop.f32.mrf.mxu0
  %v772 = vadd.f32 %v584, %v771
  %773 = vmatmul.bf16.gmra.mxu0 %v642
  %v774 = vpop.f32.mrf.mxu0
  %v775 = vadd.f32 %v584, %v774
  %v776 = vpop.f32.mrf.mxu0
  %v777 = vadd.f32 %v584, %v776
  %778 = vmatmul.bf16.gmra.mxu0 %v645
  %v779 = vpop.f32.mrf.mxu0
  %v780 = vadd.f32 %v584, %v779
  %v781 = vpop.f32.mrf.mxu0
  %v782 = vadd.f32 %v584, %v781
  %783 = vmatmul.bf16.gmra.mxu0 %v648
  %v784 = vpop.f32.mrf.mxu0
  %v785 = vadd.f32 %v584, %v784
  %v786 = vpop.f32.mrf.mxu0
  %v787 = vadd.f32 %v584, %v786
  %788 = vmatmul.bf16.gmra.mxu0 %v651
  %v789 = vpop.f32.mrf.mxu0
  %v790 = vadd.f32 %v584, %v789
  %v791 = vpop.f32.mrf.mxu0
  %v792 = vadd.f32 %v584, %v791
  %793 = vmatmul.bf16.gmra.mxu0 %v654
  %v794 = vpop.f32.mrf.mxu0
  %v795 = vadd.f32 %v584, %v794
  %v796 = vpop.f32.mrf.mxu0
  %v797 = vadd.f32 %v584, %v796
  %798 = vmatmul.bf16.gmra.mxu0 %v657
  %v799 = vpop.f32.mrf.mxu0
  %v800 = vadd.f32 %v584, %v799
  %v801 = vpop.f32.mrf.mxu0
  %v802 = vadd.f32 %v584, %v801
  %803 = vmatmul.bf16.gmra.mxu0 %v660
  %v804 = vpop.f32.mrf.mxu0
  %v805 = vadd.f32 %v584, %v804
  %v806 = vpop.f32.mrf.mxu0
  %v807 = vadd.f32 %v584, %v806
  %808 = vmatmul.bf16.gmra.mxu0 %v663
  %v809 = vpop.f32.mrf.mxu0
  %v810 = vadd.f32 %v584, %v809
  %v811 = vpop.f32.mrf.mxu0
  %v812 = vadd.f32 %v584, %v811
  %813 = vmatmul.bf16.gmra.mxu0 %v666
  %v814 = vpop.f32.mrf.mxu0
  %v815 = vadd.f32 %v584, %v814
  %v816 = vpop.f32.mrf.mxu0
  %v817 = vadd.f32 %v584, %v816
  %818 = vmatmul.bf16.gmra.mxu0 %v669
  %v819 = vpop.f32.mrf.mxu0
  %v820 = vadd.f32 %v584, %v819
  %v821 = vpop.f32.mrf.mxu0
  %v822 = vadd.f32 %v584, %v821
  %823 = vmatmul.bf16.gmra.mxu0 %v672
  %v824 = vpop.f32.mrf.mxu0
  %v825 = vadd.f32 %v584, %v824
  %v826 = vpop.f32.mrf.mxu0
  %v827 = vadd.f32 %v584, %v826
  %828 = vmatmul.bf16.gmra.mxu0 %v675
  %v829 = vpop.f32.mrf.mxu0
  %v830 = vadd.f32 %v584, %v829
  %v831 = vpop.f32.mrf.mxu0
  %v832 = vadd.f32 %v584, %v831
  %833 = vmatmul.bf16.gmra.mxu0 %v678
  %v834 = vpop.f32.mrf.mxu0
  %v835 = vadd.f32 %v584, %v834
  %v836 = vpop.f32.mrf.mxu0
  %v837 = vadd.f32 %v584, %v836
  %838 = vmatmul.bf16.gmra.mxu0 %v681
  %v839 = vpop.f32.mrf.mxu0
  %v840 = vadd.f32 %v584, %v839
  %v841 = vpop.f32.mrf.mxu0
  %v842 = vadd.f32 %v584, %v841
  %843 = vmatmul.bf16.gmra.mxu0 %v684
  %v844 = vpop.f32.mrf.mxu0
  %v845 = vadd.f32 %v584, %v844
  %v846 = vpop.f32.mrf.mxu0
  %v847 = vadd.f32 %v584, %v846
  %848 = vmatmul.bf16.gmra.mxu0 %v687
  %v849 = vpop.f32.mrf.mxu0
  %v850 = vadd.f32 %v584, %v849
  %v851 = vpop.f32.mrf.mxu0
  %v852 = vadd.f32 %v584, %v851
  %853 = vmatmul.bf16.gmra.mxu0 %v690
  %v854 = vpop.f32.mrf.mxu0
  %v855 = vadd.f32 %v584, %v854
  %v856 = vpop.f32.mrf.mxu0
  %v857 = vadd.f32 %v584, %v856
  %858 = vmatmul.bf16.gmra.mxu0 %v693
  %v859 = vpop.f32.mrf.mxu0
  %v860 = vadd.f32 %v584, %v859
  %v861 = vpop.f32.mrf.mxu0
  %v862 = vadd.f32 %v584, %v861
  %863 = vdwg.mxu0
  %v864 = vpack.c.bf16 %v705, %v705
  %v865 = vpack.c.bf16 %v707, %v707
  %v866 = vpack.c.bf16 %v710, %v710
  %v867 = vpack.c.bf16 %v712, %v712
  %v868 = vpack.c.bf16 %v715, %v715
  %v869 = vpack.c.bf16 %v717, %v717
  %v870 = vpack.c.bf16 %v720, %v720
  %v871 = vpack.c.bf16 %v722, %v722
  %v872 = vpack.c.bf16 %v725, %v725
  %v873 = vpack.c.bf16 %v727, %v727
  %v874 = vpack.c.bf16 %v730, %v730
  %v875 = vpack.c.bf16 %v732, %v732
  %v876 = vpack.c.bf16 %v735, %v735
  %v877 = vpack.c.bf16 %v737, %v737
  %v878 = vpack.c.bf16 %v740, %v740
  %v879 = vpack.c.bf16 %v742, %v742
  %v880 = vpack.c.bf16 %v745, %v745
  %v881 = vpack.c.bf16 %v747, %v747
  %v882 = vpack.c.bf16 %v750, %v750
  %v883 = vpack.c.bf16 %v752, %v752
  %v884 = vpack.c.bf16 %v755, %v755
  %v885 = vpack.c.bf16 %v757, %v757
  %v886 = vpack.c.bf16 %v760, %v760
  %v887 = vpack.c.bf16 %v762, %v762
  %v888 = vpack.c.bf16 %v765, %v765
  %v889 = vpack.c.bf16 %v767, %v767
  %v890 = vpack.c.bf16 %v770, %v770
  %v891 = vpack.c.bf16 %v772, %v772
  %v892 = vpack.c.bf16 %v775, %v775
  %v893 = vpack.c.bf16 %v777, %v777
  %v894 = vpack.c.bf16 %v780, %v780
  %v895 = vpack.c.bf16 %v782, %v782
  %v896 = vpack.c.bf16 %v785, %v785
  %v897 = vpack.c.bf16 %v787, %v787
  %v898 = vpack.c.bf16 %v790, %v790
  %v899 = vpack.c.bf16 %v792, %v792
  %v900 = vpack.c.bf16 %v795, %v795
  %v901 = vpack.c.bf16 %v797, %v797
  %v902 = vpack.c.bf16 %v800, %v800
  %v903 = vpack.c.bf16 %v802, %v802
  %v904 = vpack.c.bf16 %v805, %v805
  %v905 = vpack.c.bf16 %v807, %v807
  %v906 = vpack.c.bf16 %v810, %v810
  %v907 = vpack.c.bf16 %v812, %v812
  %v908 = vpack.c.bf16 %v815, %v815
  %v909 = vpack.c.bf16 %v817, %v817
  %v910 = vpack.c.bf16 %v820, %v820
  %v911 = vpack.c.bf16 %v822, %v822
  %v912 = vpack.c.bf16 %v825, %v825
  %v913 = vpack.c.bf16 %v827, %v827
  %v914 = vpack.c.bf16 %v830, %v830
  %v915 = vpack.c.bf16 %v832, %v832
  %v916 = vpack.c.bf16 %v835, %v835
  %v917 = vpack.c.bf16 %v837, %v837
  %v918 = vpack.c.bf16 %v840, %v840
  %v919 = vpack.c.bf16 %v842, %v842
  %v920 = vpack.c.bf16 %v845, %v845
  %v921 = vpack.c.bf16 %v847, %v847
  %v922 = vpack.c.bf16 %v850, %v850
  %v923 = vpack.c.bf16 %v852, %v852
  %v924 = vpack.c.bf16 %v855, %v855
  %v925 = vpack.c.bf16 %v857, %v857
  %v926 = vpack.c.bf16 %v860, %v860
  %v927 = vpack.c.bf16 %v862, %v862
  %928 = vst [vmem:[%s6] sm:$0xf] %v864
  %929 = vst [vmem:[%s6 + $0x4] sm:$0xf] %v865
  %930 = vst [vmem:[%s6 + $0x8] sm:$0xf] %v866
  %931 = vst [vmem:[%s6 + $0xc] sm:$0xf] %v867
  %932 = vst [vmem:[%s6 + $0x10] sm:$0xf] %v868
  %933 = vst [vmem:[%s6 + $0x14] sm:$0xf] %v869
  %934 = vst [vmem:[%s6 + $0x18] sm:$0xf] %v870
  %935 = vst [vmem:[%s6 + $0x1c] sm:$0xf] %v871
  %936 = vst [vmem:[%s6 + $0x20] sm:$0xf] %v872
  %937 = vst [vmem:[%s6 + $0x24] sm:$0xf] %v873
  %938 = vst [vmem:[%s6 + $0x28] sm:$0xf] %v874
  %939 = vst [vmem:[%s6 + $0x2c] sm:$0xf] %v875
  %940 = vst [vmem:[%s6 + $0x30] sm:$0xf] %v876
  %941 = vst [vmem:[%s6 + $0x34] sm:$0xf] %v877
  %942 = vst [vmem:[%s6 + $0x38] sm:$0xf] %v878
  %943 = vst [vmem:[%s6 + $0x3c] sm:$0xf] %v879
  %944 = vst [vmem:[%s6 + $0x40] sm:$0xf] %v880
  %945 = vst [vmem:[%s6 + $0x44] sm:$0xf] %v881
  %946 = vst [vmem:[%s6 + $0x48] sm:$0xf] %v882
  %947 = vst [vmem:[%s6 + $0x4c] sm:$0xf] %v883
  %948 = vst [vmem:[%s6 + $0x50] sm:$0xf] %v884
  %949 = vst [vmem:[%s6 + $0x54] sm:$0xf] %v885
  %950 = vst [vmem:[%s6 + $0x58] sm:$0xf] %v886
  %951 = vst [vmem:[%s6 + $0x5c] sm:$0xf] %v887
  %952 = vst [vmem:[%s6 + $0x60] sm:$0xf] %v888
  %953 = vst [vmem:[%s6 + $0x64] sm:$0xf] %v889
  %954 = vst [vmem:[%s6 + $0x68] sm:$0xf] %v890
  %955 = vst [vmem:[%s6 + $0x6c] sm:$0xf] %v891
  %956 = vst [vmem:[%s6 + $0x70] sm:$0xf] %v892
  %957 = vst [vmem:[%s6 + $0x74] sm:$0xf] %v893
  %958 = vst [vmem:[%s6 + $0x78] sm:$0xf] %v894
  %959 = vst [vmem:[%s6 + $0x7c] sm:$0xf] %v895
  %960 = vst [vmem:[%s6 + $0x80] sm:$0xf] %v896
  %961 = vst [vmem:[%s6 + $0x84] sm:$0xf] %v897
  %962 = vst [vmem:[%s6 + $0x88] sm:$0xf] %v898
  %963 = vst [vmem:[%s6 + $0x8c] sm:$0xf] %v899
  %964 = vst [vmem:[%s6 + $0x90] sm:$0xf] %v900
  %965 = vst [vmem:[%s6 + $0x94] sm:$0xf] %v901
  %966 = vst [vmem:[%s6 + $0x98] sm:$0xf] %v902
  %967 = vst [vmem:[%s6 + $0x9c] sm:$0xf] %v903
  %968 = vst [vmem:[%s6 + $0xa0] sm:$0xf] %v904
  %969 = vst [vmem:[%s6 + $0xa4] sm:$0xf] %v905
  %970 = vst [vmem:[%s6 + $0xa8] sm:$0xf] %v906
  %971 = vst [vmem:[%s6 + $0xac] sm:$0xf] %v907
  %972 = vst [vmem:[%s6 + $0xb0] sm:$0xf] %v908
  %973 = vst [vmem:[%s6 + $0xb4] sm:$0xf] %v909
  %974 = vst [vmem:[%s6 + $0xb8] sm:$0xf] %v910
  %975 = vst [vmem:[%s6 + $0xbc] sm:$0xf] %v911
  %976 = vst [vmem:[%s6 + $0xc0] sm:$0xf] %v912
  %977 = vst [vmem:[%s6 + $0xc4] sm:$0xf] %v913
  %978 = vst [vmem:[%s6 + $0xc8] sm:$0xf] %v914
  %979 = vst [vmem:[%s6 + $0xcc] sm:$0xf] %v915
  %980 = vst [vmem:[%s6 + $0xd0] sm:$0xf] %v916
  %981 = vst [vmem:[%s6 + $0xd4] sm:$0xf] %v917
  %982 = vst [vmem:[%s6 + $0xd8] sm:$0xf] %v918
  %983 = vst [vmem:[%s6 + $0xdc] sm:$0xf] %v919
  %984 = vst [vmem:[%s6 + $0xe0] sm:$0xf] %v920
  %985 = vst [vmem:[%s6 + $0xe4] sm:$0xf] %v921
  %986 = vst [vmem:[%s6 + $0xe8] sm:$0xf] %v922
  %987 = vst [vmem:[%s6 + $0xec] sm:$0xf] %v923
  %988 = vst [vmem:[%s6 + $0xf0] sm:$0xf] %v924
  %989 = vst [vmem:[%s6 + $0xf4] sm:$0xf] %v925
  %990 = vst [vmem:[%s6 + $0xf8] sm:$0xf] %v926
  %991 = vst [vmem:[%s6 + $0xfc] sm:$0xf] %v927
  %s992 = smul.u32 0, 512
  %v993 = vlaneseq
  %v994 = vshrl.u32 %v993, 7
  %v995 = vadd.s32 %v994, 8
  %v996 = vadd.s32 %v994, 16
  %v997 = vadd.s32 %v994, 24
  %v998 = vadd.s32 %v994, 32
  %v999 = vadd.s32 %v994, 40
  %v1000 = vadd.s32 %v994, 48
  %v1001 = vadd.s32 %v994, 56
  %v1002 = vadd.s32 %v994, 64
  %v1003 = vadd.s32 %v994, 72
  %v1004 = vadd.s32 %v994, 80
  %v1005 = vadd.s32 %v994, 88
  %v1006 = vadd.s32 %v994, 96
  %v1007 = vadd.s32 %v994, 104
  %v1008 = vadd.s32 %v994, 112
  %v1009 = vadd.s32 %v994, 120
  %v1010 = vadd.s32 %v994, 128
  %v1011 = vadd.s32 %v994, 136
  %v1012 = vadd.s32 %v994, 144
  %v1013 = vadd.s32 %v994, 152
  %v1014 = vadd.s32 %v994, 160
  %v1015 = vadd.s32 %v994, 168
  %v1016 = vadd.s32 %v994, 176
  %v1017 = vadd.s32 %v994, 184
  %v1018 = vadd.s32 %v994, 192
  %v1019 = vadd.s32 %v994, 200
  %v1020 = vadd.s32 %v994, 208
  %v1021 = vadd.s32 %v994, 216
  %v1022 = vadd.s32 %v994, 224
  %v1023 = vadd.s32 %v994, 232
  %v1024 = vadd.s32 %v994, 240
  %v1025 = vadd.s32 %v994, 248
  %v1026 = vadd.s32 %v994, 256
  %v1027 = vadd.s32 %v994, 264
  %v1028 = vadd.s32 %v994, 272
  %v1029 = vadd.s32 %v994, 280
  %v1030 = vadd.s32 %v994, 288
  %v1031 = vadd.s32 %v994, 296
  %v1032 = vadd.s32 %v994, 304
  %v1033 = vadd.s32 %v994, 312
  %v1034 = vadd.s32 %v994, 320
  %v1035 = vadd.s32 %v994, 328
  %v1036 = vadd.s32 %v994, 336
  %v1037 = vadd.s32 %v994, 344
  %v1038 = vadd.s32 %v994, 352
  %v1039 = vadd.s32 %v994, 360
  %v1040 = vadd.s32 %v994, 368
  %v1041 = vadd.s32 %v994, 376
  %v1042 = vadd.s32 %v994, 384
  %v1043 = vadd.s32 %v994, 392
  %v1044 = vadd.s32 %v994, 400
  %v1045 = vadd.s32 %v994, 408
  %v1046 = vadd.s32 %v994, 416
  %v1047 = vadd.s32 %v994, 424
  %v1048 = vadd.s32 %v994, 432
  %v1049 = vadd.s32 %v994, 440
  %v1050 = vadd.s32 %v994, 448
  %v1051 = vadd.s32 %v994, 456
  %v1052 = vadd.s32 %v994, 464
  %v1053 = vadd.s32 %v994, 472
  %v1054 = vadd.s32 %v994, 480
  %v1055 = vadd.s32 %v994, 488
  %v1056 = vadd.s32 %v994, 496
  %v1057 = vadd.s32 %v994, 504
  %v1058 = vstv %s992
  %v1059 = vadd.s32 %v1058, %v994
  %v1060 = vadd.s32 %v1058, %v995
  %v1061 = vadd.s32 %v1058, %v996
  %v1062 = vadd.s32 %v1058, %v997
  %v1063 = vadd.s32 %v1058, %v998
  %v1064 = vadd.s32 %v1058, %v999
  %v1065 = vadd.s32 %v1058, %v1000
  %v1066 = vadd.s32 %v1058, %v1001
  %v1067 = vadd.s32 %v1058, %v1002
  %v1068 = vadd.s32 %v1058, %v1003
  %v1069 = vadd.s32 %v1058, %v1004
  %v1070 = vadd.s32 %v1058, %v1005
  %v1071 = vadd.s32 %v1058, %v1006
  %v1072 = vadd.s32 %v1058, %v1007
  %v1073 = vadd.s32 %v1058, %v1008
  %v1074 = vadd.s32 %v1058, %v1009
  %v1075 = vadd.s32 %v1058, %v1010
  %v1076 = vadd.s32 %v1058, %v1011
  %v1077 = vadd.s32 %v1058, %v1012
  %v1078 = vadd.s32 %v1058, %v1013
  %v1079 = vadd.s32 %v1058, %v1014
  %v1080 = vadd.s32 %v1058, %v1015
  %v1081 = vadd.s32 %v1058, %v1016
  %v1082 = vadd.s32 %v1058, %v1017
  %v1083 = vadd.s32 %v1058, %v1018
  %v1084 = vadd.s32 %v1058, %v1019
  %v1085 = vadd.s32 %v1058, %v1020
  %v1086 = vadd.s32 %v1058, %v1021
  %v1087 = vadd.s32 %v1058, %v1022
  %v1088 = vadd.s32 %v1058, %v1023
  %v1089 = vadd.s32 %v1058, %v1024
  %v1090 = vadd.s32 %v1058, %v1025
  %v1091 = vadd.s32 %v1058, %v1026
  %v1092 = vadd.s32 %v1058, %v1027
  %v1093 = vadd.s32 %v1058, %v1028
  %v1094 = vadd.s32 %v1058, %v1029
  %v1095 = vadd.s32 %v1058, %v1030
  %v1096 = vadd.s32 %v1058, %v1031
  %v1097 = vadd.s32 %v1058, %v1032
  %v1098 = vadd.s32 %v1058, %v1033
  %v1099 = vadd.s32 %v1058, %v1034
  %v1100 = vadd.s32 %v1058, %v1035
  %v1101 = vadd.s32 %v1058, %v1036
  %v1102 = vadd.s32 %v1058, %v1037
  %v1103 = vadd.s32 %v1058, %v1038
  %v1104 = vadd.s32 %v1058, %v1039
  %v1105 = vadd.s32 %v1058, %v1040
  %v1106 = vadd.s32 %v1058, %v1041
  %v1107 = vadd.s32 %v1058, %v1042
  %v1108 = vadd.s32 %v1058, %v1043
  %v1109 = vadd.s32 %v1058, %v1044
  %v1110 = vadd.s32 %v1058, %v1045
  %v1111 = vadd.s32 %v1058, %v1046
  %v1112 = vadd.s32 %v1058, %v1047
  %v1113 = vadd.s32 %v1058, %v1048
  %v1114 = vadd.s32 %v1058, %v1049
  %v1115 = vadd.s32 %v1058, %v1050
  %v1116 = vadd.s32 %v1058, %v1051
  %v1117 = vadd.s32 %v1058, %v1052
  %v1118 = vadd.s32 %v1058, %v1053
  %v1119 = vadd.s32 %v1058, %v1054
  %v1120 = vadd.s32 %v1058, %v1055
  %v1121 = vadd.s32 %v1058, %v1056
  %v1122 = vadd.s32 %v1058, %v1057
  %vm1123 = vcmp.lt.s32.totalorder %v1059, 512
  %vm1124 = vcmp.lt.s32.totalorder %v1060, 512
  %vm1125 = vcmp.lt.s32.totalorder %v1061, 512
  %vm1126 = vcmp.lt.s32.totalorder %v1062, 512
  %vm1127 = vcmp.lt.s32.totalorder %v1063, 512
  %vm1128 = vcmp.lt.s32.totalorder %v1064, 512
  %vm1129 = vcmp.lt.s32.totalorder %v1065, 512
  %vm1130 = vcmp.lt.s32.totalorder %v1066, 512
  %vm1131 = vcmp.lt.s32.totalorder %v1067, 512
  %vm1132 = vcmp.lt.s32.totalorder %v1068, 512
  %vm1133 = vcmp.lt.s32.totalorder %v1069, 512
  %vm1134 = vcmp.lt.s32.totalorder %v1070, 512
  %vm1135 = vcmp.lt.s32.totalorder %v1071, 512
  %vm1136 = vcmp.lt.s32.totalorder %v1072, 512
  %vm1137 = vcmp.lt.s32.totalorder %v1073, 512
  %vm1138 = vcmp.lt.s32.totalorder %v1074, 512
  %vm1139 = vcmp.lt.s32.totalorder %v1075, 512
  %vm1140 = vcmp.lt.s32.totalorder %v1076, 512
  %vm1141 = vcmp.lt.s32.totalorder %v1077, 512
  %vm1142 = vcmp.lt.s32.totalorder %v1078, 512
  %vm1143 = vcmp.lt.s32.totalorder %v1079, 512
  %vm1144 = vcmp.lt.s32.totalorder %v1080, 512
  %vm1145 = vcmp.lt.s32.totalorder %v1081, 512
  %vm1146 = vcmp.lt.s32.totalorder %v1082, 512
  %vm1147 = vcmp.lt.s32.totalorder %v1083, 512
  %vm1148 = vcmp.lt.s32.totalorder %v1084, 512
  %vm1149 = vcmp.lt.s32.totalorder %v1085, 512
  %vm1150 = vcmp.lt.s32.totalorder %v1086, 512
  %vm1151 = vcmp.lt.s32.totalorder %v1087, 512
  %vm1152 = vcmp.lt.s32.totalorder %v1088, 512
  %vm1153 = vcmp.lt.s32.totalorder %v1089, 512
  %vm1154 = vcmp.lt.s32.totalorder %v1090, 512
  %vm1155 = vcmp.lt.s32.totalorder %v1091, 512
  %vm1156 = vcmp.lt.s32.totalorder %v1092, 512
  %vm1157 = vcmp.lt.s32.totalorder %v1093, 512
  %vm1158 = vcmp.lt.s32.totalorder %v1094, 512
  %vm1159 = vcmp.lt.s32.totalorder %v1095, 512
  %vm1160 = vcmp.lt.s32.totalorder %v1096, 512
  %vm1161 = vcmp.lt.s32.totalorder %v1097, 512
  %vm1162 = vcmp.lt.s32.totalorder %v1098, 512
  %vm1163 = vcmp.lt.s32.totalorder %v1099, 512
  %vm1164 = vcmp.lt.s32.totalorder %v1100, 512
  %vm1165 = vcmp.lt.s32.totalorder %v1101, 512
  %vm1166 = vcmp.lt.s32.totalorder %v1102, 512
  %vm1167 = vcmp.lt.s32.totalorder %v1103, 512
  %vm1168 = vcmp.lt.s32.totalorder %v1104, 512
  %vm1169 = vcmp.lt.s32.totalorder %v1105, 512
  %vm1170 = vcmp.lt.s32.totalorder %v1106, 512
  %vm1171 = vcmp.lt.s32.totalorder %v1107, 512
  %vm1172 = vcmp.lt.s32.totalorder %v1108, 512
  %vm1173 = vcmp.lt.s32.totalorder %v1109, 512
  %vm1174 = vcmp.lt.s32.totalorder %v1110, 512
  %vm1175 = vcmp.lt.s32.totalorder %v1111, 512
  %vm1176 = vcmp.lt.s32.totalorder %v1112, 512
  %vm1177 = vcmp.lt.s32.totalorder %v1113, 512
  %vm1178 = vcmp.lt.s32.totalorder %v1114, 512
  %vm1179 = vcmp.lt.s32.totalorder %v1115, 512
  %vm1180 = vcmp.lt.s32.totalorder %v1116, 512
  %vm1181 = vcmp.lt.s32.totalorder %v1117, 512
  %vm1182 = vcmp.lt.s32.totalorder %v1118, 512
  %vm1183 = vcmp.lt.s32.totalorder %v1119, 512
  %vm1184 = vcmp.lt.s32.totalorder %v1120, 512
  %vm1185 = vcmp.lt.s32.totalorder %v1121, 512
  %vm1186 = vcmp.lt.s32.totalorder %v1122, 512
  %v1187 = vsel %vm1123, %v705, 0.0
  %v1188 = vsel %vm1124, %v707, 0.0
  %v1189 = vsel %vm1125, %v710, 0.0
  %v1190 = vsel %vm1126, %v712, 0.0
  %v1191 = vsel %vm1127, %v715, 0.0
  %v1192 = vsel %vm1128, %v717, 0.0
  %v1193 = vsel %vm1129, %v720, 0.0
  %v1194 = vsel %vm1130, %v722, 0.0
  %v1195 = vsel %vm1131, %v725, 0.0
  %v1196 = vsel %vm1132, %v727, 0.0
  %v1197 = vsel %vm1133, %v730, 0.0
  %v1198 = vsel %vm1134, %v732, 0.0
  %v1199 = vsel %vm1135, %v735, 0.0
  %v1200 = vsel %vm1136, %v737, 0.0
  %v1201 = vsel %vm1137, %v740, 0.0
  %v1202 = vsel %vm1138, %v742, 0.0
  %v1203 = vsel %vm1139, %v745, 0.0
  %v1204 = vsel %vm1140, %v747, 0.0
  %v1205 = vsel %vm1141, %v750, 0.0
  %v1206 = vsel %vm1142, %v752, 0.0
  %v1207 = vsel %vm1143, %v755, 0.0
  %v1208 = vsel %vm1144, %v757, 0.0
  %v1209 = vsel %vm1145, %v760, 0.0
  %v1210 = vsel %vm1146, %v762, 0.0
  %v1211 = vsel %vm1147, %v765, 0.0
  %v1212 = vsel %vm1148, %v767, 0.0
  %v1213 = vsel %vm1149, %v770, 0.0
  %v1214 = vsel %vm1150, %v772, 0.0
  %v1215 = vsel %vm1151, %v775, 0.0
  %v1216 = vsel %vm1152, %v777, 0.0
  %v1217 = vsel %vm1153, %v780, 0.0
  %v1218 = vsel %vm1154, %v782, 0.0
  %v1219 = vsel %vm1155, %v785, 0.0
  %v1220 = vsel %vm1156, %v787, 0.0
  %v1221 = vsel %vm1157, %v790, 0.0
  %v1222 = vsel %vm1158, %v792, 0.0
  %v1223 = vsel %vm1159, %v795, 0.0
  %v1224 = vsel %vm1160, %v797, 0.0
  %v1225 = vsel %vm1161, %v800, 0.0
  %v1226 = vsel %vm1162, %v802, 0.0
  %v1227 = vsel %vm1163, %v805, 0.0
  %v1228 = vsel %vm1164, %v807, 0.0
  %v1229 = vsel %vm1165, %v810, 0.0
  %v1230 = vsel %vm1166, %v812, 0.0
  %v1231 = vsel %vm1167, %v815, 0.0
  %v1232 = vsel %vm1168, %v817, 0.0
  %v1233 = vsel %vm1169, %v820, 0.0
  %v1234 = vsel %vm1170, %v822, 0.0
  %v1235 = vsel %vm1171, %v825, 0.0
  %v1236 = vsel %vm1172, %v827, 0.0
  %v1237 = vsel %vm1173, %v830, 0.0
  %v1238 = vsel %vm1174, %v832, 0.0
  %v1239 = vsel %vm1175, %v835, 0.0
  %v1240 = vsel %vm1176, %v837, 0.0
  %v1241 = vsel %vm1177, %v840, 0.0
  %v1242 = vsel %vm1178, %v842, 0.0
  %v1243 = vsel %vm1179, %v845, 0.0
  %v1244 = vsel %vm1180, %v847, 0.0
  %v1245 = vsel %vm1181, %v850, 0.0
  %v1246 = vsel %vm1182, %v852, 0.0
  %v1247 = vsel %vm1183, %v855, 0.0
  %v1248 = vsel %vm1184, %v857, 0.0
  %v1249 = vsel %vm1185, %v860, 0.0
  %v1250 = vsel %vm1186, %v862, 0.0
  %v1251 = vadd.f32 %v1187, %v1188
  %v1252 = vadd.f32 %v1251, %v1189
  %v1253 = vadd.f32 %v1252, %v1190
  %v1254 = vadd.f32 %v1253, %v1191
  %v1255 = vadd.f32 %v1254, %v1192
  %v1256 = vadd.f32 %v1255, %v1193
  %v1257 = vadd.f32 %v1256, %v1194
  %v1258 = vadd.f32 %v1257, %v1195
  %v1259 = vadd.f32 %v1258, %v1196
  %v1260 = vadd.f32 %v1259, %v1197
  %v1261 = vadd.f32 %v1260, %v1198
  %v1262 = vadd.f32 %v1261, %v1199
  %v1263 = vadd.f32 %v1262, %v1200
  %v1264 = vadd.f32 %v1263, %v1201
  %v1265 = vadd.f32 %v1264, %v1202
  %v1266 = vadd.f32 %v1265, %v1203
  %v1267 = vadd.f32 %v1266, %v1204
  %v1268 = vadd.f32 %v1267, %v1205
  %v1269 = vadd.f32 %v1268, %v1206
  %v1270 = vadd.f32 %v1269, %v1207
  %v1271 = vadd.f32 %v1270, %v1208
  %v1272 = vadd.f32 %v1271, %v1209
  %v1273 = vadd.f32 %v1272, %v1210
  %v1274 = vadd.f32 %v1273, %v1211
  %v1275 = vadd.f32 %v1274, %v1212
  %v1276 = vadd.f32 %v1275, %v1213
  %v1277 = vadd.f32 %v1276, %v1214
  %v1278 = vadd.f32 %v1277, %v1215
  %v1279 = vadd.f32 %v1278, %v1216
  %v1280 = vadd.f32 %v1279, %v1217
  %v1281 = vadd.f32 %v1280, %v1218
  %v1282 = vadd.f32 %v1281, %v1219
  %v1283 = vadd.f32 %v1282, %v1220
  %v1284 = vadd.f32 %v1283, %v1221
  %v1285 = vadd.f32 %v1284, %v1222
  %v1286 = vadd.f32 %v1285, %v1223
  %v1287 = vadd.f32 %v1286, %v1224
  %v1288 = vadd.f32 %v1287, %v1225
  %v1289 = vadd.f32 %v1288, %v1226
  %v1290 = vadd.f32 %v1289, %v1227
  %v1291 = vadd.f32 %v1290, %v1228
  %v1292 = vadd.f32 %v1291, %v1229
  %v1293 = vadd.f32 %v1292, %v1230
  %v1294 = vadd.f32 %v1293, %v1231
  %v1295 = vadd.f32 %v1294, %v1232
  %v1296 = vadd.f32 %v1295, %v1233
  %v1297 = vadd.f32 %v1296, %v1234
  %v1298 = vadd.f32 %v1297, %v1235
  %v1299 = vadd.f32 %v1298, %v1236
  %v1300 = vadd.f32 %v1299, %v1237
  %v1301 = vadd.f32 %v1300, %v1238
  %v1302 = vadd.f32 %v1301, %v1239
  %v1303 = vadd.f32 %v1302, %v1240
  %v1304 = vadd.f32 %v1303, %v1241
  %v1305 = vadd.f32 %v1304, %v1242
  %v1306 = vadd.f32 %v1305, %v1243
  %v1307 = vadd.f32 %v1306, %v1244
  %v1308 = vadd.f32 %v1307, %v1245
  %v1309 = vadd.f32 %v1308, %v1246
  %v1310 = vadd.f32 %v1309, %v1247
  %v1311 = vadd.f32 %v1310, %v1248
  %v1312 = vadd.f32 %v1311, %v1249
  %v1313 = vadd.f32 %v1312, %v1250
  %v1314 = vrot.slane %v1313, 4
  %v1315 = vadd.f32 %v1313, %v1314
  %v1316 = vrot.slane %v1315, 2
  %v1317 = vadd.f32 %v1315, %v1316
  %v1318 = vrot.slane %v1317, 1
  %v1319 = vadd.f32 %v1317, %v1318
  %v1320 = vmul.f32 %v1187, %v1187
  %v1321 = vmul.f32 %v1188, %v1188
  %v1322 = vmul.f32 %v1189, %v1189
  %v1323 = vmul.f32 %v1190, %v1190
  %v1324 = vmul.f32 %v1191, %v1191
  %v1325 = vmul.f32 %v1192, %v1192
  %v1326 = vmul.f32 %v1193, %v1193
  %v1327 = vmul.f32 %v1194, %v1194
  %v1328 = vmul.f32 %v1195, %v1195
  %v1329 = vmul.f32 %v1196, %v1196
  %v1330 = vmul.f32 %v1197, %v1197
  %v1331 = vmul.f32 %v1198, %v1198
  %v1332 = vmul.f32 %v1199, %v1199
  %v1333 = vmul.f32 %v1200, %v1200
  %v1334 = vmul.f32 %v1201, %v1201
  %v1335 = vmul.f32 %v1202, %v1202
  %v1336 = vmul.f32 %v1203, %v1203
  %v1337 = vmul.f32 %v1204, %v1204
  %v1338 = vmul.f32 %v1205, %v1205
  %v1339 = vmul.f32 %v1206, %v1206
  %v1340 = vmul.f32 %v1207, %v1207
  %v1341 = vmul.f32 %v1208, %v1208
  %v1342 = vmul.f32 %v1209, %v1209
  %v1343 = vmul.f32 %v1210, %v1210
  %v1344 = vmul.f32 %v1211, %v1211
  %v1345 = vmul.f32 %v1212, %v1212
  %v1346 = vmul.f32 %v1213, %v1213
  %v1347 = vmul.f32 %v1214, %v1214
  %v1348 = vmul.f32 %v1215, %v1215
  %v1349 = vmul.f32 %v1216, %v1216
  %v1350 = vmul.f32 %v1217, %v1217
  %v1351 = vmul.f32 %v1218, %v1218
  %v1352 = vmul.f32 %v1219, %v1219
  %v1353 = vmul.f32 %v1220, %v1220
  %v1354 = vmul.f32 %v1221, %v1221
  %v1355 = vmul.f32 %v1222, %v1222
  %v1356 = vmul.f32 %v1223, %v1223
  %v1357 = vmul.f32 %v1224, %v1224
  %v1358 = vmul.f32 %v1225, %v1225
  %v1359 = vmul.f32 %v1226, %v1226
  %v1360 = vmul.f32 %v1227, %v1227
  %v1361 = vmul.f32 %v1228, %v1228
  %v1362 = vmul.f32 %v1229, %v1229
  %v1363 = vmul.f32 %v1230, %v1230
  %v1364 = vmul.f32 %v1231, %v1231
  %v1365 = vmul.f32 %v1232, %v1232
  %v1366 = vmul.f32 %v1233, %v1233
  %v1367 = vmul.f32 %v1234, %v1234
  %v1368 = vmul.f32 %v1235, %v1235
  %v1369 = vmul.f32 %v1236, %v1236
  %v1370 = vmul.f32 %v1237, %v1237
  %v1371 = vmul.f32 %v1238, %v1238
  %v1372 = vmul.f32 %v1239, %v1239
  %v1373 = vmul.f32 %v1240, %v1240
  %v1374 = vmul.f32 %v1241, %v1241
  %v1375 = vmul.f32 %v1242, %v1242
  %v1376 = vmul.f32 %v1243, %v1243
  %v1377 = vmul.f32 %v1244, %v1244
  %v1378 = vmul.f32 %v1245, %v1245
  %v1379 = vmul.f32 %v1246, %v1246
  %v1380 = vmul.f32 %v1247, %v1247
  %v1381 = vmul.f32 %v1248, %v1248
  %v1382 = vmul.f32 %v1249, %v1249
  %v1383 = vmul.f32 %v1250, %v1250
  %v1384 = vadd.f32 %v1320, %v1321
  %v1385 = vadd.f32 %v1384, %v1322
  %v1386 = vadd.f32 %v1385, %v1323
  %v1387 = vadd.f32 %v1386, %v1324
  %v1388 = vadd.f32 %v1387, %v1325
  %v1389 = vadd.f32 %v1388, %v1326
  %v1390 = vadd.f32 %v1389, %v1327
  %v1391 = vadd.f32 %v1390, %v1328
  %v1392 = vadd.f32 %v1391, %v1329
  %v1393 = vadd.f32 %v1392, %v1330
  %v1394 = vadd.f32 %v1393, %v1331
  %v1395 = vadd.f32 %v1394, %v1332
  %v1396 = vadd.f32 %v1395, %v1333
  %v1397 = vadd.f32 %v1396, %v1334
  %v1398 = vadd.f32 %v1397, %v1335
  %v1399 = vadd.f32 %v1398, %v1336
  %v1400 = vadd.f32 %v1399, %v1337
  %v1401 = vadd.f32 %v1400, %v1338
  %v1402 = vadd.f32 %v1401, %v1339
  %v1403 = vadd.f32 %v1402, %v1340
  %v1404 = vadd.f32 %v1403, %v1341
  %v1405 = vadd.f32 %v1404, %v1342
  %v1406 = vadd.f32 %v1405, %v1343
  %v1407 = vadd.f32 %v1406, %v1344
  %v1408 = vadd.f32 %v1407, %v1345
  %v1409 = vadd.f32 %v1408, %v1346
  %v1410 = vadd.f32 %v1409, %v1347
  %v1411 = vadd.f32 %v1410, %v1348
  %v1412 = vadd.f32 %v1411, %v1349
  %v1413 = vadd.f32 %v1412, %v1350
  %v1414 = vadd.f32 %v1413, %v1351
  %v1415 = vadd.f32 %v1414, %v1352
  %v1416 = vadd.f32 %v1415, %v1353
  %v1417 = vadd.f32 %v1416, %v1354
  %v1418 = vadd.f32 %v1417, %v1355
  %v1419 = vadd.f32 %v1418, %v1356
  %v1420 = vadd.f32 %v1419, %v1357
  %v1421 = vadd.f32 %v1420, %v1358
  %v1422 = vadd.f32 %v1421, %v1359
  %v1423 = vadd.f32 %v1422, %v1360
  %v1424 = vadd.f32 %v1423, %v1361
  %v1425 = vadd.f32 %v1424, %v1362
  %v1426 = vadd.f32 %v1425, %v1363
  %v1427 = vadd.f32 %v1426, %v1364
  %v1428 = vadd.f32 %v1427, %v1365
  %v1429 = vadd.f32 %v1428, %v1366
  %v1430 = vadd.f32 %v1429, %v1367
  %v1431 = vadd.f32 %v1430, %v1368
  %v1432 = vadd.f32 %v1431, %v1369
  %v1433 = vadd.f32 %v1432, %v1370
  %v1434 = vadd.f32 %v1433, %v1371
  %v1435 = vadd.f32 %v1434, %v1372
  %v1436 = vadd.f32 %v1435, %v1373
  %v1437 = vadd.f32 %v1436, %v1374
  %v1438 = vadd.f32 %v1437, %v1375
  %v1439 = vadd.f32 %v1438, %v1376
  %v1440 = vadd.f32 %v1439, %v1377
  %v1441 = vadd.f32 %v1440, %v1378
  %v1442 = vadd.f32 %v1441, %v1379
  %v1443 = vadd.f32 %v1442, %v1380
  %v1444 = vadd.f32 %v1443, %v1381
  %v1445 = vadd.f32 %v1444, %v1382
  %v1446 = vadd.f32 %v1445, %v1383
  %v1447 = vrot.slane %v1446, 4
  %v1448 = vadd.f32 %v1446, %v1447
  %v1449 = vrot.slane %v1448, 2
  %v1450 = vadd.f32 %v1448, %v1449
  %v1451 = vrot.slane %v1450, 1
  %v1452 = vadd.f32 %v1450, %v1451
  %vm1453 = vcmp.eq.s32.totalorder %v994, 0
  %vm1454 = vcmp.eq.s32.totalorder %v994, 1
  %v1455 = vsel %vm1454, %v1452, 0.0
  %v1456 = vsel %vm1453, %v1319, %v1455
  %1457 = vst [vmem:[%s7] sm:$0xff] %v1456
  // Predicated region
  $region26: #{point_transformer_layer.9} parent=0 // pred_check
    _
  $region27: #{point_transformer_layer.9} parent=0 // pred_check_branch
    %1459 = sbr.rel (0) target = $region29
  $region28: #{point_transformer_layer.9} parent=0 // pred_region
    _
  $region29: #{point_transformer_layer.9} parent=0 // pred_fallthru
    _
  // Predicated region
  $region30: #{point_transformer_layer.9} parent=0 // pred_check
    _
  $region31: #{point_transformer_layer.9} parent=0 // pred_check_branch
    %1461 = sbr.rel (0) target = $region33
  $region32: #{point_transformer_layer.9} parent=0 // pred_region
    _
  $region33: #{point_transformer_layer.9} parent=0 // pred_fallthru
    _
  // Predicated region
  $region34: #{point_transformer_layer.9} parent=0 // pred_check
    _
  $region35: #{point_transformer_layer.9} parent=0 // pred_check_branch
    %1463 = sbr.rel (0) target = $region37
  $region36: #{point_transformer_layer.9} parent=0 // pred_region
    _
  $region37: #{point_transformer_layer.9} parent=0 // pred_fallthru
    _
  // Predicated region
  $region38: #{point_transformer_layer.9} parent=0 // pred_check
    _
  $region39: #{point_transformer_layer.9} parent=0 // pred_check_branch
    %1465 = sbr.rel (0) target = $region41
  $region40: #{point_transformer_layer.9} parent=0 // pred_region
    _
  $region41: #{point_transformer_layer.9} parent=0 // pred_fallthru
    _

// kernel: point_transformer_layer.11
$region0: #{point_transformer_layer.11}
  #allocation0 [shape = 'u32[]', space=smem, size = 0x4, offset = 0x4, fixed_abs, tag = 'smem constant byte address 0x4 - core index']
  #allocation1 [shape = 'u32[72,128]{1,0:T(1,128)}', space=vmem, size = 0x9000, scoped, tag = 'internal scratch']
  %s0 = inlined_call_operand.vmem [shape: bf16[64,8,32], index: 0, kind: input, shape index: {}]
  %s1 = inlined_call_operand.vmem [shape: bf16[64,8,32], index: 1, kind: input, shape index: {}]
  %s2 = inlined_call_operand.vmem [shape: bf16[64,8,32], index: 2, kind: input, shape index: {}]
  %s3 = inlined_call_operand.hbm [shape: f32[64,32], index: 3, kind: output, shape index: {}]
  %s4 = sld [smem:[#allocation0]]
  $region22: #{point_transformer_layer.11} parent=0
    _
  %s6 = ssub.s32 1, %s4
  %s7 = scalar_select 0, %s6, %s4
  $region1: #{point_transformer_layer.11} parent=0
    #allocation2 [shape = 'u8[32768]{0}', space=vmem, size = 0x8000, scoped, tag = 'output window, operand 0, single buffered']
    #allocation3 [shape = 's32[1]{0}', space=sflag, size = 0x4, scoped, tag = 'scoped memory for point_transformer_layer.11']
    %8 = vsyncpa [#allocation3], 0
    // Predicated region
    $region2: #{point_transformer_layer.11} parent=1 // pred_check
      _
    $region3: #{point_transformer_layer.11} parent=1 // pred_check_branch
      %10 = sbr.rel (0) target = $region5
    $region4: #{point_transformer_layer.11} parent=1 // pred_region
      _
    $region5: #{point_transformer_layer.11} parent=1 // pred_fallthru
      _
    // Predicated region
    $region6: #{point_transformer_layer.11} parent=1 // pred_check
      _
    $region7: #{point_transformer_layer.11} parent=1 // pred_check_branch
      %12 = sbr.rel (0) target = $region9
    $region8: #{point_transformer_layer.11} parent=1 // pred_region
      _
    $region9: #{point_transformer_layer.11} parent=1 // pred_fallthru
      _
    // Predicated region
    $region10: #{point_transformer_layer.11} parent=1 // pred_check
      _
    $region11: #{point_transformer_layer.11} parent=1 // pred_check_branch
      %14 = sbr.rel (0) target = $region13
    $region12: #{point_transformer_layer.11} parent=1 // pred_region
      _
    $region13: #{point_transformer_layer.11} parent=1 // pred_fallthru
      _
    %v15 = vld [vmem:[%s0] sm:$0xf]
    %v16 = vld [vmem:[%s0 + $0x4] sm:$0xf]
    %v17 = vld [vmem:[%s0 + $0x8] sm:$0xf]
    %v18 = vld [vmem:[%s0 + $0xc] sm:$0xf]
    %v19 = vld [vmem:[%s0 + $0x10] sm:$0xf]
    %v20 = vld [vmem:[%s0 + $0x14] sm:$0xf]
    %v21 = vld [vmem:[%s0 + $0x18] sm:$0xf]
    %v22 = vld [vmem:[%s0 + $0x1c] sm:$0xf]
    %v23 = vld [vmem:[%s0 + $0x20] sm:$0xf]
    %v24 = vld [vmem:[%s0 + $0x24] sm:$0xf]
    %v25 = vld [vmem:[%s0 + $0x28] sm:$0xf]
    %v26 = vld [vmem:[%s0 + $0x2c] sm:$0xf]
    %v27 = vld [vmem:[%s0 + $0x30] sm:$0xf]
    %v28 = vld [vmem:[%s0 + $0x34] sm:$0xf]
    %v29 = vld [vmem:[%s0 + $0x38] sm:$0xf]
    %v30 = vld [vmem:[%s0 + $0x3c] sm:$0xf]
    %v31 = vld [vmem:[%s0 + $0x40] sm:$0xf]
    %v32 = vld [vmem:[%s0 + $0x44] sm:$0xf]
    %v33 = vld [vmem:[%s0 + $0x48] sm:$0xf]
    %v34 = vld [vmem:[%s0 + $0x4c] sm:$0xf]
    %v35 = vld [vmem:[%s0 + $0x50] sm:$0xf]
    %v36 = vld [vmem:[%s0 + $0x54] sm:$0xf]
    %v37 = vld [vmem:[%s0 + $0x58] sm:$0xf]
    %v38 = vld [vmem:[%s0 + $0x5c] sm:$0xf]
    %v39 = vld [vmem:[%s0 + $0x60] sm:$0xf]
    %v40 = vld [vmem:[%s0 + $0x64] sm:$0xf]
    %v41 = vld [vmem:[%s0 + $0x68] sm:$0xf]
    %v42 = vld [vmem:[%s0 + $0x6c] sm:$0xf]
    %v43 = vld [vmem:[%s0 + $0x70] sm:$0xf]
    %v44 = vld [vmem:[%s0 + $0x74] sm:$0xf]
    %v45 = vld [vmem:[%s0 + $0x78] sm:$0xf]
    %v46 = vld [vmem:[%s0 + $0x7c] sm:$0xf]
    %v47 = vld [vmem:[%s0 + $0x80] sm:$0xf]
    %v48 = vld [vmem:[%s0 + $0x84] sm:$0xf]
    %v49 = vld [vmem:[%s0 + $0x88] sm:$0xf]
    %v50 = vld [vmem:[%s0 + $0x8c] sm:$0xf]
    %v51 = vld [vmem:[%s0 + $0x90] sm:$0xf]
    %v52 = vld [vmem:[%s0 + $0x94] sm:$0xf]
    %v53 = vld [vmem:[%s0 + $0x98] sm:$0xf]
    %v54 = vld [vmem:[%s0 + $0x9c] sm:$0xf]
    %v55 = vld [vmem:[%s0 + $0xa0] sm:$0xf]
    %v56 = vld [vmem:[%s0 + $0xa4] sm:$0xf]
    %v57 = vld [vmem:[%s0 + $0xa8] sm:$0xf]
    %v58 = vld [vmem:[%s0 + $0xac] sm:$0xf]
    %v59 = vld [vmem:[%s0 + $0xb0] sm:$0xf]
    %v60 = vld [vmem:[%s0 + $0xb4] sm:$0xf]
    %v61 = vld [vmem:[%s0 + $0xb8] sm:$0xf]
    %v62 = vld [vmem:[%s0 + $0xbc] sm:$0xf]
    %v63 = vld [vmem:[%s0 + $0xc0] sm:$0xf]
    %v64 = vld [vmem:[%s0 + $0xc4] sm:$0xf]
    %v65 = vld [vmem:[%s0 + $0xc8] sm:$0xf]
    %v66 = vld [vmem:[%s0 + $0xcc] sm:$0xf]
    %v67 = vld [vmem:[%s0 + $0xd0] sm:$0xf]
    %v68 = vld [vmem:[%s0 + $0xd4] sm:$0xf]
    %v69 = vld [vmem:[%s0 + $0xd8] sm:$0xf]
    %v70 = vld [vmem:[%s0 + $0xdc] sm:$0xf]
    %v71 = vld [vmem:[%s0 + $0xe0] sm:$0xf]
    %v72 = vld [vmem:[%s0 + $0xe4] sm:$0xf]
    %v73 = vld [vmem:[%s0 + $0xe8] sm:$0xf]
    %v74 = vld [vmem:[%s0 + $0xec] sm:$0xf]
    %v75 = vld [vmem:[%s0 + $0xf0] sm:$0xf]
    %v76 = vld [vmem:[%s0 + $0xf4] sm:$0xf]
    %v77 = vld [vmem:[%s0 + $0xf8] sm:$0xf]
    %v78 = vld [vmem:[%s0 + $0xfc] sm:$0xf]
    %v79 = vunpack.c.l.bf16 %v15
    %v80 = vunpack.c.l.bf16 %v16
    %v81 = vunpack.c.l.bf16 %v17
    %v82 = vunpack.c.l.bf16 %v18
    %v83 = vunpack.c.l.bf16 %v19
    %v84 = vunpack.c.l.bf16 %v20
    %v85 = vunpack.c.l.bf16 %v21
    %v86 = vunpack.c.l.bf16 %v22
    %v87 = vunpack.c.l.bf16 %v23
    %v88 = vunpack.c.l.bf16 %v24
    %v89 = vunpack.c.l.bf16 %v25
    %v90 = vunpack.c.l.bf16 %v26
    %v91 = vunpack.c.l.bf16 %v27
    %v92 = vunpack.c.l.bf16 %v28
    %v93 = vunpack.c.l.bf16 %v29
    %v94 = vunpack.c.l.bf16 %v30
    %v95 = vunpack.c.l.bf16 %v31
    %v96 = vunpack.c.l.bf16 %v32
    %v97 = vunpack.c.l.bf16 %v33
    %v98 = vunpack.c.l.bf16 %v34
    %v99 = vunpack.c.l.bf16 %v35
    %v100 = vunpack.c.l.bf16 %v36
    %v101 = vunpack.c.l.bf16 %v37
    %v102 = vunpack.c.l.bf16 %v38
    %v103 = vunpack.c.l.bf16 %v39
    %v104 = vunpack.c.l.bf16 %v40
    %v105 = vunpack.c.l.bf16 %v41
    %v106 = vunpack.c.l.bf16 %v42
    %v107 = vunpack.c.l.bf16 %v43
    %v108 = vunpack.c.l.bf16 %v44
    %v109 = vunpack.c.l.bf16 %v45
    %v110 = vunpack.c.l.bf16 %v46
    %v111 = vunpack.c.l.bf16 %v47
    %v112 = vunpack.c.l.bf16 %v48
    %v113 = vunpack.c.l.bf16 %v49
    %v114 = vunpack.c.l.bf16 %v50
    %v115 = vunpack.c.l.bf16 %v51
    %v116 = vunpack.c.l.bf16 %v52
    %v117 = vunpack.c.l.bf16 %v53
    %v118 = vunpack.c.l.bf16 %v54
    %v119 = vunpack.c.l.bf16 %v55
    %v120 = vunpack.c.l.bf16 %v56
    %v121 = vunpack.c.l.bf16 %v57
    %v122 = vunpack.c.l.bf16 %v58
    %v123 = vunpack.c.l.bf16 %v59
    %v124 = vunpack.c.l.bf16 %v60
    %v125 = vunpack.c.l.bf16 %v61
    %v126 = vunpack.c.l.bf16 %v62
    %v127 = vunpack.c.l.bf16 %v63
    %v128 = vunpack.c.l.bf16 %v64
    %v129 = vunpack.c.l.bf16 %v65
    %v130 = vunpack.c.l.bf16 %v66
    %v131 = vunpack.c.l.bf16 %v67
    %v132 = vunpack.c.l.bf16 %v68
    %v133 = vunpack.c.l.bf16 %v69
    %v134 = vunpack.c.l.bf16 %v70
    %v135 = vunpack.c.l.bf16 %v71
    %v136 = vunpack.c.l.bf16 %v72
    %v137 = vunpack.c.l.bf16 %v73
    %v138 = vunpack.c.l.bf16 %v74
    %v139 = vunpack.c.l.bf16 %v75
    %v140 = vunpack.c.l.bf16 %v76
    %v141 = vunpack.c.l.bf16 %v77
    %v142 = vunpack.c.l.bf16 %v78
    %v143 = vld [vmem:[%s1] sm:$0xf]
    %v144 = vld [vmem:[%s1 + $0x4] sm:$0xf]
    %v145 = vld [vmem:[%s1 + $0x8] sm:$0xf]
    %v146 = vld [vmem:[%s1 + $0xc] sm:$0xf]
    %v147 = vld [vmem:[%s1 + $0x10] sm:$0xf]
    %v148 = vld [vmem:[%s1 + $0x14] sm:$0xf]
    %v149 = vld [vmem:[%s1 + $0x18] sm:$0xf]
    %v150 = vld [vmem:[%s1 + $0x1c] sm:$0xf]
    %v151 = vld [vmem:[%s1 + $0x20] sm:$0xf]
    %v152 = vld [vmem:[%s1 + $0x24] sm:$0xf]
    %v153 = vld [vmem:[%s1 + $0x28] sm:$0xf]
    %v154 = vld [vmem:[%s1 + $0x2c] sm:$0xf]
    %v155 = vld [vmem:[%s1 + $0x30] sm:$0xf]
    %v156 = vld [vmem:[%s1 + $0x34] sm:$0xf]
    %v157 = vld [vmem:[%s1 + $0x38] sm:$0xf]
    %v158 = vld [vmem:[%s1 + $0x3c] sm:$0xf]
    %v159 = vld [vmem:[%s1 + $0x40] sm:$0xf]
    %v160 = vld [vmem:[%s1 + $0x44] sm:$0xf]
    %v161 = vld [vmem:[%s1 + $0x48] sm:$0xf]
    %v162 = vld [vmem:[%s1 + $0x4c] sm:$0xf]
    %v163 = vld [vmem:[%s1 + $0x50] sm:$0xf]
    %v164 = vld [vmem:[%s1 + $0x54] sm:$0xf]
    %v165 = vld [vmem:[%s1 + $0x58] sm:$0xf]
    %v166 = vld [vmem:[%s1 + $0x5c] sm:$0xf]
    %v167 = vld [vmem:[%s1 + $0x60] sm:$0xf]
    %v168 = vld [vmem:[%s1 + $0x64] sm:$0xf]
    %v169 = vld [vmem:[%s1 + $0x68] sm:$0xf]
    %v170 = vld [vmem:[%s1 + $0x6c] sm:$0xf]
    %v171 = vld [vmem:[%s1 + $0x70] sm:$0xf]
    %v172 = vld [vmem:[%s1 + $0x74] sm:$0xf]
    %v173 = vld [vmem:[%s1 + $0x78] sm:$0xf]
    %v174 = vld [vmem:[%s1 + $0x7c] sm:$0xf]
    %v175 = vld [vmem:[%s1 + $0x80] sm:$0xf]
    %v176 = vld [vmem:[%s1 + $0x84] sm:$0xf]
    %v177 = vld [vmem:[%s1 + $0x88] sm:$0xf]
    %v178 = vld [vmem:[%s1 + $0x8c] sm:$0xf]
    %v179 = vld [vmem:[%s1 + $0x90] sm:$0xf]
    %v180 = vld [vmem:[%s1 + $0x94] sm:$0xf]
    %v181 = vld [vmem:[%s1 + $0x98] sm:$0xf]
    %v182 = vld [vmem:[%s1 + $0x9c] sm:$0xf]
    %v183 = vld [vmem:[%s1 + $0xa0] sm:$0xf]
    %v184 = vld [vmem:[%s1 + $0xa4] sm:$0xf]
    %v185 = vld [vmem:[%s1 + $0xa8] sm:$0xf]
    %v186 = vld [vmem:[%s1 + $0xac] sm:$0xf]
    %v187 = vld [vmem:[%s1 + $0xb0] sm:$0xf]
    %v188 = vld [vmem:[%s1 + $0xb4] sm:$0xf]
    %v189 = vld [vmem:[%s1 + $0xb8] sm:$0xf]
    %v190 = vld [vmem:[%s1 + $0xbc] sm:$0xf]
    %v191 = vld [vmem:[%s1 + $0xc0] sm:$0xf]
    %v192 = vld [vmem:[%s1 + $0xc4] sm:$0xf]
    %v193 = vld [vmem:[%s1 + $0xc8] sm:$0xf]
    %v194 = vld [vmem:[%s1 + $0xcc] sm:$0xf]
    %v195 = vld [vmem:[%s1 + $0xd0] sm:$0xf]
    %v196 = vld [vmem:[%s1 + $0xd4] sm:$0xf]
    %v197 = vld [vmem:[%s1 + $0xd8] sm:$0xf]
    %v198 = vld [vmem:[%s1 + $0xdc] sm:$0xf]
    %v199 = vld [vmem:[%s1 + $0xe0] sm:$0xf]
    %v200 = vld [vmem:[%s1 + $0xe4] sm:$0xf]
    %v201 = vld [vmem:[%s1 + $0xe8] sm:$0xf]
    %v202 = vld [vmem:[%s1 + $0xec] sm:$0xf]
    %v203 = vld [vmem:[%s1 + $0xf0] sm:$0xf]
    %v204 = vld [vmem:[%s1 + $0xf4] sm:$0xf]
    %v205 = vld [vmem:[%s1 + $0xf8] sm:$0xf]
    %v206 = vld [vmem:[%s1 + $0xfc] sm:$0xf]
    %v207 = vunpack.c.l.bf16 %v143
    %v208 = vunpack.c.l.bf16 %v144
    %v209 = vunpack.c.l.bf16 %v145
    %v210 = vunpack.c.l.bf16 %v146
    %v211 = vunpack.c.l.bf16 %v147
    %v212 = vunpack.c.l.bf16 %v148
    %v213 = vunpack.c.l.bf16 %v149
    %v214 = vunpack.c.l.bf16 %v150
    %v215 = vunpack.c.l.bf16 %v151
    %v216 = vunpack.c.l.bf16 %v152
    %v217 = vunpack.c.l.bf16 %v153
    %v218 = vunpack.c.l.bf16 %v154
    %v219 = vunpack.c.l.bf16 %v155
    %v220 = vunpack.c.l.bf16 %v156
    %v221 = vunpack.c.l.bf16 %v157
    %v222 = vunpack.c.l.bf16 %v158
    %v223 = vunpack.c.l.bf16 %v159
    %v224 = vunpack.c.l.bf16 %v160
    %v225 = vunpack.c.l.bf16 %v161
    %v226 = vunpack.c.l.bf16 %v162
    %v227 = vunpack.c.l.bf16 %v163
    %v228 = vunpack.c.l.bf16 %v164
    %v229 = vunpack.c.l.bf16 %v165
    %v230 = vunpack.c.l.bf16 %v166
    %v231 = vunpack.c.l.bf16 %v167
    %v232 = vunpack.c.l.bf16 %v168
    %v233 = vunpack.c.l.bf16 %v169
    %v234 = vunpack.c.l.bf16 %v170
    %v235 = vunpack.c.l.bf16 %v171
    %v236 = vunpack.c.l.bf16 %v172
    %v237 = vunpack.c.l.bf16 %v173
    %v238 = vunpack.c.l.bf16 %v174
    %v239 = vunpack.c.l.bf16 %v175
    %v240 = vunpack.c.l.bf16 %v176
    %v241 = vunpack.c.l.bf16 %v177
    %v242 = vunpack.c.l.bf16 %v178
    %v243 = vunpack.c.l.bf16 %v179
    %v244 = vunpack.c.l.bf16 %v180
    %v245 = vunpack.c.l.bf16 %v181
    %v246 = vunpack.c.l.bf16 %v182
    %v247 = vunpack.c.l.bf16 %v183
    %v248 = vunpack.c.l.bf16 %v184
    %v249 = vunpack.c.l.bf16 %v185
    %v250 = vunpack.c.l.bf16 %v186
    %v251 = vunpack.c.l.bf16 %v187
    %v252 = vunpack.c.l.bf16 %v188
    %v253 = vunpack.c.l.bf16 %v189
    %v254 = vunpack.c.l.bf16 %v190
    %v255 = vunpack.c.l.bf16 %v191
    %v256 = vunpack.c.l.bf16 %v192
    %v257 = vunpack.c.l.bf16 %v193
    %v258 = vunpack.c.l.bf16 %v194
    %v259 = vunpack.c.l.bf16 %v195
    %v260 = vunpack.c.l.bf16 %v196
    %v261 = vunpack.c.l.bf16 %v197
    %v262 = vunpack.c.l.bf16 %v198
    %v263 = vunpack.c.l.bf16 %v199
    %v264 = vunpack.c.l.bf16 %v200
    %v265 = vunpack.c.l.bf16 %v201
    %v266 = vunpack.c.l.bf16 %v202
    %v267 = vunpack.c.l.bf16 %v203
    %v268 = vunpack.c.l.bf16 %v204
    %v269 = vunpack.c.l.bf16 %v205
    %v270 = vunpack.c.l.bf16 %v206
    %v271 = vld [vmem:[%s2] sm:$0xf]
    %v272 = vld [vmem:[%s2 + $0x4] sm:$0xf]
    %v273 = vld [vmem:[%s2 + $0x8] sm:$0xf]
    %v274 = vld [vmem:[%s2 + $0xc] sm:$0xf]
    %v275 = vld [vmem:[%s2 + $0x10] sm:$0xf]
    %v276 = vld [vmem:[%s2 + $0x14] sm:$0xf]
    %v277 = vld [vmem:[%s2 + $0x18] sm:$0xf]
    %v278 = vld [vmem:[%s2 + $0x1c] sm:$0xf]
    %v279 = vld [vmem:[%s2 + $0x20] sm:$0xf]
    %v280 = vld [vmem:[%s2 + $0x24] sm:$0xf]
    %v281 = vld [vmem:[%s2 + $0x28] sm:$0xf]
    %v282 = vld [vmem:[%s2 + $0x2c] sm:$0xf]
    %v283 = vld [vmem:[%s2 + $0x30] sm:$0xf]
    %v284 = vld [vmem:[%s2 + $0x34] sm:$0xf]
    %v285 = vld [vmem:[%s2 + $0x38] sm:$0xf]
    %v286 = vld [vmem:[%s2 + $0x3c] sm:$0xf]
    %v287 = vld [vmem:[%s2 + $0x40] sm:$0xf]
    %v288 = vld [vmem:[%s2 + $0x44] sm:$0xf]
    %v289 = vld [vmem:[%s2 + $0x48] sm:$0xf]
    %v290 = vld [vmem:[%s2 + $0x4c] sm:$0xf]
    %v291 = vld [vmem:[%s2 + $0x50] sm:$0xf]
    %v292 = vld [vmem:[%s2 + $0x54] sm:$0xf]
    %v293 = vld [vmem:[%s2 + $0x58] sm:$0xf]
    %v294 = vld [vmem:[%s2 + $0x5c] sm:$0xf]
    %v295 = vld [vmem:[%s2 + $0x60] sm:$0xf]
    %v296 = vld [vmem:[%s2 + $0x64] sm:$0xf]
    %v297 = vld [vmem:[%s2 + $0x68] sm:$0xf]
    %v298 = vld [vmem:[%s2 + $0x6c] sm:$0xf]
    %v299 = vld [vmem:[%s2 + $0x70] sm:$0xf]
    %v300 = vld [vmem:[%s2 + $0x74] sm:$0xf]
    %v301 = vld [vmem:[%s2 + $0x78] sm:$0xf]
    %v302 = vld [vmem:[%s2 + $0x7c] sm:$0xf]
    %v303 = vld [vmem:[%s2 + $0x80] sm:$0xf]
    %v304 = vld [vmem:[%s2 + $0x84] sm:$0xf]
    %v305 = vld [vmem:[%s2 + $0x88] sm:$0xf]
    %v306 = vld [vmem:[%s2 + $0x8c] sm:$0xf]
    %v307 = vld [vmem:[%s2 + $0x90] sm:$0xf]
    %v308 = vld [vmem:[%s2 + $0x94] sm:$0xf]
    %v309 = vld [vmem:[%s2 + $0x98] sm:$0xf]
    %v310 = vld [vmem:[%s2 + $0x9c] sm:$0xf]
    %v311 = vld [vmem:[%s2 + $0xa0] sm:$0xf]
    %v312 = vld [vmem:[%s2 + $0xa4] sm:$0xf]
    %v313 = vld [vmem:[%s2 + $0xa8] sm:$0xf]
    %v314 = vld [vmem:[%s2 + $0xac] sm:$0xf]
    %v315 = vld [vmem:[%s2 + $0xb0] sm:$0xf]
    %v316 = vld [vmem:[%s2 + $0xb4] sm:$0xf]
    %v317 = vld [vmem:[%s2 + $0xb8] sm:$0xf]
    %v318 = vld [vmem:[%s2 + $0xbc] sm:$0xf]
    %v319 = vld [vmem:[%s2 + $0xc0] sm:$0xf]
    %v320 = vld [vmem:[%s2 + $0xc4] sm:$0xf]
    %v321 = vld [vmem:[%s2 + $0xc8] sm:$0xf]
    %v322 = vld [vmem:[%s2 + $0xcc] sm:$0xf]
    %v323 = vld [vmem:[%s2 + $0xd0] sm:$0xf]
    %v324 = vld [vmem:[%s2 + $0xd4] sm:$0xf]
    %v325 = vld [vmem:[%s2 + $0xd8] sm:$0xf]
    %v326 = vld [vmem:[%s2 + $0xdc] sm:$0xf]
    %v327 = vld [vmem:[%s2 + $0xe0] sm:$0xf]
    %v328 = vld [vmem:[%s2 + $0xe4] sm:$0xf]
    %v329 = vld [vmem:[%s2 + $0xe8] sm:$0xf]
    %v330 = vld [vmem:[%s2 + $0xec] sm:$0xf]
    %v331 = vld [vmem:[%s2 + $0xf0] sm:$0xf]
    %v332 = vld [vmem:[%s2 + $0xf4] sm:$0xf]
    %v333 = vld [vmem:[%s2 + $0xf8] sm:$0xf]
    %v334 = vld [vmem:[%s2 + $0xfc] sm:$0xf]
    %v335 = vunpack.c.l.bf16 %v271
    %v336 = vunpack.c.l.bf16 %v272
    %v337 = vunpack.c.l.bf16 %v273
    %v338 = vunpack.c.l.bf16 %v274
    %v339 = vunpack.c.l.bf16 %v275
    %v340 = vunpack.c.l.bf16 %v276
    %v341 = vunpack.c.l.bf16 %v277
    %v342 = vunpack.c.l.bf16 %v278
    %v343 = vunpack.c.l.bf16 %v279
    %v344 = vunpack.c.l.bf16 %v280
    %v345 = vunpack.c.l.bf16 %v281
    %v346 = vunpack.c.l.bf16 %v282
    %v347 = vunpack.c.l.bf16 %v283
    %v348 = vunpack.c.l.bf16 %v284
    %v349 = vunpack.c.l.bf16 %v285
    %v350 = vunpack.c.l.bf16 %v286
    %v351 = vunpack.c.l.bf16 %v287
    %v352 = vunpack.c.l.bf16 %v288
    %v353 = vunpack.c.l.bf16 %v289
    %v354 = vunpack.c.l.bf16 %v290
    %v355 = vunpack.c.l.bf16 %v291
    %v356 = vunpack.c.l.bf16 %v292
    %v357 = vunpack.c.l.bf16 %v293
    %v358 = vunpack.c.l.bf16 %v294
    %v359 = vunpack.c.l.bf16 %v295
    %v360 = vunpack.c.l.bf16 %v296
    %v361 = vunpack.c.l.bf16 %v297
    %v362 = vunpack.c.l.bf16 %v298
    %v363 = vunpack.c.l.bf16 %v299
    %v364 = vunpack.c.l.bf16 %v300
    %v365 = vunpack.c.l.bf16 %v301
    %v366 = vunpack.c.l.bf16 %v302
    %v367 = vunpack.c.l.bf16 %v303
    %v368 = vunpack.c.l.bf16 %v304
    %v369 = vunpack.c.l.bf16 %v305
    %v370 = vunpack.c.l.bf16 %v306
    %v371 = vunpack.c.l.bf16 %v307
    %v372 = vunpack.c.l.bf16 %v308
    %v373 = vunpack.c.l.bf16 %v309
    %v374 = vunpack.c.l.bf16 %v310
    %v375 = vunpack.c.l.bf16 %v311
    %v376 = vunpack.c.l.bf16 %v312
    %v377 = vunpack.c.l.bf16 %v313
    %v378 = vunpack.c.l.bf16 %v314
    %v379 = vunpack.c.l.bf16 %v315
    %v380 = vunpack.c.l.bf16 %v316
    %v381 = vunpack.c.l.bf16 %v317
    %v382 = vunpack.c.l.bf16 %v318
    %v383 = vunpack.c.l.bf16 %v319
    %v384 = vunpack.c.l.bf16 %v320
    %v385 = vunpack.c.l.bf16 %v321
    %v386 = vunpack.c.l.bf16 %v322
    %v387 = vunpack.c.l.bf16 %v323
    %v388 = vunpack.c.l.bf16 %v324
    %v389 = vunpack.c.l.bf16 %v325
    %v390 = vunpack.c.l.bf16 %v326
    %v391 = vunpack.c.l.bf16 %v327
    %v392 = vunpack.c.l.bf16 %v328
    %v393 = vunpack.c.l.bf16 %v329
    %v394 = vunpack.c.l.bf16 %v330
    %v395 = vunpack.c.l.bf16 %v331
    %v396 = vunpack.c.l.bf16 %v332
    %v397 = vunpack.c.l.bf16 %v333
    %v398 = vunpack.c.l.bf16 %v334
    %v399 = vadd.f32 %v207, %v335
    %v400 = vadd.f32 %v208, %v336
    %v401 = vadd.f32 %v209, %v337
    %v402 = vadd.f32 %v210, %v338
    %v403 = vadd.f32 %v211, %v339
    %v404 = vadd.f32 %v212, %v340
    %v405 = vadd.f32 %v213, %v341
    %v406 = vadd.f32 %v214, %v342
    %v407 = vadd.f32 %v215, %v343
    %v408 = vadd.f32 %v216, %v344
    %v409 = vadd.f32 %v217, %v345
    %v410 = vadd.f32 %v218, %v346
    %v411 = vadd.f32 %v219, %v347
    %v412 = vadd.f32 %v220, %v348
    %v413 = vadd.f32 %v221, %v349
    %v414 = vadd.f32 %v222, %v350
    %v415 = vadd.f32 %v223, %v351
    %v416 = vadd.f32 %v224, %v352
    %v417 = vadd.f32 %v225, %v353
    %v418 = vadd.f32 %v226, %v354
    %v419 = vadd.f32 %v227, %v355
    %v420 = vadd.f32 %v228, %v356
    %v421 = vadd.f32 %v229, %v357
    %v422 = vadd.f32 %v230, %v358
    %v423 = vadd.f32 %v231, %v359
    %v424 = vadd.f32 %v232, %v360
    %v425 = vadd.f32 %v233, %v361
    %v426 = vadd.f32 %v234, %v362
    %v427 = vadd.f32 %v235, %v363
    %v428 = vadd.f32 %v236, %v364
    %v429 = vadd.f32 %v237, %v365
    %v430 = vadd.f32 %v238, %v366
    %v431 = vadd.f32 %v239, %v367
    %v432 = vadd.f32 %v240, %v368
    %v433 = vadd.f32 %v241, %v369
    %v434 = vadd.f32 %v242, %v370
    %v435 = vadd.f32 %v243, %v371
    %v436 = vadd.f32 %v244, %v372
    %v437 = vadd.f32 %v245, %v373
    %v438 = vadd.f32 %v246, %v374
    %v439 = vadd.f32 %v247, %v375
    %v440 = vadd.f32 %v248, %v376
    %v441 = vadd.f32 %v249, %v377
    %v442 = vadd.f32 %v250, %v378
    %v443 = vadd.f32 %v251, %v379
    %v444 = vadd.f32 %v252, %v380
    %v445 = vadd.f32 %v253, %v381
    %v446 = vadd.f32 %v254, %v382
    %v447 = vadd.f32 %v255, %v383
    %v448 = vadd.f32 %v256, %v384
    %v449 = vadd.f32 %v257, %v385
    %v450 = vadd.f32 %v258, %v386
    %v451 = vadd.f32 %v259, %v387
    %v452 = vadd.f32 %v260, %v388
    %v453 = vadd.f32 %v261, %v389
    %v454 = vadd.f32 %v262, %v390
    %v455 = vadd.f32 %v263, %v391
    %v456 = vadd.f32 %v264, %v392
    %v457 = vadd.f32 %v265, %v393
    %v458 = vadd.f32 %v266, %v394
    %v459 = vadd.f32 %v267, %v395
    %v460 = vadd.f32 %v268, %v396
    %v461 = vadd.f32 %v269, %v397
    %v462 = vadd.f32 %v270, %v398
    %vm463 = vcmask 261120
    %v464 = vsel %vm463, %v79, -inf
    %v465 = vrot.slane %v464, 4
    %v466 = vmax.f32 %v464, %v465
    %v467 = vrot.slane %v466, 2
    %v468 = vmax.f32 %v466, %v467
    %v469 = vrot.slane %v468, 1
    %v470 = vmax.f32 %v468, %v469
    %v471 = vsel %vm463, %v80, -inf
    %v472 = vrot.slane %v471, 4
    %v473 = vmax.f32 %v471, %v472
    %v474 = vrot.slane %v473, 2
    %v475 = vmax.f32 %v473, %v474
    %v476 = vrot.slane %v475, 1
    %v477 = vmax.f32 %v475, %v476
    %v478 = vsel %vm463, %v81, -inf
    %v479 = vrot.slane %v478, 4
    %v480 = vmax.f32 %v478, %v479
    %v481 = vrot.slane %v480, 2
    %v482 = vmax.f32 %v480, %v481
    %v483 = vrot.slane %v482, 1
    %v484 = vmax.f32 %v482, %v483
    %v485 = vsel %vm463, %v82, -inf
    %v486 = vrot.slane %v485, 4
    %v487 = vmax.f32 %v485, %v486
    %v488 = vrot.slane %v487, 2
    %v489 = vmax.f32 %v487, %v488
    %v490 = vrot.slane %v489, 1
    %v491 = vmax.f32 %v489, %v490
    %v492 = vsel %vm463, %v83, -inf
    %v493 = vrot.slane %v492, 4
    %v494 = vmax.f32 %v492, %v493
    %v495 = vrot.slane %v494, 2
    %v496 = vmax.f32 %v494, %v495
    %v497 = vrot.slane %v496, 1
    %v498 = vmax.f32 %v496, %v497
    %v499 = vsel %vm463, %v84, -inf
    %v500 = vrot.slane %v499, 4
    %v501 = vmax.f32 %v499, %v500
    %v502 = vrot.slane %v501, 2
    %v503 = vmax.f32 %v501, %v502
    %v504 = vrot.slane %v503, 1
    %v505 = vmax.f32 %v503, %v504
    %v506 = vsel %vm463, %v85, -inf
    %v507 = vrot.slane %v506, 4
    %v508 = vmax.f32 %v506, %v507
    %v509 = vrot.slane %v508, 2
    %v510 = vmax.f32 %v508, %v509
    %v511 = vrot.slane %v510, 1
    %v512 = vmax.f32 %v510, %v511
    %v513 = vsel %vm463, %v86, -inf
    %v514 = vrot.slane %v513, 4
    %v515 = vmax.f32 %v513, %v514
    %v516 = vrot.slane %v515, 2
    %v517 = vmax.f32 %v515, %v516
    %v518 = vrot.slane %v517, 1
    %v519 = vmax.f32 %v517, %v518
    %v520 = vsel %vm463, %v87, -inf
    %v521 = vrot.slane %v520, 4
    %v522 = vmax.f32 %v520, %v521
    %v523 = vrot.slane %v522, 2
    %v524 = vmax.f32 %v522, %v523
    %v525 = vrot.slane %v524, 1
    %v526 = vmax.f32 %v524, %v525
    %v527 = vsel %vm463, %v88, -inf
    %v528 = vrot.slane %v527, 4
    %v529 = vmax.f32 %v527, %v528
    %v530 = vrot.slane %v529, 2
    %v531 = vmax.f32 %v529, %v530
    %v532 = vrot.slane %v531, 1
    %v533 = vmax.f32 %v531, %v532
    %v534 = vsel %vm463, %v89, -inf
    %v535 = vrot.slane %v534, 4
    %v536 = vmax.f32 %v534, %v535
    %v537 = vrot.slane %v536, 2
    %v538 = vmax.f32 %v536, %v537
    %v539 = vrot.slane %v538, 1
    %v540 = vmax.f32 %v538, %v539
    %v541 = vsel %vm463, %v90, -inf
    %v542 = vrot.slane %v541, 4
    %v543 = vmax.f32 %v541, %v542
    %v544 = vrot.slane %v543, 2
    %v545 = vmax.f32 %v543, %v544
    %v546 = vrot.slane %v545, 1
    %v547 = vmax.f32 %v545, %v546
    %v548 = vsel %vm463, %v91, -inf
    %v549 = vrot.slane %v548, 4
    %v550 = vmax.f32 %v548, %v549
    %v551 = vrot.slane %v550, 2
    %v552 = vmax.f32 %v550, %v551
    %v553 = vrot.slane %v552, 1
    %v554 = vmax.f32 %v552, %v553
    %v555 = vsel %vm463, %v92, -inf
    %v556 = vrot.slane %v555, 4
    %v557 = vmax.f32 %v555, %v556
    %v558 = vrot.slane %v557, 2
    %v559 = vmax.f32 %v557, %v558
    %v560 = vrot.slane %v559, 1
    %v561 = vmax.f32 %v559, %v560
    %v562 = vsel %vm463, %v93, -inf
    %v563 = vrot.slane %v562, 4
    %v564 = vmax.f32 %v562, %v563
    %v565 = vrot.slane %v564, 2
    %v566 = vmax.f32 %v564, %v565
    %v567 = vrot.slane %v566, 1
    %v568 = vmax.f32 %v566, %v567
    %v569 = vsel %vm463, %v94, -inf
    %v570 = vrot.slane %v569, 4
    %v571 = vmax.f32 %v569, %v570
    %v572 = vrot.slane %v571, 2
    %v573 = vmax.f32 %v571, %v572
    %v574 = vrot.slane %v573, 1
    %v575 = vmax.f32 %v573, %v574
    %v576 = vsel %vm463, %v95, -inf
    %v577 = vrot.slane %v576, 4
    %v578 = vmax.f32 %v576, %v577
    %v579 = vrot.slane %v578, 2
    %v580 = vmax.f32 %v578, %v579
    %v581 = vrot.slane %v580, 1
    %v582 = vmax.f32 %v580, %v581
    %v583 = vsel %vm463, %v96, -inf
    %v584 = vrot.slane %v583, 4
    %v585 = vmax.f32 %v583, %v584
    %v586 = vrot.slane %v585, 2
    %v587 = vmax.f32 %v585, %v586
    %v588 = vrot.slane %v587, 1
    %v589 = vmax.f32 %v587, %v588
    %v590 = vsel %vm463, %v97, -inf
    %v591 = vrot.slane %v590, 4
    %v592 = vmax.f32 %v590, %v591
    %v593 = vrot.slane %v592, 2
    %v594 = vmax.f32 %v592, %v593
    %v595 = vrot.slane %v594, 1
    %v596 = vmax.f32 %v594, %v595
    %v597 = vsel %vm463, %v98, -inf
    %v598 = vrot.slane %v597, 4
    %v599 = vmax.f32 %v597, %v598
    %v600 = vrot.slane %v599, 2
    %v601 = vmax.f32 %v599, %v600
    %v602 = vrot.slane %v601, 1
    %v603 = vmax.f32 %v601, %v602
    %v604 = vsel %vm463, %v99, -inf
    %v605 = vrot.slane %v604, 4
    %v606 = vmax.f32 %v604, %v605
    %v607 = vrot.slane %v606, 2
    %v608 = vmax.f32 %v606, %v607
    %v609 = vrot.slane %v608, 1
    %v610 = vmax.f32 %v608, %v609
    %v611 = vsel %vm463, %v100, -inf
    %v612 = vrot.slane %v611, 4
    %v613 = vmax.f32 %v611, %v612
    %v614 = vrot.slane %v613, 2
    %v615 = vmax.f32 %v613, %v614
    %v616 = vrot.slane %v615, 1
    %v617 = vmax.f32 %v615, %v616
    %v618 = vsel %vm463, %v101, -inf
    %v619 = vrot.slane %v618, 4
    %v620 = vmax.f32 %v618, %v619
    %v621 = vrot.slane %v620, 2
    %v622 = vmax.f32 %v620, %v621
    %v623 = vrot.slane %v622, 1
    %v624 = vmax.f32 %v622, %v623
    %v625 = vsel %vm463, %v102, -inf
    %v626 = vrot.slane %v625, 4
    %v627 = vmax.f32 %v625, %v626
    %v628 = vrot.slane %v627, 2
    %v629 = vmax.f32 %v627, %v628
    %v630 = vrot.slane %v629, 1
    %v631 = vmax.f32 %v629, %v630
    %v632 = vsel %vm463, %v103, -inf
    %v633 = vrot.slane %v632, 4
    %v634 = vmax.f32 %v632, %v633
    %v635 = vrot.slane %v634, 2
    %v636 = vmax.f32 %v634, %v635
    %v637 = vrot.slane %v636, 1
    %v638 = vmax.f32 %v636, %v637
    %v639 = vsel %vm463, %v104, -inf
    %v640 = vrot.slane %v639, 4
    %v641 = vmax.f32 %v639, %v640
    %v642 = vrot.slane %v641, 2
    %v643 = vmax.f32 %v641, %v642
    %v644 = vrot.slane %v643, 1
    %v645 = vmax.f32 %v643, %v644
    %v646 = vsel %vm463, %v105, -inf
    %v647 = vrot.slane %v646, 4
    %v648 = vmax.f32 %v646, %v647
    %v649 = vrot.slane %v648, 2
    %v650 = vmax.f32 %v648, %v649
    %v651 = vrot.slane %v650, 1
    %v652 = vmax.f32 %v650, %v651
    %v653 = vsel %vm463, %v106, -inf
    %v654 = vrot.slane %v653, 4
    %v655 = vmax.f32 %v653, %v654
    %v656 = vrot.slane %v655, 2
    %v657 = vmax.f32 %v655, %v656
    %v658 = vrot.slane %v657, 1
    %v659 = vmax.f32 %v657, %v658
    %v660 = vsel %vm463, %v107, -inf
    %v661 = vrot.slane %v660, 4
    %v662 = vmax.f32 %v660, %v661
    %v663 = vrot.slane %v662, 2
    %v664 = vmax.f32 %v662, %v663
    %v665 = vrot.slane %v664, 1
    %v666 = vmax.f32 %v664, %v665
    %v667 = vsel %vm463, %v108, -inf
    %v668 = vrot.slane %v667, 4
    %v669 = vmax.f32 %v667, %v668
    %v670 = vrot.slane %v669, 2
    %v671 = vmax.f32 %v669, %v670
    %v672 = vrot.slane %v671, 1
    %v673 = vmax.f32 %v671, %v672
    %v674 = vsel %vm463, %v109, -inf
    %v675 = vrot.slane %v674, 4
    %v676 = vmax.f32 %v674, %v675
    %v677 = vrot.slane %v676, 2
    %v678 = vmax.f32 %v676, %v677
    %v679 = vrot.slane %v678, 1
    %v680 = vmax.f32 %v678, %v679
    %v681 = vsel %vm463, %v110, -inf
    %v682 = vrot.slane %v681, 4
    %v683 = vmax.f32 %v681, %v682
    %v684 = vrot.slane %v683, 2
    %v685 = vmax.f32 %v683, %v684
    %v686 = vrot.slane %v685, 1
    %v687 = vmax.f32 %v685, %v686
    %v688 = vsel %vm463, %v111, -inf
    %v689 = vrot.slane %v688, 4
    %v690 = vmax.f32 %v688, %v689
    %v691 = vrot.slane %v690, 2
    %v692 = vmax.f32 %v690, %v691
    %v693 = vrot.slane %v692, 1
    %v694 = vmax.f32 %v692, %v693
    %v695 = vsel %vm463, %v112, -inf
    %v696 = vrot.slane %v695, 4
    %v697 = vmax.f32 %v695, %v696
    %v698 = vrot.slane %v697, 2
    %v699 = vmax.f32 %v697, %v698
    %v700 = vrot.slane %v699, 1
    %v701 = vmax.f32 %v699, %v700
    %v702 = vsel %vm463, %v113, -inf
    %v703 = vrot.slane %v702, 4
    %v704 = vmax.f32 %v702, %v703
    %v705 = vrot.slane %v704, 2
    %v706 = vmax.f32 %v704, %v705
    %v707 = vrot.slane %v706, 1
    %v708 = vmax.f32 %v706, %v707
    %v709 = vsel %vm463, %v114, -inf
    %v710 = vrot.slane %v709, 4
    %v711 = vmax.f32 %v709, %v710
    %v712 = vrot.slane %v711, 2
    %v713 = vmax.f32 %v711, %v712
    %v714 = vrot.slane %v713, 1
    %v715 = vmax.f32 %v713, %v714
    %v716 = vsel %vm463, %v115, -inf
    %v717 = vrot.slane %v716, 4
    %v718 = vmax.f32 %v716, %v717
    %v719 = vrot.slane %v718, 2
    %v720 = vmax.f32 %v718, %v719
    %v721 = vrot.slane %v720, 1
    %v722 = vmax.f32 %v720, %v721
    %v723 = vsel %vm463, %v116, -inf
    %v724 = vrot.slane %v723, 4
    %v725 = vmax.f32 %v723, %v724
    %v726 = vrot.slane %v725, 2
    %v727 = vmax.f32 %v725, %v726
    %v728 = vrot.slane %v727, 1
    %v729 = vmax.f32 %v727, %v728
    %v730 = vsel %vm463, %v117, -inf
    %v731 = vrot.slane %v730, 4
    %v732 = vmax.f32 %v730, %v731
    %v733 = vrot.slane %v732, 2
    %v734 = vmax.f32 %v732, %v733
    %v735 = vrot.slane %v734, 1
    %v736 = vmax.f32 %v734, %v735
    %v737 = vsel %vm463, %v118, -inf
    %v738 = vrot.slane %v737, 4
    %v739 = vmax.f32 %v737, %v738
    %v740 = vrot.slane %v739, 2
    %v741 = vmax.f32 %v739, %v740
    %v742 = vrot.slane %v741, 1
    %v743 = vmax.f32 %v741, %v742
    %v744 = vsel %vm463, %v119, -inf
    %v745 = vrot.slane %v744, 4
    %v746 = vmax.f32 %v744, %v745
    %v747 = vrot.slane %v746, 2
    %v748 = vmax.f32 %v746, %v747
    %v749 = vrot.slane %v748, 1
    %v750 = vmax.f32 %v748, %v749
    %v751 = vsel %vm463, %v120, -inf
    %v752 = vrot.slane %v751, 4
    %v753 = vmax.f32 %v751, %v752
    %v754 = vrot.slane %v753, 2
    %v755 = vmax.f32 %v753, %v754
    %v756 = vrot.slane %v755, 1
    %v757 = vmax.f32 %v755, %v756
    %v758 = vsel %vm463, %v121, -inf
    %v759 = vrot.slane %v758, 4
    %v760 = vmax.f32 %v758, %v759
    %v761 = vrot.slane %v760, 2
    %v762 = vmax.f32 %v760, %v761
    %v763 = vrot.slane %v762, 1
    %v764 = vmax.f32 %v762, %v763
    %v765 = vsel %vm463, %v122, -inf
    %v766 = vrot.slane %v765, 4
    %v767 = vmax.f32 %v765, %v766
    %v768 = vrot.slane %v767, 2
    %v769 = vmax.f32 %v767, %v768
    %v770 = vrot.slane %v769, 1
    %v771 = vmax.f32 %v769, %v770
    %v772 = vsel %vm463, %v123, -inf
    %v773 = vrot.slane %v772, 4
    %v774 = vmax.f32 %v772, %v773
    %v775 = vrot.slane %v774, 2
    %v776 = vmax.f32 %v774, %v775
    %v777 = vrot.slane %v776, 1
    %v778 = vmax.f32 %v776, %v777
    %v779 = vsel %vm463, %v124, -inf
    %v780 = vrot.slane %v779, 4
    %v781 = vmax.f32 %v779, %v780
    %v782 = vrot.slane %v781, 2
    %v783 = vmax.f32 %v781, %v782
    %v784 = vrot.slane %v783, 1
    %v785 = vmax.f32 %v783, %v784
    %v786 = vsel %vm463, %v125, -inf
    %v787 = vrot.slane %v786, 4
    %v788 = vmax.f32 %v786, %v787
    %v789 = vrot.slane %v788, 2
    %v790 = vmax.f32 %v788, %v789
    %v791 = vrot.slane %v790, 1
    %v792 = vmax.f32 %v790, %v791
    %v793 = vsel %vm463, %v126, -inf
    %v794 = vrot.slane %v793, 4
    %v795 = vmax.f32 %v793, %v794
    %v796 = vrot.slane %v795, 2
    %v797 = vmax.f32 %v795, %v796
    %v798 = vrot.slane %v797, 1
    %v799 = vmax.f32 %v797, %v798
    %v800 = vsel %vm463, %v127, -inf
    %v801 = vrot.slane %v800, 4
    %v802 = vmax.f32 %v800, %v801
    %v803 = vrot.slane %v802, 2
    %v804 = vmax.f32 %v802, %v803
    %v805 = vrot.slane %v804, 1
    %v806 = vmax.f32 %v804, %v805
    %v807 = vsel %vm463, %v128, -inf
    %v808 = vrot.slane %v807, 4
    %v809 = vmax.f32 %v807, %v808
    %v810 = vrot.slane %v809, 2
    %v811 = vmax.f32 %v809, %v810
    %v812 = vrot.slane %v811, 1
    %v813 = vmax.f32 %v811, %v812
    %v814 = vsel %vm463, %v129, -inf
    %v815 = vrot.slane %v814, 4
    %v816 = vmax.f32 %v814, %v815
    %v817 = vrot.slane %v816, 2
    %v818 = vmax.f32 %v816, %v817
    %v819 = vrot.slane %v818, 1
    %v820 = vmax.f32 %v818, %v819
    %v821 = vsel %vm463, %v130, -inf
    %v822 = vrot.slane %v821, 4
    %v823 = vmax.f32 %v821, %v822
    %v824 = vrot.slane %v823, 2
    %v825 = vmax.f32 %v823, %v824
    %v826 = vrot.slane %v825, 1
    %v827 = vmax.f32 %v825, %v826
    %v828 = vsel %vm463, %v131, -inf
    %v829 = vrot.slane %v828, 4
    %v830 = vmax.f32 %v828, %v829
    %v831 = vrot.slane %v830, 2
    %v832 = vmax.f32 %v830, %v831
    %v833 = vrot.slane %v832, 1
    %v834 = vmax.f32 %v832, %v833
    %v835 = vsel %vm463, %v132, -inf
    %v836 = vrot.slane %v835, 4
    %v837 = vmax.f32 %v835, %v836
    %v838 = vrot.slane %v837, 2
    %v839 = vmax.f32 %v837, %v838
    %v840 = vrot.slane %v839, 1
    %v841 = vmax.f32 %v839, %v840
    %v842 = vsel %vm463, %v133, -inf
    %v843 = vrot.slane %v842, 4
    %v844 = vmax.f32 %v842, %v843
    %v845 = vrot.slane %v844, 2
    %v846 = vmax.f32 %v844, %v845
    %v847 = vrot.slane %v846, 1
    %v848 = vmax.f32 %v846, %v847
    %v849 = vsel %vm463, %v134, -inf
    %v850 = vrot.slane %v849, 4
    %v851 = vmax.f32 %v849, %v850
    %v852 = vrot.slane %v851, 2
    %v853 = vmax.f32 %v851, %v852
    %v854 = vrot.slane %v853, 1
    %v855 = vmax.f32 %v853, %v854
    %v856 = vsel %vm463, %v135, -inf
    %v857 = vrot.slane %v856, 4
    %v858 = vmax.f32 %v856, %v857
    %v859 = vrot.slane %v858, 2
    %v860 = vmax.f32 %v858, %v859
    %v861 = vrot.slane %v860, 1
    %v862 = vmax.f32 %v860, %v861
    %v863 = vsel %vm463, %v136, -inf
    %v864 = vrot.slane %v863, 4
    %v865 = vmax.f32 %v863, %v864
    %v866 = vrot.slane %v865, 2
    %v867 = vmax.f32 %v865, %v866
    %v868 = vrot.slane %v867, 1
    %v869 = vmax.f32 %v867, %v868
    %v870 = vsel %vm463, %v137, -inf
    %v871 = vrot.slane %v870, 4
    %v872 = vmax.f32 %v870, %v871
    %v873 = vrot.slane %v872, 2
    %v874 = vmax.f32 %v872, %v873
    %v875 = vrot.slane %v874, 1
    %v876 = vmax.f32 %v874, %v875
    %v877 = vsel %vm463, %v138, -inf
    %v878 = vrot.slane %v877, 4
    %v879 = vmax.f32 %v877, %v878
    %v880 = vrot.slane %v879, 2
    %v881 = vmax.f32 %v879, %v880
    %v882 = vrot.slane %v881, 1
    %v883 = vmax.f32 %v881, %v882
    %v884 = vsel %vm463, %v139, -inf
    %v885 = vrot.slane %v884, 4
    %v886 = vmax.f32 %v884, %v885
    %v887 = vrot.slane %v886, 2
    %v888 = vmax.f32 %v886, %v887
    %v889 = vrot.slane %v888, 1
    %v890 = vmax.f32 %v888, %v889
    %v891 = vsel %vm463, %v140, -inf
    %v892 = vrot.slane %v891, 4
    %v893 = vmax.f32 %v891, %v892
    %v894 = vrot.slane %v893, 2
    %v895 = vmax.f32 %v893, %v894
    %v896 = vrot.slane %v895, 1
    %v897 = vmax.f32 %v895, %v896
    %v898 = vsel %vm463, %v141, -inf
    %v899 = vrot.slane %v898, 4
    %v900 = vmax.f32 %v898, %v899
    %v901 = vrot.slane %v900, 2
    %v902 = vmax.f32 %v900, %v901
    %v903 = vrot.slane %v902, 1
    %v904 = vmax.f32 %v902, %v903
    %v905 = vsel %vm463, %v142, -inf
    %v906 = vrot.slane %v905, 4
    %v907 = vmax.f32 %v905, %v906
    %v908 = vrot.slane %v907, 2
    %v909 = vmax.f32 %v907, %v908
    %v910 = vrot.slane %v909, 1
    %v911 = vmax.f32 %v909, %v910
    %v912 = vsub.f32 %v79, %v470
    %v913 = vsub.f32 %v80, %v477
    %v914 = vsub.f32 %v81, %v484
    %v915 = vsub.f32 %v82, %v491
    %v916 = vsub.f32 %v83, %v498
    %v917 = vsub.f32 %v84, %v505
    %v918 = vsub.f32 %v85, %v512
    %v919 = vsub.f32 %v86, %v519
    %v920 = vsub.f32 %v87, %v526
    %v921 = vsub.f32 %v88, %v533
    %v922 = vsub.f32 %v89, %v540
    %v923 = vsub.f32 %v90, %v547
    %v924 = vsub.f32 %v91, %v554
    %v925 = vsub.f32 %v92, %v561
    %v926 = vsub.f32 %v93, %v568
    %v927 = vsub.f32 %v94, %v575
    %v928 = vsub.f32 %v95, %v582
    %v929 = vsub.f32 %v96, %v589
    %v930 = vsub.f32 %v97, %v596
    %v931 = vsub.f32 %v98, %v603
    %v932 = vsub.f32 %v99, %v610
    %v933 = vsub.f32 %v100, %v617
    %v934 = vsub.f32 %v101, %v624
    %v935 = vsub.f32 %v102, %v631
    %v936 = vsub.f32 %v103, %v638
    %v937 = vsub.f32 %v104, %v645
    %v938 = vsub.f32 %v105, %v652
    %v939 = vsub.f32 %v106, %v659
    %v940 = vsub.f32 %v107, %v666
    %v941 = vsub.f32 %v108, %v673
    %v942 = vsub.f32 %v109, %v680
    %v943 = vsub.f32 %v110, %v687
    %v944 = vsub.f32 %v111, %v694
    %v945 = vsub.f32 %v112, %v701
    %v946 = vsub.f32 %v113, %v708
    %v947 = vsub.f32 %v114, %v715
    %v948 = vsub.f32 %v115, %v722
    %v949 = vsub.f32 %v116, %v729
    %v950 = vsub.f32 %v117, %v736
    %v951 = vsub.f32 %v118, %v743
    %v952 = vsub.f32 %v119, %v750
    %v953 = vsub.f32 %v120, %v757
    %v954 = vsub.f32 %v121, %v764
    %v955 = vsub.f32 %v122, %v771
    %v956 = vsub.f32 %v123, %v778
    %v957 = vsub.f32 %v124, %v785
    %v958 = vsub.f32 %v125, %v792
    %v959 = vsub.f32 %v126, %v799
    %v960 = vsub.f32 %v127, %v806
    %v961 = vsub.f32 %v128, %v813
    %v962 = vsub.f32 %v129, %v820
    %v963 = vsub.f32 %v130, %v827
    %v964 = vsub.f32 %v131, %v834
    %v965 = vsub.f32 %v132, %v841
    %v966 = vsub.f32 %v133, %v848
    %v967 = vsub.f32 %v134, %v855
    %v968 = vsub.f32 %v135, %v862
    %v969 = vsub.f32 %v136, %v869
    %v970 = vsub.f32 %v137, %v876
    %v971 = vsub.f32 %v138, %v883
    %v972 = vsub.f32 %v139, %v890
    %v973 = vsub.f32 %v140, %v897
    %v974 = vsub.f32 %v141, %v904
    %v975 = vsub.f32 %v142, %v911
    %v976 = vmul.f32 %v912, 1.442695
    %v977 = vpow.pop %v976
    %v978 = vmul.f32 %v913, 1.442695
    %v979 = vpow.pop %v978
    %v980 = vmul.f32 %v914, 1.442695
    %v981 = vpow.pop %v980
    %v982 = vmul.f32 %v915, 1.442695
    %v983 = vpow.pop %v982
    %v984 = vmul.f32 %v916, 1.442695
    %v985 = vpow.pop %v984
    %v986 = vmul.f32 %v917, 1.442695
    %v987 = vpow.pop %v986
    %v988 = vmul.f32 %v918, 1.442695
    %v989 = vpow.pop %v988
    %v990 = vmul.f32 %v919, 1.442695
    %v991 = vpow.pop %v990
    %v992 = vmul.f32 %v920, 1.442695
    %v993 = vpow.pop %v992
    %v994 = vmul.f32 %v921, 1.442695
    %v995 = vpow.pop %v994
    %v996 = vmul.f32 %v922, 1.442695
    %v997 = vpow.pop %v996
    %v998 = vmul.f32 %v923, 1.442695
    %v999 = vpow.pop %v998
    %v1000 = vmul.f32 %v924, 1.442695
    %v1001 = vpow.pop %v1000
    %v1002 = vmul.f32 %v925, 1.442695
    %v1003 = vpow.pop %v1002
    %v1004 = vmul.f32 %v926, 1.442695
    %v1005 = vpow.pop %v1004
    %v1006 = vmul.f32 %v927, 1.442695
    %v1007 = vpow.pop %v1006
    %v1008 = vmul.f32 %v928, 1.442695
    %v1009 = vpow.pop %v1008
    %v1010 = vmul.f32 %v929, 1.442695
    %v1011 = vpow.pop %v1010
    %v1012 = vmul.f32 %v930, 1.442695
    %v1013 = vpow.pop %v1012
    %v1014 = vmul.f32 %v931, 1.442695
    %v1015 = vpow.pop %v1014
    %v1016 = vmul.f32 %v932, 1.442695
    %v1017 = vpow.pop %v1016
    %v1018 = vmul.f32 %v933, 1.442695
    %v1019 = vpow.pop %v1018
    %v1020 = vmul.f32 %v934, 1.442695
    %v1021 = vpow.pop %v1020
    %v1022 = vmul.f32 %v935, 1.442695
    %v1023 = vpow.pop %v1022
    %v1024 = vmul.f32 %v936, 1.442695
    %v1025 = vpow.pop %v1024
    %v1026 = vmul.f32 %v937, 1.442695
    %v1027 = vpow.pop %v1026
    %v1028 = vmul.f32 %v938, 1.442695
    %v1029 = vpow.pop %v1028
    %v1030 = vmul.f32 %v939, 1.442695
    %v1031 = vpow.pop %v1030
    %v1032 = vmul.f32 %v940, 1.442695
    %v1033 = vpow.pop %v1032
    %v1034 = vmul.f32 %v941, 1.442695
    %v1035 = vpow.pop %v1034
    %v1036 = vmul.f32 %v942, 1.442695
    %v1037 = vpow.pop %v1036
    %v1038 = vmul.f32 %v943, 1.442695
    %v1039 = vpow.pop %v1038
    %v1040 = vmul.f32 %v944, 1.442695
    %v1041 = vpow.pop %v1040
    %v1042 = vmul.f32 %v945, 1.442695
    %v1043 = vpow.pop %v1042
    %v1044 = vmul.f32 %v946, 1.442695
    %v1045 = vpow.pop %v1044
    %v1046 = vmul.f32 %v947, 1.442695
    %v1047 = vpow.pop %v1046
    %v1048 = vmul.f32 %v948, 1.442695
    %v1049 = vpow.pop %v1048
    %v1050 = vmul.f32 %v949, 1.442695
    %v1051 = vpow.pop %v1050
    %v1052 = vmul.f32 %v950, 1.442695
    %v1053 = vpow.pop %v1052
    %v1054 = vmul.f32 %v951, 1.442695
    %v1055 = vpow.pop %v1054
    %v1056 = vmul.f32 %v952, 1.442695
    %v1057 = vpow.pop %v1056
    %v1058 = vmul.f32 %v953, 1.442695
    %v1059 = vpow.pop %v1058
    %v1060 = vmul.f32 %v954, 1.442695
    %v1061 = vpow.pop %v1060
    %v1062 = vmul.f32 %v955, 1.442695
    %v1063 = vpow.pop %v1062
    %v1064 = vmul.f32 %v956, 1.442695
    %v1065 = vpow.pop %v1064
    %v1066 = vmul.f32 %v957, 1.442695
    %v1067 = vpow.pop %v1066
    %v1068 = vmul.f32 %v958, 1.442695
    %v1069 = vpow.pop %v1068
    %v1070 = vmul.f32 %v959, 1.442695
    %v1071 = vpow.pop %v1070
    %v1072 = vmul.f32 %v960, 1.442695
    %v1073 = vpow.pop %v1072
    %v1074 = vmul.f32 %v961, 1.442695
    %v1075 = vpow.pop %v1074
    %v1076 = vmul.f32 %v962, 1.442695
    %v1077 = vpow.pop %v1076
    %v1078 = vmul.f32 %v963, 1.442695
    %v1079 = vpow.pop %v1078
    %v1080 = vmul.f32 %v964, 1.442695
    %v1081 = vpow.pop %v1080
    %v1082 = vmul.f32 %v965, 1.442695
    %v1083 = vpow.pop %v1082
    %v1084 = vmul.f32 %v966, 1.442695
    %v1085 = vpow.pop %v1084
    %v1086 = vmul.f32 %v967, 1.442695
    %v1087 = vpow.pop %v1086
    %v1088 = vmul.f32 %v968, 1.442695
    %v1089 = vpow.pop %v1088
    %v1090 = vmul.f32 %v969, 1.442695
    %v1091 = vpow.pop %v1090
    %v1092 = vmul.f32 %v970, 1.442695
    %v1093 = vpow.pop %v1092
    %v1094 = vmul.f32 %v971, 1.442695
    %v1095 = vpow.pop %v1094
    %v1096 = vmul.f32 %v972, 1.442695
    %v1097 = vpow.pop %v1096
    %v1098 = vmul.f32 %v973, 1.442695
    %v1099 = vpow.pop %v1098
    %v1100 = vmul.f32 %v974, 1.442695
    %v1101 = vpow.pop %v1100
    %v1102 = vmul.f32 %v975, 1.442695
    %v1103 = vpow.pop %v1102
    %v1104 = vsel %vm463, %v977, 0.0
    %v1105 = vrot.slane %v1104, 4
    %v1106 = vadd.f32 %v1104, %v1105
    %v1107 = vrot.slane %v1106, 2
    %v1108 = vadd.f32 %v1106, %v1107
    %v1109 = vrot.slane %v1108, 1
    %v1110 = vadd.f32 %v1108, %v1109
    %v1111 = vsel %vm463, %v979, 0.0
    %v1112 = vrot.slane %v1111, 4
    %v1113 = vadd.f32 %v1111, %v1112
    %v1114 = vrot.slane %v1113, 2
    %v1115 = vadd.f32 %v1113, %v1114
    %v1116 = vrot.slane %v1115, 1
    %v1117 = vadd.f32 %v1115, %v1116
    %v1118 = vsel %vm463, %v981, 0.0
    %v1119 = vrot.slane %v1118, 4
    %v1120 = vadd.f32 %v1118, %v1119
    %v1121 = vrot.slane %v1120, 2
    %v1122 = vadd.f32 %v1120, %v1121
    %v1123 = vrot.slane %v1122, 1
    %v1124 = vadd.f32 %v1122, %v1123
    %v1125 = vsel %vm463, %v983, 0.0
    %v1126 = vrot.slane %v1125, 4
    %v1127 = vadd.f32 %v1125, %v1126
    %v1128 = vrot.slane %v1127, 2
    %v1129 = vadd.f32 %v1127, %v1128
    %v1130 = vrot.slane %v1129, 1
    %v1131 = vadd.f32 %v1129, %v1130
    %v1132 = vsel %vm463, %v985, 0.0
    %v1133 = vrot.slane %v1132, 4
    %v1134 = vadd.f32 %v1132, %v1133
    %v1135 = vrot.slane %v1134, 2
    %v1136 = vadd.f32 %v1134, %v1135
    %v1137 = vrot.slane %v1136, 1
    %v1138 = vadd.f32 %v1136, %v1137
    %v1139 = vsel %vm463, %v987, 0.0
    %v1140 = vrot.slane %v1139, 4
    %v1141 = vadd.f32 %v1139, %v1140
    %v1142 = vrot.slane %v1141, 2
    %v1143 = vadd.f32 %v1141, %v1142
    %v1144 = vrot.slane %v1143, 1
    %v1145 = vadd.f32 %v1143, %v1144
    %v1146 = vsel %vm463, %v989, 0.0
    %v1147 = vrot.slane %v1146, 4
    %v1148 = vadd.f32 %v1146, %v1147
    %v1149 = vrot.slane %v1148, 2
    %v1150 = vadd.f32 %v1148, %v1149
    %v1151 = vrot.slane %v1150, 1
    %v1152 = vadd.f32 %v1150, %v1151
    %v1153 = vsel %vm463, %v991, 0.0
    %v1154 = vrot.slane %v1153, 4
    %v1155 = vadd.f32 %v1153, %v1154
    %v1156 = vrot.slane %v1155, 2
    %v1157 = vadd.f32 %v1155, %v1156
    %v1158 = vrot.slane %v1157, 1
    %v1159 = vadd.f32 %v1157, %v1158
    %v1160 = vsel %vm463, %v993, 0.0
    %v1161 = vrot.slane %v1160, 4
    %v1162 = vadd.f32 %v1160, %v1161
    %v1163 = vrot.slane %v1162, 2
    %v1164 = vadd.f32 %v1162, %v1163
    %v1165 = vrot.slane %v1164, 1
    %v1166 = vadd.f32 %v1164, %v1165
    %v1167 = vsel %vm463, %v995, 0.0
    %v1168 = vrot.slane %v1167, 4
    %v1169 = vadd.f32 %v1167, %v1168
    %v1170 = vrot.slane %v1169, 2
    %v1171 = vadd.f32 %v1169, %v1170
    %v1172 = vrot.slane %v1171, 1
    %v1173 = vadd.f32 %v1171, %v1172
    %v1174 = vsel %vm463, %v997, 0.0
    %v1175 = vrot.slane %v1174, 4
    %v1176 = vadd.f32 %v1174, %v1175
    %v1177 = vrot.slane %v1176, 2
    %v1178 = vadd.f32 %v1176, %v1177
    %v1179 = vrot.slane %v1178, 1
    %v1180 = vadd.f32 %v1178, %v1179
    %v1181 = vsel %vm463, %v999, 0.0
    %v1182 = vrot.slane %v1181, 4
    %v1183 = vadd.f32 %v1181, %v1182
    %v1184 = vrot.slane %v1183, 2
    %v1185 = vadd.f32 %v1183, %v1184
    %v1186 = vrot.slane %v1185, 1
    %v1187 = vadd.f32 %v1185, %v1186
    %v1188 = vsel %vm463, %v1001, 0.0
    %v1189 = vrot.slane %v1188, 4
    %v1190 = vadd.f32 %v1188, %v1189
    %v1191 = vrot.slane %v1190, 2
    %v1192 = vadd.f32 %v1190, %v1191
    %v1193 = vrot.slane %v1192, 1
    %v1194 = vadd.f32 %v1192, %v1193
    %v1195 = vsel %vm463, %v1003, 0.0
    %v1196 = vrot.slane %v1195, 4
    %v1197 = vadd.f32 %v1195, %v1196
    %v1198 = vrot.slane %v1197, 2
    %v1199 = vadd.f32 %v1197, %v1198
    %v1200 = vrot.slane %v1199, 1
    %v1201 = vadd.f32 %v1199, %v1200
    %v1202 = vsel %vm463, %v1005, 0.0
    %v1203 = vrot.slane %v1202, 4
    %v1204 = vadd.f32 %v1202, %v1203
    %v1205 = vrot.slane %v1204, 2
    %v1206 = vadd.f32 %v1204, %v1205
    %v1207 = vrot.slane %v1206, 1
    %v1208 = vadd.f32 %v1206, %v1207
    %v1209 = vsel %vm463, %v1007, 0.0
    %v1210 = vrot.slane %v1209, 4
    %v1211 = vadd.f32 %v1209, %v1210
    %v1212 = vrot.slane %v1211, 2
    %v1213 = vadd.f32 %v1211, %v1212
    %v1214 = vrot.slane %v1213, 1
    %v1215 = vadd.f32 %v1213, %v1214
    %v1216 = vsel %vm463, %v1009, 0.0
    %v1217 = vrot.slane %v1216, 4
    %v1218 = vadd.f32 %v1216, %v1217
    %v1219 = vrot.slane %v1218, 2
    %v1220 = vadd.f32 %v1218, %v1219
    %v1221 = vrot.slane %v1220, 1
    %v1222 = vadd.f32 %v1220, %v1221
    %v1223 = vsel %vm463, %v1011, 0.0
    %v1224 = vrot.slane %v1223, 4
    %v1225 = vadd.f32 %v1223, %v1224
    %v1226 = vrot.slane %v1225, 2
    %v1227 = vadd.f32 %v1225, %v1226
    %v1228 = vrot.slane %v1227, 1
    %v1229 = vadd.f32 %v1227, %v1228
    %v1230 = vsel %vm463, %v1013, 0.0
    %v1231 = vrot.slane %v1230, 4
    %v1232 = vadd.f32 %v1230, %v1231
    %v1233 = vrot.slane %v1232, 2
    %v1234 = vadd.f32 %v1232, %v1233
    %v1235 = vrot.slane %v1234, 1
    %v1236 = vadd.f32 %v1234, %v1235
    %v1237 = vsel %vm463, %v1015, 0.0
    %v1238 = vrot.slane %v1237, 4
    %v1239 = vadd.f32 %v1237, %v1238
    %v1240 = vrot.slane %v1239, 2
    %v1241 = vadd.f32 %v1239, %v1240
    %v1242 = vrot.slane %v1241, 1
    %v1243 = vadd.f32 %v1241, %v1242
    %v1244 = vsel %vm463, %v1017, 0.0
    %v1245 = vrot.slane %v1244, 4
    %v1246 = vadd.f32 %v1244, %v1245
    %v1247 = vrot.slane %v1246, 2
    %v1248 = vadd.f32 %v1246, %v1247
    %v1249 = vrot.slane %v1248, 1
    %v1250 = vadd.f32 %v1248, %v1249
    %v1251 = vsel %vm463, %v1019, 0.0
    %v1252 = vrot.slane %v1251, 4
    %v1253 = vadd.f32 %v1251, %v1252
    %v1254 = vrot.slane %v1253, 2
    %v1255 = vadd.f32 %v1253, %v1254
    %v1256 = vrot.slane %v1255, 1
    %v1257 = vadd.f32 %v1255, %v1256
    %v1258 = vsel %vm463, %v1021, 0.0
    %v1259 = vrot.slane %v1258, 4
    %v1260 = vadd.f32 %v1258, %v1259
    %v1261 = vrot.slane %v1260, 2
    %v1262 = vadd.f32 %v1260, %v1261
    %v1263 = vrot.slane %v1262, 1
    %v1264 = vadd.f32 %v1262, %v1263
    %v1265 = vsel %vm463, %v1023, 0.0
    %v1266 = vrot.slane %v1265, 4
    %v1267 = vadd.f32 %v1265, %v1266
    %v1268 = vrot.slane %v1267, 2
    %v1269 = vadd.f32 %v1267, %v1268
    %v1270 = vrot.slane %v1269, 1
    %v1271 = vadd.f32 %v1269, %v1270
    %v1272 = vsel %vm463, %v1025, 0.0
    %v1273 = vrot.slane %v1272, 4
    %v1274 = vadd.f32 %v1272, %v1273
    %v1275 = vrot.slane %v1274, 2
    %v1276 = vadd.f32 %v1274, %v1275
    %v1277 = vrot.slane %v1276, 1
    %v1278 = vadd.f32 %v1276, %v1277
    %v1279 = vsel %vm463, %v1027, 0.0
    %v1280 = vrot.slane %v1279, 4
    %v1281 = vadd.f32 %v1279, %v1280
    %v1282 = vrot.slane %v1281, 2
    %v1283 = vadd.f32 %v1281, %v1282
    %v1284 = vrot.slane %v1283, 1
    %v1285 = vadd.f32 %v1283, %v1284
    %v1286 = vsel %vm463, %v1029, 0.0
    %v1287 = vrot.slane %v1286, 4
    %v1288 = vadd.f32 %v1286, %v1287
    %v1289 = vrot.slane %v1288, 2
    %v1290 = vadd.f32 %v1288, %v1289
    %v1291 = vrot.slane %v1290, 1
    %v1292 = vadd.f32 %v1290, %v1291
    %v1293 = vsel %vm463, %v1031, 0.0
    %v1294 = vrot.slane %v1293, 4
    %v1295 = vadd.f32 %v1293, %v1294
    %v1296 = vrot.slane %v1295, 2
    %v1297 = vadd.f32 %v1295, %v1296
    %v1298 = vrot.slane %v1297, 1
    %v1299 = vadd.f32 %v1297, %v1298
    %v1300 = vsel %vm463, %v1033, 0.0
    %v1301 = vrot.slane %v1300, 4
    %v1302 = vadd.f32 %v1300, %v1301
    %v1303 = vrot.slane %v1302, 2
    %v1304 = vadd.f32 %v1302, %v1303
    %v1305 = vrot.slane %v1304, 1
    %v1306 = vadd.f32 %v1304, %v1305
    %v1307 = vsel %vm463, %v1035, 0.0
    %v1308 = vrot.slane %v1307, 4
    %v1309 = vadd.f32 %v1307, %v1308
    %v1310 = vrot.slane %v1309, 2
    %v1311 = vadd.f32 %v1309, %v1310
    %v1312 = vrot.slane %v1311, 1
    %v1313 = vadd.f32 %v1311, %v1312
    %v1314 = vsel %vm463, %v1037, 0.0
    %v1315 = vrot.slane %v1314, 4
    %v1316 = vadd.f32 %v1314, %v1315
    %v1317 = vrot.slane %v1316, 2
    %v1318 = vadd.f32 %v1316, %v1317
    %v1319 = vrot.slane %v1318, 1
    %v1320 = vadd.f32 %v1318, %v1319
    %v1321 = vsel %vm463, %v1039, 0.0
    %v1322 = vrot.slane %v1321, 4
    %v1323 = vadd.f32 %v1321, %v1322
    %v1324 = vrot.slane %v1323, 2
    %v1325 = vadd.f32 %v1323, %v1324
    %v1326 = vrot.slane %v1325, 1
    %v1327 = vadd.f32 %v1325, %v1326
    %v1328 = vsel %vm463, %v1041, 0.0
    %v1329 = vrot.slane %v1328, 4
    %v1330 = vadd.f32 %v1328, %v1329
    %v1331 = vrot.slane %v1330, 2
    %v1332 = vadd.f32 %v1330, %v1331
    %v1333 = vrot.slane %v1332, 1
    %v1334 = vadd.f32 %v1332, %v1333
    %v1335 = vsel %vm463, %v1043, 0.0
    %v1336 = vrot.slane %v1335, 4
    %v1337 = vadd.f32 %v1335, %v1336
    %v1338 = vrot.slane %v1337, 2
    %v1339 = vadd.f32 %v1337, %v1338
    %v1340 = vrot.slane %v1339, 1
    %v1341 = vadd.f32 %v1339, %v1340
    %v1342 = vsel %vm463, %v1045, 0.0
    %v1343 = vrot.slane %v1342, 4
    %v1344 = vadd.f32 %v1342, %v1343
    %v1345 = vrot.slane %v1344, 2
    %v1346 = vadd.f32 %v1344, %v1345
    %v1347 = vrot.slane %v1346, 1
    %v1348 = vadd.f32 %v1346, %v1347
    %v1349 = vsel %vm463, %v1047, 0.0
    %v1350 = vrot.slane %v1349, 4
    %v1351 = vadd.f32 %v1349, %v1350
    %v1352 = vrot.slane %v1351, 2
    %v1353 = vadd.f32 %v1351, %v1352
    %v1354 = vrot.slane %v1353, 1
    %v1355 = vadd.f32 %v1353, %v1354
    %v1356 = vsel %vm463, %v1049, 0.0
    %v1357 = vrot.slane %v1356, 4
    %v1358 = vadd.f32 %v1356, %v1357
    %v1359 = vrot.slane %v1358, 2
    %v1360 = vadd.f32 %v1358, %v1359
    %v1361 = vrot.slane %v1360, 1
    %v1362 = vadd.f32 %v1360, %v1361
    %v1363 = vsel %vm463, %v1051, 0.0
    %v1364 = vrot.slane %v1363, 4
    %v1365 = vadd.f32 %v1363, %v1364
    %v1366 = vrot.slane %v1365, 2
    %v1367 = vadd.f32 %v1365, %v1366
    %v1368 = vrot.slane %v1367, 1
    %v1369 = vadd.f32 %v1367, %v1368
    %v1370 = vsel %vm463, %v1053, 0.0
    %v1371 = vrot.slane %v1370, 4
    %v1372 = vadd.f32 %v1370, %v1371
    %v1373 = vrot.slane %v1372, 2
    %v1374 = vadd.f32 %v1372, %v1373
    %v1375 = vrot.slane %v1374, 1
    %v1376 = vadd.f32 %v1374, %v1375
    %v1377 = vsel %vm463, %v1055, 0.0
    %v1378 = vrot.slane %v1377, 4
    %v1379 = vadd.f32 %v1377, %v1378
    %v1380 = vrot.slane %v1379, 2
    %v1381 = vadd.f32 %v1379, %v1380
    %v1382 = vrot.slane %v1381, 1
    %v1383 = vadd.f32 %v1381, %v1382
    %v1384 = vsel %vm463, %v1057, 0.0
    %v1385 = vrot.slane %v1384, 4
    %v1386 = vadd.f32 %v1384, %v1385
    %v1387 = vrot.slane %v1386, 2
    %v1388 = vadd.f32 %v1386, %v1387
    %v1389 = vrot.slane %v1388, 1
    %v1390 = vadd.f32 %v1388, %v1389
    %v1391 = vsel %vm463, %v1059, 0.0
    %v1392 = vrot.slane %v1391, 4
    %v1393 = vadd.f32 %v1391, %v1392
    %v1394 = vrot.slane %v1393, 2
    %v1395 = vadd.f32 %v1393, %v1394
    %v1396 = vrot.slane %v1395, 1
    %v1397 = vadd.f32 %v1395, %v1396
    %v1398 = vsel %vm463, %v1061, 0.0
    %v1399 = vrot.slane %v1398, 4
    %v1400 = vadd.f32 %v1398, %v1399
    %v1401 = vrot.slane %v1400, 2
    %v1402 = vadd.f32 %v1400, %v1401
    %v1403 = vrot.slane %v1402, 1
    %v1404 = vadd.f32 %v1402, %v1403
    %v1405 = vsel %vm463, %v1063, 0.0
    %v1406 = vrot.slane %v1405, 4
    %v1407 = vadd.f32 %v1405, %v1406
    %v1408 = vrot.slane %v1407, 2
    %v1409 = vadd.f32 %v1407, %v1408
    %v1410 = vrot.slane %v1409, 1
    %v1411 = vadd.f32 %v1409, %v1410
    %v1412 = vsel %vm463, %v1065, 0.0
    %v1413 = vrot.slane %v1412, 4
    %v1414 = vadd.f32 %v1412, %v1413
    %v1415 = vrot.slane %v1414, 2
    %v1416 = vadd.f32 %v1414, %v1415
    %v1417 = vrot.slane %v1416, 1
    %v1418 = vadd.f32 %v1416, %v1417
    %v1419 = vsel %vm463, %v1067, 0.0
    %v1420 = vrot.slane %v1419, 4
    %v1421 = vadd.f32 %v1419, %v1420
    %v1422 = vrot.slane %v1421, 2
    %v1423 = vadd.f32 %v1421, %v1422
    %v1424 = vrot.slane %v1423, 1
    %v1425 = vadd.f32 %v1423, %v1424
    %v1426 = vsel %vm463, %v1069, 0.0
    %v1427 = vrot.slane %v1426, 4
    %v1428 = vadd.f32 %v1426, %v1427
    %v1429 = vrot.slane %v1428, 2
    %v1430 = vadd.f32 %v1428, %v1429
    %v1431 = vrot.slane %v1430, 1
    %v1432 = vadd.f32 %v1430, %v1431
    %v1433 = vsel %vm463, %v1071, 0.0
    %v1434 = vrot.slane %v1433, 4
    %v1435 = vadd.f32 %v1433, %v1434
    %v1436 = vrot.slane %v1435, 2
    %v1437 = vadd.f32 %v1435, %v1436
    %v1438 = vrot.slane %v1437, 1
    %v1439 = vadd.f32 %v1437, %v1438
    %v1440 = vsel %vm463, %v1073, 0.0
    %v1441 = vrot.slane %v1440, 4
    %v1442 = vadd.f32 %v1440, %v1441
    %v1443 = vrot.slane %v1442, 2
    %v1444 = vadd.f32 %v1442, %v1443
    %v1445 = vrot.slane %v1444, 1
    %v1446 = vadd.f32 %v1444, %v1445
    %v1447 = vsel %vm463, %v1075, 0.0
    %v1448 = vrot.slane %v1447, 4
    %v1449 = vadd.f32 %v1447, %v1448
    %v1450 = vrot.slane %v1449, 2
    %v1451 = vadd.f32 %v1449, %v1450
    %v1452 = vrot.slane %v1451, 1
    %v1453 = vadd.f32 %v1451, %v1452
    %v1454 = vsel %vm463, %v1077, 0.0
    %v1455 = vrot.slane %v1454, 4
    %v1456 = vadd.f32 %v1454, %v1455
    %v1457 = vrot.slane %v1456, 2
    %v1458 = vadd.f32 %v1456, %v1457
    %v1459 = vrot.slane %v1458, 1
    %v1460 = vadd.f32 %v1458, %v1459
    %v1461 = vsel %vm463, %v1079, 0.0
    %v1462 = vrot.slane %v1461, 4
    %v1463 = vadd.f32 %v1461, %v1462
    %v1464 = vrot.slane %v1463, 2
    %v1465 = vadd.f32 %v1463, %v1464
    %v1466 = vrot.slane %v1465, 1
    %v1467 = vadd.f32 %v1465, %v1466
    %v1468 = vsel %vm463, %v1081, 0.0
    %v1469 = vrot.slane %v1468, 4
    %v1470 = vadd.f32 %v1468, %v1469
    %v1471 = vrot.slane %v1470, 2
    %v1472 = vadd.f32 %v1470, %v1471
    %v1473 = vrot.slane %v1472, 1
    %v1474 = vadd.f32 %v1472, %v1473
    %v1475 = vsel %vm463, %v1083, 0.0
    %v1476 = vrot.slane %v1475, 4
    %v1477 = vadd.f32 %v1475, %v1476
    %v1478 = vrot.slane %v1477, 2
    %v1479 = vadd.f32 %v1477, %v1478
    %v1480 = vrot.slane %v1479, 1
    %v1481 = vadd.f32 %v1479, %v1480
    %v1482 = vsel %vm463, %v1085, 0.0
    %v1483 = vrot.slane %v1482, 4
    %v1484 = vadd.f32 %v1482, %v1483
    %v1485 = vrot.slane %v1484, 2
    %v1486 = vadd.f32 %v1484, %v1485
    %v1487 = vrot.slane %v1486, 1
    %v1488 = vadd.f32 %v1486, %v1487
    %v1489 = vsel %vm463, %v1087, 0.0
    %v1490 = vrot.slane %v1489, 4
    %v1491 = vadd.f32 %v1489, %v1490
    %v1492 = vrot.slane %v1491, 2
    %v1493 = vadd.f32 %v1491, %v1492
    %v1494 = vrot.slane %v1493, 1
    %v1495 = vadd.f32 %v1493, %v1494
    %v1496 = vsel %vm463, %v1089, 0.0
    %v1497 = vrot.slane %v1496, 4
    %v1498 = vadd.f32 %v1496, %v1497
    %v1499 = vrot.slane %v1498, 2
    %v1500 = vadd.f32 %v1498, %v1499
    %v1501 = vrot.slane %v1500, 1
    %v1502 = vadd.f32 %v1500, %v1501
    %v1503 = vsel %vm463, %v1091, 0.0
    %v1504 = vrot.slane %v1503, 4
    %v1505 = vadd.f32 %v1503, %v1504
    %v1506 = vrot.slane %v1505, 2
    %v1507 = vadd.f32 %v1505, %v1506
    %v1508 = vrot.slane %v1507, 1
    %v1509 = vadd.f32 %v1507, %v1508
    %v1510 = vsel %vm463, %v1093, 0.0
    %v1511 = vrot.slane %v1510, 4
    %v1512 = vadd.f32 %v1510, %v1511
    %v1513 = vrot.slane %v1512, 2
    %v1514 = vadd.f32 %v1512, %v1513
    %v1515 = vrot.slane %v1514, 1
    %v1516 = vadd.f32 %v1514, %v1515
    %v1517 = vsel %vm463, %v1095, 0.0
    %v1518 = vrot.slane %v1517, 4
    %v1519 = vadd.f32 %v1517, %v1518
    %v1520 = vrot.slane %v1519, 2
    %v1521 = vadd.f32 %v1519, %v1520
    %v1522 = vrot.slane %v1521, 1
    %v1523 = vadd.f32 %v1521, %v1522
    %v1524 = vsel %vm463, %v1097, 0.0
    %v1525 = vrot.slane %v1524, 4
    %v1526 = vadd.f32 %v1524, %v1525
    %v1527 = vrot.slane %v1526, 2
    %v1528 = vadd.f32 %v1526, %v1527
    %v1529 = vrot.slane %v1528, 1
    %v1530 = vadd.f32 %v1528, %v1529
    %v1531 = vsel %vm463, %v1099, 0.0
    %v1532 = vrot.slane %v1531, 4
    %v1533 = vadd.f32 %v1531, %v1532
    %v1534 = vrot.slane %v1533, 2
    %v1535 = vadd.f32 %v1533, %v1534
    %v1536 = vrot.slane %v1535, 1
    %v1537 = vadd.f32 %v1535, %v1536
    %v1538 = vsel %vm463, %v1101, 0.0
    %v1539 = vrot.slane %v1538, 4
    %v1540 = vadd.f32 %v1538, %v1539
    %v1541 = vrot.slane %v1540, 2
    %v1542 = vadd.f32 %v1540, %v1541
    %v1543 = vrot.slane %v1542, 1
    %v1544 = vadd.f32 %v1542, %v1543
    %v1545 = vsel %vm463, %v1103, 0.0
    %v1546 = vrot.slane %v1545, 4
    %v1547 = vadd.f32 %v1545, %v1546
    %v1548 = vrot.slane %v1547, 2
    %v1549 = vadd.f32 %v1547, %v1548
    %v1550 = vrot.slane %v1549, 1
    %v1551 = vadd.f32 %v1549, %v1550
    %v1552 = vmul.f32 %v977, %v399
    %v1553 = vmul.f32 %v979, %v400
    %v1554 = vmul.f32 %v981, %v401
    %v1555 = vmul.f32 %v983, %v402
    %v1556 = vmul.f32 %v985, %v403
    %v1557 = vmul.f32 %v987, %v404
    %v1558 = vmul.f32 %v989, %v405
    %v1559 = vmul.f32 %v991, %v406
    %v1560 = vmul.f32 %v993, %v407
    %v1561 = vmul.f32 %v995, %v408
    %v1562 = vmul.f32 %v997, %v409
    %v1563 = vmul.f32 %v999, %v410
    %v1564 = vmul.f32 %v1001, %v411
    %v1565 = vmul.f32 %v1003, %v412
    %v1566 = vmul.f32 %v1005, %v413
    %v1567 = vmul.f32 %v1007, %v414
    %v1568 = vmul.f32 %v1009, %v415
    %v1569 = vmul.f32 %v1011, %v416
    %v1570 = vmul.f32 %v1013, %v417
    %v1571 = vmul.f32 %v1015, %v418
    %v1572 = vmul.f32 %v1017, %v419
    %v1573 = vmul.f32 %v1019, %v420
    %v1574 = vmul.f32 %v1021, %v421
    %v1575 = vmul.f32 %v1023, %v422
    %v1576 = vmul.f32 %v1025, %v423
    %v1577 = vmul.f32 %v1027, %v424
    %v1578 = vmul.f32 %v1029, %v425
    %v1579 = vmul.f32 %v1031, %v426
    %v1580 = vmul.f32 %v1033, %v427
    %v1581 = vmul.f32 %v1035, %v428
    %v1582 = vmul.f32 %v1037, %v429
    %v1583 = vmul.f32 %v1039, %v430
    %v1584 = vmul.f32 %v1041, %v431
    %v1585 = vmul.f32 %v1043, %v432
    %v1586 = vmul.f32 %v1045, %v433
    %v1587 = vmul.f32 %v1047, %v434
    %v1588 = vmul.f32 %v1049, %v435
    %v1589 = vmul.f32 %v1051, %v436
    %v1590 = vmul.f32 %v1053, %v437
    %v1591 = vmul.f32 %v1055, %v438
    %v1592 = vmul.f32 %v1057, %v439
    %v1593 = vmul.f32 %v1059, %v440
    %v1594 = vmul.f32 %v1061, %v441
    %v1595 = vmul.f32 %v1063, %v442
    %v1596 = vmul.f32 %v1065, %v443
    %v1597 = vmul.f32 %v1067, %v444
    %v1598 = vmul.f32 %v1069, %v445
    %v1599 = vmul.f32 %v1071, %v446
    %v1600 = vmul.f32 %v1073, %v447
    %v1601 = vmul.f32 %v1075, %v448
    %v1602 = vmul.f32 %v1077, %v449
    %v1603 = vmul.f32 %v1079, %v450
    %v1604 = vmul.f32 %v1081, %v451
    %v1605 = vmul.f32 %v1083, %v452
    %v1606 = vmul.f32 %v1085, %v453
    %v1607 = vmul.f32 %v1087, %v454
    %v1608 = vmul.f32 %v1089, %v455
    %v1609 = vmul.f32 %v1091, %v456
    %v1610 = vmul.f32 %v1093, %v457
    %v1611 = vmul.f32 %v1095, %v458
    %v1612 = vmul.f32 %v1097, %v459
    %v1613 = vmul.f32 %v1099, %v460
    %v1614 = vmul.f32 %v1101, %v461
    %v1615 = vmul.f32 %v1103, %v462
    %v1616 = vsel %vm463, %v1552, 0.0
    %v1617 = vrot.slane %v1616, 4
    %v1618 = vadd.f32 %v1616, %v1617
    %v1619 = vrot.slane %v1618, 2
    %v1620 = vadd.f32 %v1618, %v1619
    %v1621 = vrot.slane %v1620, 1
    %v1622 = vadd.f32 %v1620, %v1621
    %v1623 = vsel %vm463, %v1553, 0.0
    %v1624 = vrot.slane %v1623, 4
    %v1625 = vadd.f32 %v1623, %v1624
    %v1626 = vrot.slane %v1625, 2
    %v1627 = vadd.f32 %v1625, %v1626
    %v1628 = vrot.slane %v1627, 1
    %v1629 = vadd.f32 %v1627, %v1628
    %v1630 = vsel %vm463, %v1554, 0.0
    %v1631 = vrot.slane %v1630, 4
    %v1632 = vadd.f32 %v1630, %v1631
    %v1633 = vrot.slane %v1632, 2
    %v1634 = vadd.f32 %v1632, %v1633
    %v1635 = vrot.slane %v1634, 1
    %v1636 = vadd.f32 %v1634, %v1635
    %v1637 = vsel %vm463, %v1555, 0.0
    %v1638 = vrot.slane %v1637, 4
    %v1639 = vadd.f32 %v1637, %v1638
    %v1640 = vrot.slane %v1639, 2
    %v1641 = vadd.f32 %v1639, %v1640
    %v1642 = vrot.slane %v1641, 1
    %v1643 = vadd.f32 %v1641, %v1642
    %v1644 = vsel %vm463, %v1556, 0.0
    %v1645 = vrot.slane %v1644, 4
    %v1646 = vadd.f32 %v1644, %v1645
    %v1647 = vrot.slane %v1646, 2
    %v1648 = vadd.f32 %v1646, %v1647
    %v1649 = vrot.slane %v1648, 1
    %v1650 = vadd.f32 %v1648, %v1649
    %v1651 = vsel %vm463, %v1557, 0.0
    %v1652 = vrot.slane %v1651, 4
    %v1653 = vadd.f32 %v1651, %v1652
    %v1654 = vrot.slane %v1653, 2
    %v1655 = vadd.f32 %v1653, %v1654
    %v1656 = vrot.slane %v1655, 1
    %v1657 = vadd.f32 %v1655, %v1656
    %v1658 = vsel %vm463, %v1558, 0.0
    %v1659 = vrot.slane %v1658, 4
    %v1660 = vadd.f32 %v1658, %v1659
    %v1661 = vrot.slane %v1660, 2
    %v1662 = vadd.f32 %v1660, %v1661
    %v1663 = vrot.slane %v1662, 1
    %v1664 = vadd.f32 %v1662, %v1663
    %v1665 = vsel %vm463, %v1559, 0.0
    %v1666 = vrot.slane %v1665, 4
    %v1667 = vadd.f32 %v1665, %v1666
    %v1668 = vrot.slane %v1667, 2
    %v1669 = vadd.f32 %v1667, %v1668
    %v1670 = vrot.slane %v1669, 1
    %v1671 = vadd.f32 %v1669, %v1670
    %v1672 = vsel %vm463, %v1560, 0.0
    %v1673 = vrot.slane %v1672, 4
    %v1674 = vadd.f32 %v1672, %v1673
    %v1675 = vrot.slane %v1674, 2
    %v1676 = vadd.f32 %v1674, %v1675
    %v1677 = vrot.slane %v1676, 1
    %v1678 = vadd.f32 %v1676, %v1677
    %v1679 = vsel %vm463, %v1561, 0.0
    %v1680 = vrot.slane %v1679, 4
    %v1681 = vadd.f32 %v1679, %v1680
    %v1682 = vrot.slane %v1681, 2
    %v1683 = vadd.f32 %v1681, %v1682
    %v1684 = vrot.slane %v1683, 1
    %v1685 = vadd.f32 %v1683, %v1684
    %v1686 = vsel %vm463, %v1562, 0.0
    %v1687 = vrot.slane %v1686, 4
    %v1688 = vadd.f32 %v1686, %v1687
    %v1689 = vrot.slane %v1688, 2
    %v1690 = vadd.f32 %v1688, %v1689
    %v1691 = vrot.slane %v1690, 1
    %v1692 = vadd.f32 %v1690, %v1691
    %v1693 = vsel %vm463, %v1563, 0.0
    %v1694 = vrot.slane %v1693, 4
    %v1695 = vadd.f32 %v1693, %v1694
    %v1696 = vrot.slane %v1695, 2
    %v1697 = vadd.f32 %v1695, %v1696
    %v1698 = vrot.slane %v1697, 1
    %v1699 = vadd.f32 %v1697, %v1698
    %v1700 = vsel %vm463, %v1564, 0.0
    %v1701 = vrot.slane %v1700, 4
    %v1702 = vadd.f32 %v1700, %v1701
    %v1703 = vrot.slane %v1702, 2
    %v1704 = vadd.f32 %v1702, %v1703
    %v1705 = vrot.slane %v1704, 1
    %v1706 = vadd.f32 %v1704, %v1705
    %v1707 = vsel %vm463, %v1565, 0.0
    %v1708 = vrot.slane %v1707, 4
    %v1709 = vadd.f32 %v1707, %v1708
    %v1710 = vrot.slane %v1709, 2
    %v1711 = vadd.f32 %v1709, %v1710
    %v1712 = vrot.slane %v1711, 1
    %v1713 = vadd.f32 %v1711, %v1712
    %v1714 = vsel %vm463, %v1566, 0.0
    %v1715 = vrot.slane %v1714, 4
    %v1716 = vadd.f32 %v1714, %v1715
    %v1717 = vrot.slane %v1716, 2
    %v1718 = vadd.f32 %v1716, %v1717
    %v1719 = vrot.slane %v1718, 1
    %v1720 = vadd.f32 %v1718, %v1719
    %v1721 = vsel %vm463, %v1567, 0.0
    %v1722 = vrot.slane %v1721, 4
    %v1723 = vadd.f32 %v1721, %v1722
    %v1724 = vrot.slane %v1723, 2
    %v1725 = vadd.f32 %v1723, %v1724
    %v1726 = vrot.slane %v1725, 1
    %v1727 = vadd.f32 %v1725, %v1726
    %v1728 = vsel %vm463, %v1568, 0.0
    %v1729 = vrot.slane %v1728, 4
    %v1730 = vadd.f32 %v1728, %v1729
    %v1731 = vrot.slane %v1730, 2
    %v1732 = vadd.f32 %v1730, %v1731
    %v1733 = vrot.slane %v1732, 1
    %v1734 = vadd.f32 %v1732, %v1733
    %v1735 = vsel %vm463, %v1569, 0.0
    %v1736 = vrot.slane %v1735, 4
    %v1737 = vadd.f32 %v1735, %v1736
    %v1738 = vrot.slane %v1737, 2
    %v1739 = vadd.f32 %v1737, %v1738
    %v1740 = vrot.slane %v1739, 1
    %v1741 = vadd.f32 %v1739, %v1740
    %v1742 = vsel %vm463, %v1570, 0.0
    %v1743 = vrot.slane %v1742, 4
    %v1744 = vadd.f32 %v1742, %v1743
    %v1745 = vrot.slane %v1744, 2
    %v1746 = vadd.f32 %v1744, %v1745
    %v1747 = vrot.slane %v1746, 1
    %v1748 = vadd.f32 %v1746, %v1747
    %v1749 = vsel %vm463, %v1571, 0.0
    %v1750 = vrot.slane %v1749, 4
    %v1751 = vadd.f32 %v1749, %v1750
    %v1752 = vrot.slane %v1751, 2
    %v1753 = vadd.f32 %v1751, %v1752
    %v1754 = vrot.slane %v1753, 1
    %v1755 = vadd.f32 %v1753, %v1754
    %v1756 = vsel %vm463, %v1572, 0.0
    %v1757 = vrot.slane %v1756, 4
    %v1758 = vadd.f32 %v1756, %v1757
    %v1759 = vrot.slane %v1758, 2
    %v1760 = vadd.f32 %v1758, %v1759
    %v1761 = vrot.slane %v1760, 1
    %v1762 = vadd.f32 %v1760, %v1761
    %v1763 = vsel %vm463, %v1573, 0.0
    %v1764 = vrot.slane %v1763, 4
    %v1765 = vadd.f32 %v1763, %v1764
    %v1766 = vrot.slane %v1765, 2
    %v1767 = vadd.f32 %v1765, %v1766
    %v1768 = vrot.slane %v1767, 1
    %v1769 = vadd.f32 %v1767, %v1768
    %v1770 = vsel %vm463, %v1574, 0.0
    %v1771 = vrot.slane %v1770, 4
    %v1772 = vadd.f32 %v1770, %v1771
    %v1773 = vrot.slane %v1772, 2
    %v1774 = vadd.f32 %v1772, %v1773
    %v1775 = vrot.slane %v1774, 1
    %v1776 = vadd.f32 %v1774, %v1775
    %v1777 = vsel %vm463, %v1575, 0.0
    %v1778 = vrot.slane %v1777, 4
    %v1779 = vadd.f32 %v1777, %v1778
    %v1780 = vrot.slane %v1779, 2
    %v1781 = vadd.f32 %v1779, %v1780
    %v1782 = vrot.slane %v1781, 1
    %v1783 = vadd.f32 %v1781, %v1782
    %v1784 = vsel %vm463, %v1576, 0.0
    %v1785 = vrot.slane %v1784, 4
    %v1786 = vadd.f32 %v1784, %v1785
    %v1787 = vrot.slane %v1786, 2
    %v1788 = vadd.f32 %v1786, %v1787
    %v1789 = vrot.slane %v1788, 1
    %v1790 = vadd.f32 %v1788, %v1789
    %v1791 = vsel %vm463, %v1577, 0.0
    %v1792 = vrot.slane %v1791, 4
    %v1793 = vadd.f32 %v1791, %v1792
    %v1794 = vrot.slane %v1793, 2
    %v1795 = vadd.f32 %v1793, %v1794
    %v1796 = vrot.slane %v1795, 1
    %v1797 = vadd.f32 %v1795, %v1796
    %v1798 = vsel %vm463, %v1578, 0.0
    %v1799 = vrot.slane %v1798, 4
    %v1800 = vadd.f32 %v1798, %v1799
    %v1801 = vrot.slane %v1800, 2
    %v1802 = vadd.f32 %v1800, %v1801
    %v1803 = vrot.slane %v1802, 1
    %v1804 = vadd.f32 %v1802, %v1803
    %v1805 = vsel %vm463, %v1579, 0.0
    %v1806 = vrot.slane %v1805, 4
    %v1807 = vadd.f32 %v1805, %v1806
    %v1808 = vrot.slane %v1807, 2
    %v1809 = vadd.f32 %v1807, %v1808
    %v1810 = vrot.slane %v1809, 1
    %v1811 = vadd.f32 %v1809, %v1810
    %v1812 = vsel %vm463, %v1580, 0.0
    %v1813 = vrot.slane %v1812, 4
    %v1814 = vadd.f32 %v1812, %v1813
    %v1815 = vrot.slane %v1814, 2
    %v1816 = vadd.f32 %v1814, %v1815
    %v1817 = vrot.slane %v1816, 1
    %v1818 = vadd.f32 %v1816, %v1817
    %v1819 = vsel %vm463, %v1581, 0.0
    %v1820 = vrot.slane %v1819, 4
    %v1821 = vadd.f32 %v1819, %v1820
    %v1822 = vrot.slane %v1821, 2
    %v1823 = vadd.f32 %v1821, %v1822
    %v1824 = vrot.slane %v1823, 1
    %v1825 = vadd.f32 %v1823, %v1824
    %v1826 = vsel %vm463, %v1582, 0.0
    %v1827 = vrot.slane %v1826, 4
    %v1828 = vadd.f32 %v1826, %v1827
    %v1829 = vrot.slane %v1828, 2
    %v1830 = vadd.f32 %v1828, %v1829
    %v1831 = vrot.slane %v1830, 1
    %v1832 = vadd.f32 %v1830, %v1831
    %v1833 = vsel %vm463, %v1583, 0.0
    %v1834 = vrot.slane %v1833, 4
    %v1835 = vadd.f32 %v1833, %v1834
    %v1836 = vrot.slane %v1835, 2
    %v1837 = vadd.f32 %v1835, %v1836
    %v1838 = vrot.slane %v1837, 1
    %v1839 = vadd.f32 %v1837, %v1838
    %v1840 = vsel %vm463, %v1584, 0.0
    %v1841 = vrot.slane %v1840, 4
    %v1842 = vadd.f32 %v1840, %v1841
    %v1843 = vrot.slane %v1842, 2
    %v1844 = vadd.f32 %v1842, %v1843
    %v1845 = vrot.slane %v1844, 1
    %v1846 = vadd.f32 %v1844, %v1845
    %v1847 = vsel %vm463, %v1585, 0.0
    %v1848 = vrot.slane %v1847, 4
    %v1849 = vadd.f32 %v1847, %v1848
    %v1850 = vrot.slane %v1849, 2
    %v1851 = vadd.f32 %v1849, %v1850
    %v1852 = vrot.slane %v1851, 1
    %v1853 = vadd.f32 %v1851, %v1852
    %v1854 = vsel %vm463, %v1586, 0.0
    %v1855 = vrot.slane %v1854, 4
    %v1856 = vadd.f32 %v1854, %v1855
    %v1857 = vrot.slane %v1856, 2
    %v1858 = vadd.f32 %v1856, %v1857
    %v1859 = vrot.slane %v1858, 1
    %v1860 = vadd.f32 %v1858, %v1859
    %v1861 = vsel %vm463, %v1587, 0.0
    %v1862 = vrot.slane %v1861, 4
    %v1863 = vadd.f32 %v1861, %v1862
    %v1864 = vrot.slane %v1863, 2
    %v1865 = vadd.f32 %v1863, %v1864
    %v1866 = vrot.slane %v1865, 1
    %v1867 = vadd.f32 %v1865, %v1866
    %v1868 = vsel %vm463, %v1588, 0.0
    %v1869 = vrot.slane %v1868, 4
    %v1870 = vadd.f32 %v1868, %v1869
    %v1871 = vrot.slane %v1870, 2
    %v1872 = vadd.f32 %v1870, %v1871
    %v1873 = vrot.slane %v1872, 1
    %v1874 = vadd.f32 %v1872, %v1873
    %v1875 = vsel %vm463, %v1589, 0.0
    %v1876 = vrot.slane %v1875, 4
    %v1877 = vadd.f32 %v1875, %v1876
    %v1878 = vrot.slane %v1877, 2
    %v1879 = vadd.f32 %v1877, %v1878
    %v1880 = vrot.slane %v1879, 1
    %v1881 = vadd.f32 %v1879, %v1880
    %v1882 = vsel %vm463, %v1590, 0.0
    %v1883 = vrot.slane %v1882, 4
    %v1884 = vadd.f32 %v1882, %v1883
    %v1885 = vrot.slane %v1884, 2
    %v1886 = vadd.f32 %v1884, %v1885
    %v1887 = vrot.slane %v1886, 1
    %v1888 = vadd.f32 %v1886, %v1887
    %v1889 = vsel %vm463, %v1591, 0.0
    %v1890 = vrot.slane %v1889, 4
    %v1891 = vadd.f32 %v1889, %v1890
    %v1892 = vrot.slane %v1891, 2
    %v1893 = vadd.f32 %v1891, %v1892
    %v1894 = vrot.slane %v1893, 1
    %v1895 = vadd.f32 %v1893, %v1894
    %v1896 = vsel %vm463, %v1592, 0.0
    %v1897 = vrot.slane %v1896, 4
    %v1898 = vadd.f32 %v1896, %v1897
    %v1899 = vrot.slane %v1898, 2
    %v1900 = vadd.f32 %v1898, %v1899
    %v1901 = vrot.slane %v1900, 1
    %v1902 = vadd.f32 %v1900, %v1901
    %v1903 = vsel %vm463, %v1593, 0.0
    %v1904 = vrot.slane %v1903, 4
    %v1905 = vadd.f32 %v1903, %v1904
    %v1906 = vrot.slane %v1905, 2
    %v1907 = vadd.f32 %v1905, %v1906
    %v1908 = vrot.slane %v1907, 1
    %v1909 = vadd.f32 %v1907, %v1908
    %v1910 = vsel %vm463, %v1594, 0.0
    %v1911 = vrot.slane %v1910, 4
    %v1912 = vadd.f32 %v1910, %v1911
    %v1913 = vrot.slane %v1912, 2
    %v1914 = vadd.f32 %v1912, %v1913
    %v1915 = vrot.slane %v1914, 1
    %v1916 = vadd.f32 %v1914, %v1915
    %v1917 = vsel %vm463, %v1595, 0.0
    %v1918 = vrot.slane %v1917, 4
    %v1919 = vadd.f32 %v1917, %v1918
    %v1920 = vrot.slane %v1919, 2
    %v1921 = vadd.f32 %v1919, %v1920
    %v1922 = vrot.slane %v1921, 1
    %v1923 = vadd.f32 %v1921, %v1922
    %v1924 = vsel %vm463, %v1596, 0.0
    %v1925 = vrot.slane %v1924, 4
    %v1926 = vadd.f32 %v1924, %v1925
    %v1927 = vrot.slane %v1926, 2
    %v1928 = vadd.f32 %v1926, %v1927
    %v1929 = vrot.slane %v1928, 1
    %v1930 = vadd.f32 %v1928, %v1929
    %v1931 = vsel %vm463, %v1597, 0.0
    %v1932 = vrot.slane %v1931, 4
    %v1933 = vadd.f32 %v1931, %v1932
    %v1934 = vrot.slane %v1933, 2
    %v1935 = vadd.f32 %v1933, %v1934
    %v1936 = vrot.slane %v1935, 1
    %v1937 = vadd.f32 %v1935, %v1936
    %v1938 = vsel %vm463, %v1598, 0.0
    %v1939 = vrot.slane %v1938, 4
    %v1940 = vadd.f32 %v1938, %v1939
    %v1941 = vrot.slane %v1940, 2
    %v1942 = vadd.f32 %v1940, %v1941
    %v1943 = vrot.slane %v1942, 1
    %v1944 = vadd.f32 %v1942, %v1943
    %v1945 = vsel %vm463, %v1599, 0.0
    %v1946 = vrot.slane %v1945, 4
    %v1947 = vadd.f32 %v1945, %v1946
    %v1948 = vrot.slane %v1947, 2
    %v1949 = vadd.f32 %v1947, %v1948
    %v1950 = vrot.slane %v1949, 1
    %v1951 = vadd.f32 %v1949, %v1950
    %v1952 = vsel %vm463, %v1600, 0.0
    %v1953 = vrot.slane %v1952, 4
    %v1954 = vadd.f32 %v1952, %v1953
    %v1955 = vrot.slane %v1954, 2
    %v1956 = vadd.f32 %v1954, %v1955
    %v1957 = vrot.slane %v1956, 1
    %v1958 = vadd.f32 %v1956, %v1957
    %v1959 = vsel %vm463, %v1601, 0.0
    %v1960 = vrot.slane %v1959, 4
    %v1961 = vadd.f32 %v1959, %v1960
    %v1962 = vrot.slane %v1961, 2
    %v1963 = vadd.f32 %v1961, %v1962
    %v1964 = vrot.slane %v1963, 1
    %v1965 = vadd.f32 %v1963, %v1964
    %v1966 = vsel %vm463, %v1602, 0.0
    %v1967 = vrot.slane %v1966, 4
    %v1968 = vadd.f32 %v1966, %v1967
    %v1969 = vrot.slane %v1968, 2
    %v1970 = vadd.f32 %v1968, %v1969
    %v1971 = vrot.slane %v1970, 1
    %v1972 = vadd.f32 %v1970, %v1971
    %v1973 = vsel %vm463, %v1603, 0.0
    %v1974 = vrot.slane %v1973, 4
    %v1975 = vadd.f32 %v1973, %v1974
    %v1976 = vrot.slane %v1975, 2
    %v1977 = vadd.f32 %v1975, %v1976
    %v1978 = vrot.slane %v1977, 1
    %v1979 = vadd.f32 %v1977, %v1978
    %v1980 = vsel %vm463, %v1604, 0.0
    %v1981 = vrot.slane %v1980, 4
    %v1982 = vadd.f32 %v1980, %v1981
    %v1983 = vrot.slane %v1982, 2
    %v1984 = vadd.f32 %v1982, %v1983
    %v1985 = vrot.slane %v1984, 1
    %v1986 = vadd.f32 %v1984, %v1985
    %v1987 = vsel %vm463, %v1605, 0.0
    %v1988 = vrot.slane %v1987, 4
    %v1989 = vadd.f32 %v1987, %v1988
    %v1990 = vrot.slane %v1989, 2
    %v1991 = vadd.f32 %v1989, %v1990
    %v1992 = vrot.slane %v1991, 1
    %v1993 = vadd.f32 %v1991, %v1992
    %v1994 = vsel %vm463, %v1606, 0.0
    %v1995 = vrot.slane %v1994, 4
    %v1996 = vadd.f32 %v1994, %v1995
    %v1997 = vrot.slane %v1996, 2
    %v1998 = vadd.f32 %v1996, %v1997
    %v1999 = vrot.slane %v1998, 1
    %v2000 = vadd.f32 %v1998, %v1999
    %v2001 = vsel %vm463, %v1607, 0.0
    %v2002 = vrot.slane %v2001, 4
    %v2003 = vadd.f32 %v2001, %v2002
    %v2004 = vrot.slane %v2003, 2
    %v2005 = vadd.f32 %v2003, %v2004
    %v2006 = vrot.slane %v2005, 1
    %v2007 = vadd.f32 %v2005, %v2006
    %v2008 = vsel %vm463, %v1608, 0.0
    %v2009 = vrot.slane %v2008, 4
    %v2010 = vadd.f32 %v2008, %v2009
    %v2011 = vrot.slane %v2010, 2
    %v2012 = vadd.f32 %v2010, %v2011
    %v2013 = vrot.slane %v2012, 1
    %v2014 = vadd.f32 %v2012, %v2013
    %v2015 = vsel %vm463, %v1609, 0.0
    %v2016 = vrot.slane %v2015, 4
    %v2017 = vadd.f32 %v2015, %v2016
    %v2018 = vrot.slane %v2017, 2
    %v2019 = vadd.f32 %v2017, %v2018
    %v2020 = vrot.slane %v2019, 1
    %v2021 = vadd.f32 %v2019, %v2020
    %v2022 = vsel %vm463, %v1610, 0.0
    %v2023 = vrot.slane %v2022, 4
    %v2024 = vadd.f32 %v2022, %v2023
    %v2025 = vrot.slane %v2024, 2
    %v2026 = vadd.f32 %v2024, %v2025
    %v2027 = vrot.slane %v2026, 1
    %v2028 = vadd.f32 %v2026, %v2027
    %v2029 = vsel %vm463, %v1611, 0.0
    %v2030 = vrot.slane %v2029, 4
    %v2031 = vadd.f32 %v2029, %v2030
    %v2032 = vrot.slane %v2031, 2
    %v2033 = vadd.f32 %v2031, %v2032
    %v2034 = vrot.slane %v2033, 1
    %v2035 = vadd.f32 %v2033, %v2034
    %v2036 = vsel %vm463, %v1612, 0.0
    %v2037 = vrot.slane %v2036, 4
    %v2038 = vadd.f32 %v2036, %v2037
    %v2039 = vrot.slane %v2038, 2
    %v2040 = vadd.f32 %v2038, %v2039
    %v2041 = vrot.slane %v2040, 1
    %v2042 = vadd.f32 %v2040, %v2041
    %v2043 = vsel %vm463, %v1613, 0.0
    %v2044 = vrot.slane %v2043, 4
    %v2045 = vadd.f32 %v2043, %v2044
    %v2046 = vrot.slane %v2045, 2
    %v2047 = vadd.f32 %v2045, %v2046
    %v2048 = vrot.slane %v2047, 1
    %v2049 = vadd.f32 %v2047, %v2048
    %v2050 = vsel %vm463, %v1614, 0.0
    %v2051 = vrot.slane %v2050, 4
    %v2052 = vadd.f32 %v2050, %v2051
    %v2053 = vrot.slane %v2052, 2
    %v2054 = vadd.f32 %v2052, %v2053
    %v2055 = vrot.slane %v2054, 1
    %v2056 = vadd.f32 %v2054, %v2055
    %v2057 = vsel %vm463, %v1615, 0.0
    %v2058 = vrot.slane %v2057, 4
    %v2059 = vadd.f32 %v2057, %v2058
    %v2060 = vrot.slane %v2059, 2
    %v2061 = vadd.f32 %v2059, %v2060
    %v2062 = vrot.slane %v2061, 1
    %v2063 = vadd.f32 %v2061, %v2062
    %v2064 = vrcp.pop %v1110
    %v2065 = vrcp.pop %v1117
    %v2066 = vrcp.pop %v1124
    %v2067 = vrcp.pop %v1131
    %v2068 = vrcp.pop %v1138
    %v2069 = vrcp.pop %v1145
    %v2070 = vrcp.pop %v1152
    %v2071 = vrcp.pop %v1159
    %v2072 = vrcp.pop %v1166
    %v2073 = vrcp.pop %v1173
    %v2074 = vrcp.pop %v1180
    %v2075 = vrcp.pop %v1187
    %v2076 = vrcp.pop %v1194
    %v2077 = vrcp.pop %v1201
    %v2078 = vrcp.pop %v1208
    %v2079 = vrcp.pop %v1215
    %v2080 = vrcp.pop %v1222
    %v2081 = vrcp.pop %v1229
    %v2082 = vrcp.pop %v1236
    %v2083 = vrcp.pop %v1243
    %v2084 = vrcp.pop %v1250
    %v2085 = vrcp.pop %v1257
    %v2086 = vrcp.pop %v1264
    %v2087 = vrcp.pop %v1271
    %v2088 = vrcp.pop %v1278
    %v2089 = vrcp.pop %v1285
    %v2090 = vrcp.pop %v1292
    %v2091 = vrcp.pop %v1299
    %v2092 = vrcp.pop %v1306
    %v2093 = vrcp.pop %v1313
    %v2094 = vrcp.pop %v1320
    %v2095 = vrcp.pop %v1327
    %v2096 = vrcp.pop %v1334
    %v2097 = vrcp.pop %v1341
    %v2098 = vrcp.pop %v1348
    %v2099 = vrcp.pop %v1355
    %v2100 = vrcp.pop %v1362
    %v2101 = vrcp.pop %v1369
    %v2102 = vrcp.pop %v1376
    %v2103 = vrcp.pop %v1383
    %v2104 = vrcp.pop %v1390
    %v2105 = vrcp.pop %v1397
    %v2106 = vrcp.pop %v1404
    %v2107 = vrcp.pop %v1411
    %v2108 = vrcp.pop %v1418
    %v2109 = vrcp.pop %v1425
    %v2110 = vrcp.pop %v1432
    %v2111 = vrcp.pop %v1439
    %v2112 = vrcp.pop %v1446
    %v2113 = vrcp.pop %v1453
    %v2114 = vrcp.pop %v1460
    %v2115 = vrcp.pop %v1467
    %v2116 = vrcp.pop %v1474
    %v2117 = vrcp.pop %v1481
    %v2118 = vrcp.pop %v1488
    %v2119 = vrcp.pop %v1495
    %v2120 = vrcp.pop %v1502
    %v2121 = vrcp.pop %v1509
    %v2122 = vrcp.pop %v1516
    %v2123 = vrcp.pop %v1523
    %v2124 = vrcp.pop %v1530
    %v2125 = vrcp.pop %v1537
    %v2126 = vrcp.pop %v1544
    %v2127 = vrcp.pop %v1551
    %v2128 = vmul.f32 %v1622, %v2064
    %v2129 = vmul.f32 %v1629, %v2065
    %v2130 = vmul.f32 %v1636, %v2066
    %v2131 = vmul.f32 %v1643, %v2067
    %v2132 = vmul.f32 %v1650, %v2068
    %v2133 = vmul.f32 %v1657, %v2069
    %v2134 = vmul.f32 %v1664, %v2070
    %v2135 = vmul.f32 %v1671, %v2071
    %v2136 = vmul.f32 %v1678, %v2072
    %v2137 = vmul.f32 %v1685, %v2073
    %v2138 = vmul.f32 %v1692, %v2074
    %v2139 = vmul.f32 %v1699, %v2075
    %v2140 = vmul.f32 %v1706, %v2076
    %v2141 = vmul.f32 %v1713, %v2077
    %v2142 = vmul.f32 %v1720, %v2078
    %v2143 = vmul.f32 %v1727, %v2079
    %v2144 = vmul.f32 %v1734, %v2080
    %v2145 = vmul.f32 %v1741, %v2081
    %v2146 = vmul.f32 %v1748, %v2082
    %v2147 = vmul.f32 %v1755, %v2083
    %v2148 = vmul.f32 %v1762, %v2084
    %v2149 = vmul.f32 %v1769, %v2085
    %v2150 = vmul.f32 %v1776, %v2086
    %v2151 = vmul.f32 %v1783, %v2087
    %v2152 = vmul.f32 %v1790, %v2088
    %v2153 = vmul.f32 %v1797, %v2089
    %v2154 = vmul.f32 %v1804, %v2090
    %v2155 = vmul.f32 %v1811, %v2091
    %v2156 = vmul.f32 %v1818, %v2092
    %v2157 = vmul.f32 %v1825, %v2093
    %v2158 = vmul.f32 %v1832, %v2094
    %v2159 = vmul.f32 %v1839, %v2095
    %v2160 = vmul.f32 %v1846, %v2096
    %v2161 = vmul.f32 %v1853, %v2097
    %v2162 = vmul.f32 %v1860, %v2098
    %v2163 = vmul.f32 %v1867, %v2099
    %v2164 = vmul.f32 %v1874, %v2100
    %v2165 = vmul.f32 %v1881, %v2101
    %v2166 = vmul.f32 %v1888, %v2102
    %v2167 = vmul.f32 %v1895, %v2103
    %v2168 = vmul.f32 %v1902, %v2104
    %v2169 = vmul.f32 %v1909, %v2105
    %v2170 = vmul.f32 %v1916, %v2106
    %v2171 = vmul.f32 %v1923, %v2107
    %v2172 = vmul.f32 %v1930, %v2108
    %v2173 = vmul.f32 %v1937, %v2109
    %v2174 = vmul.f32 %v1944, %v2110
    %v2175 = vmul.f32 %v1951, %v2111
    %v2176 = vmul.f32 %v1958, %v2112
    %v2177 = vmul.f32 %v1965, %v2113
    %v2178 = vmul.f32 %v1972, %v2114
    %v2179 = vmul.f32 %v1979, %v2115
    %v2180 = vmul.f32 %v1986, %v2116
    %v2181 = vmul.f32 %v1993, %v2117
    %v2182 = vmul.f32 %v2000, %v2118
    %v2183 = vmul.f32 %v2007, %v2119
    %v2184 = vmul.f32 %v2014, %v2120
    %v2185 = vmul.f32 %v2021, %v2121
    %v2186 = vmul.f32 %v2028, %v2122
    %v2187 = vmul.f32 %v2035, %v2123
    %v2188 = vmul.f32 %v2042, %v2124
    %v2189 = vmul.f32 %v2049, %v2125
    %v2190 = vmul.f32 %v2056, %v2126
    %v2191 = vmul.f32 %v2063, %v2127
    %vm2256 = vcmask 1041409
    %v2257 = vsel %vm2256, %v2129, %v2128
    %vm2258 = vcmask 1042434
    %v2259 = vsel %vm2258, %v2130, %v2257
    %vm2260 = vcmask 1043459
    %v2261 = vsel %vm2260, %v2131, %v2259
    %vm2262 = vcmask 1044484
    %v2263 = vsel %vm2262, %v2132, %v2261
    %vm2264 = vcmask 1045509
    %v2265 = vsel %vm2264, %v2133, %v2263
    %vm2266 = vcmask 1046534
    %v2267 = vsel %vm2266, %v2134, %v2265
    %vm2268 = vcmask 1047559
    %v2269 = vsel %vm2268, %v2135, %v2267
    %v2270 = vsel %vm2256, %v2137, %v2136
    %v2271 = vsel %vm2258, %v2138, %v2270
    %v2272 = vsel %vm2260, %v2139, %v2271
    %v2273 = vsel %vm2262, %v2140, %v2272
    %v2274 = vsel %vm2264, %v2141, %v2273
    %v2275 = vsel %vm2266, %v2142, %v2274
    %v2276 = vsel %vm2268, %v2143, %v2275
    %v2277 = vsel %vm2256, %v2145, %v2144
    %v2278 = vsel %vm2258, %v2146, %v2277
    %v2279 = vsel %vm2260, %v2147, %v2278
    %v2280 = vsel %vm2262, %v2148, %v2279
    %v2281 = vsel %vm2264, %v2149, %v2280
    %v2282 = vsel %vm2266, %v2150, %v2281
    %v2283 = vsel %vm2268, %v2151, %v2282
    %v2284 = vsel %vm2256, %v2153, %v2152
    %v2285 = vsel %vm2258, %v2154, %v2284
    %v2286 = vsel %vm2260, %v2155, %v2285
    %v2287 = vsel %vm2262, %v2156, %v2286
    %v2288 = vsel %vm2264, %v2157, %v2287
    %v2289 = vsel %vm2266, %v2158, %v2288
    %v2290 = vsel %vm2268, %v2159, %v2289
    %v2291 = vsel %vm2256, %v2161, %v2160
    %v2292 = vsel %vm2258, %v2162, %v2291
    %v2293 = vsel %vm2260, %v2163, %v2292
    %v2294 = vsel %vm2262, %v2164, %v2293
    %v2295 = vsel %vm2264, %v2165, %v2294
    %v2296 = vsel %vm2266, %v2166, %v2295
    %v2297 = vsel %vm2268, %v2167, %v2296
    %v2298 = vsel %vm2256, %v2169, %v2168
    %v2299 = vsel %vm2258, %v2170, %v2298
    %v2300 = vsel %vm2260, %v2171, %v2299
    %v2301 = vsel %vm2262, %v2172, %v2300
    %v2302 = vsel %vm2264, %v2173, %v2301
    %v2303 = vsel %vm2266, %v2174, %v2302
    %v2304 = vsel %vm2268, %v2175, %v2303
    %v2305 = vsel %vm2256, %v2177, %v2176
    %v2306 = vsel %vm2258, %v2178, %v2305
    %v2307 = vsel %vm2260, %v2179, %v2306
    %v2308 = vsel %vm2262, %v2180, %v2307
    %v2309 = vsel %vm2264, %v2181, %v2308
    %v2310 = vsel %vm2266, %v2182, %v2309
    %v2311 = vsel %vm2268, %v2183, %v2310
    %v2312 = vsel %vm2256, %v2185, %v2184
    %v2313 = vsel %vm2258, %v2186, %v2312
    %v2314 = vsel %vm2260, %v2187, %v2313
    %v2315 = vsel %vm2262, %v2188, %v2314
    %v2316 = vsel %vm2264, %v2189, %v2315
    %v2317 = vsel %vm2266, %v2190, %v2316
    %v2318 = vsel %vm2268, %v2191, %v2317
    %2327 = vst.msk [vmem:[#allocation2] sm:$0xff] %vm463, %v2269
    %2328 = vst.msk [vmem:[#allocation2 + $0x8] sm:$0xff] %vm463, %v2276
    %2329 = vst.msk [vmem:[#allocation2 + $0x10] sm:$0xff] %vm463, %v2283
    %2330 = vst.msk [vmem:[#allocation2 + $0x18] sm:$0xff] %vm463, %v2290
    %2331 = vst.msk [vmem:[#allocation2 + $0x20] sm:$0xff] %vm463, %v2297
    %2332 = vst.msk [vmem:[#allocation2 + $0x28] sm:$0xff] %vm463, %v2304
    %2333 = vst.msk [vmem:[#allocation2 + $0x30] sm:$0xff] %vm463, %v2311
    %2334 = vst.msk [vmem:[#allocation2 + $0x38] sm:$0xff] %vm463, %v2318
    // Predicated region
    $region14: #{point_transformer_layer.11} parent=1 // pred_check
      _
    $region15: #{point_transformer_layer.11} parent=1 // pred_check_branch
      %2336 = sbr.rel (0) target = $region17
    $region16: #{point_transformer_layer.11} parent=1 // pred_region
      %2338 = vsyncadd [#allocation3], 0
      %s2339 = sshll.u32 [#allocation2], 4
      %s2340 = int_to_ptr.vmem [resolvable:$true] %s2339
      %s2341 = sshll.u32 %s3, 4
      %s2342 = int_to_ptr.hbm [resolvable:$true] %s2341
      %2347 = dma.vmem_to_hbm [thread:$0]  %s2340, 1024, %s2342, [#allocation3], 128, 128, 8
    $region17: #{point_transformer_layer.11} parent=1 // pred_fallthru
      _
    // Predicated region
    $region18: #{point_transformer_layer.11} parent=1 // pred_check
      _
    $region19: #{point_transformer_layer.11} parent=1 // pred_check_branch
      %2349 = sbr.rel (0) target = $region21
    $region20: #{point_transformer_layer.11} parent=1 // pred_region
      %2351 = dma.done [#allocation3], 1024
    $region21: #{point_transformer_layer.11} parent=1 // pred_fallthru
      _
    %2352 = vsyncpa [#allocation3], 1

</llo_original>
